<compile_context>
chip_gen: v7x
topology: tpu7x:2x2x1
jax: 0.10.0
libtpu: 0.0.40
codegen_flags: <defaults>
</compile_context>

<pallas_src>
import functools

import jax
import jax.numpy as jnp
from jax.experimental import pallas as pl
from jax.experimental.pallas import tpu as pltpu

EPS = 1e-5
_VMEM_LIMIT = 32 * 1024 * 1024   # safe scoped-VMEM budget on v5e / v6e / v7x


# --------------------------------------------------------------------------
# shared depthwise-conv helper (operates on one padded image block in VMEM)
# --------------------------------------------------------------------------
def _depthwise_tile(x_ref, wdw_ref, *, stride, Ho, Wo):
    """3x3 depthwise conv of one spatially padded image block.

    x_ref  : (Hp, Wp, C) VMEM ref, NHWC layout (C on lanes, W on sublanes)
    wdw_ref: (9, C)      taps, row k = ki*3 + kj
    returns: (Ho*Wo, C)  float32
    """
    C = x_ref.shape[-1]
    w9 = wdw_ref[...].astype(jnp.float32)          # load the 9 tap rows once
    acc = None
    for di in range(3):
        for dj in range(3):
            if stride == 1:
                patch = x_ref[di:di + Ho, dj:dj + Wo, :]
            else:
                # express the stride in the load itself -- no strided slicing of
                # a live vreg array.
                patch = x_ref[pl.ds(di, Ho, stride), pl.ds(dj, Wo, stride), :]
            term = patch.astype(jnp.float32) * w9[di * 3 + dj]
            acc = term if acc is None else acc + term
    # (Ho, Wo, C) -> (Ho*Wo, C): collapses only non-lane dims (Wo % 8 == 0 here),
    # so this is layout-preserving (no in-kernel relayout copy).
    return acc.reshape(Ho * Wo, C)


# --------------------------------------------------------------------------
# K1: depthwise conv -> per-image BN1 statistics (one-pass sum / sumsq)
# --------------------------------------------------------------------------
def _dw_stats_kernel(x_ref, wdw_ref, stats_ref, *, stride, Ho, Wo):
    y = _depthwise_tile(x_ref, wdw_ref, stride=stride, Ho=Ho, Wo=Wo)   # (Ho*Wo, C)
    stats_ref[0:1, :] = jnp.sum(y, axis=0, keepdims=True)              # (1, C)
    stats_ref[1:2, :] = jnp.sum(y * y, axis=0, keepdims=True)          # E[x^2] pass


# --------------------------------------------------------------------------
# K2: depthwise conv -> folded BN1 + ReLU -> pointwise matmul (MXU)
#     -> per-image BN2 statistics, store z
# --------------------------------------------------------------------------
def _dw_bn1_pw_kernel(x_ref, wdw_ref, sc1_ref, sh1_ref, wpw_ref,
                      z_ref, stats_ref, *, stride, Ho, Wo):
    Co = wpw_ref.shape[-1]

    y = _depthwise_tile(x_ref, wdw_ref, stride=stride, Ho=Ho, Wo=Wo)   # (Ho*Wo, C)
    a = jnp.maximum(y * sc1_ref[...] + sh1_ref[...], 0.0)              # BN1+ReLU, one FMA

    # pointwise 1x1 conv == matmul over the channel axis (f32 operands: v5e-safe;
    # cast a/wpw to bf16 here for v6e/v7x once C, Co reach production sizes).
    z = jnp.dot(a, wpw_ref[...], preferred_element_type=jnp.float32)   # (Ho*Wo, Co)

    stats_ref[0:1, :] = jnp.sum(z, axis=0, keepdims=True)              # (1, Co)
    stats_ref[1:2, :] = jnp.sum(z * z, axis=0, keepdims=True)

    # split of the leading (row) dim only -> layout-preserving store
    z_ref[...] = z.reshape(Ho, Wo, Co)


# --------------------------------------------------------------------------
# K3: folded BN2 + ReLU, lane-dense (rows, Wo*Co) elementwise pass
# --------------------------------------------------------------------------
def _bn2_relu_kernel(z_ref, sc2_ref, sh2_ref, o_ref):
    o_ref[...] = jnp.maximum(z_ref[...] * sc2_ref[...] + sh2_ref[...], 0.0)


# --------------------------------------------------------------------------
# wrapper
# --------------------------------------------------------------------------
def _const_spec(shape):
    return pl.BlockSpec(shape, lambda *_: (0,) * len(shape))


def _fold_bn(sum_, sq_, gamma, beta, inv_cnt):
    """Fold batch-stats BN (biased variance) into per-channel scale/shift."""
    mean = sum_ * inv_cnt
    var = jnp.maximum(sq_ * inv_cnt - mean * mean, 0.0)
    rstd = jax.lax.rsqrt(var + EPS)
    scale = gamma * rstd
    shift = beta - mean * scale
    return scale, shift


def _row_tile(total_rows, row_bytes, cap=4 << 20):
    """Largest multiple-of-8 divisor of total_rows whose tile fits under `cap` bytes."""
    cands = [d for d in range(8, total_rows + 1, 8)
             if total_rows % d == 0 and d * row_bytes <= cap]
    return max(cands) if cands else total_rows


@functools.partial(jax.jit, static_argnames=("stride",))
def block_forward(x_nchw, params, *, stride=1):
    """Forward of Block.  x_nchw: (N, C, H, W) f32  ->  (N, Co, Ho, Wo) f32."""
    w_dw, g1, b1, w_pw, g2, b2 = params
    N, C, H, W = x_nchw.shape
    Co = w_pw.shape[0]
    Ho = (H + 2 - 3) // stride + 1
    Wo = (W + 2 - 3) // stride + 1
    Hp, Wp = H + 2, W + 2
    inv_cnt = 1.0 / float(N * Ho * Wo)

    # glue (all fused by XLA under this jit): NCHW->NHWC relayout folded together
    # with the 1-pixel zero pad, plus small weight repacks.
    x_pad = jnp.pad(jnp.transpose(x_nchw, (0, 2, 3, 1)),
                    ((0, 0), (1, 1), (1, 1), (0, 0)))                 # (N, Hp, Wp, C)
    wdw = jnp.transpose(w_dw.reshape(C, 9), (1, 0))                   # (9, C)
    wpw = jnp.transpose(w_pw.reshape(Co, C), (1, 0))                  # (C, Co)

    img_spec = pl.BlockSpec((None, Hp, Wp, C), lambda n: (n, 0, 0, 0))
    par = pltpu.CompilerParams(dimension_semantics=("parallel",),
                               vmem_limit_bytes=_VMEM_LIMIT)

    # ---- K1: per-image BN1 statistics (grid over batch; fully parallel) ----
    stats1 = pl.pallas_call(
        functools.partial(_dw_stats_kernel, stride=stride, Ho=Ho, Wo=Wo),
        out_shape=jax.ShapeDtypeStruct((N, 2, C), jnp.float32),
        grid=(N,),
        in_specs=[img_spec, _const_spec((9, C))],
        out_specs=pl.BlockSpec((None, 2, C), lambda n: (n, 0, 0)),
        compiler_params=par,
    )(x_pad, wdw)
    scale1, shift1 = _fold_bn(jnp.sum(stats1[:, 0, :], axis=0),
                              jnp.sum(stats1[:, 1, :], axis=0), g1, b1, inv_cnt)

    # ---- K2: conv -> BN1+ReLU -> pointwise matmul, per-image BN2 statistics ----
    z4, stats2 = pl.pallas_call(
        functools.partial(_dw_bn1_pw_kernel, stride=stride, Ho=Ho, Wo=Wo),
        out_shape=(jax.ShapeDtypeStruct((N, Ho, Wo, Co), jnp.float32),
                   jax.ShapeDtypeStruct((N, 2, Co), jnp.float32)),
        grid=(N,),
        in_specs=[img_spec, _const_spec((9, C)), _const_spec((1, C)),
                  _const_spec((1, C)), _const_spec((C, Co))],
        out_specs=(pl.BlockSpec((None, Ho, Wo, Co), lambda n: (n, 0, 0, 0)),
                   pl.BlockSpec((None, 2, Co), lambda n: (n, 0, 0))),
        compiler_params=par,
    )(x_pad, wdw, scale1.reshape(1, C), shift1.reshape(1, C), wpw)
    scale2, shift2 = _fold_bn(jnp.sum(stats2[:, 0, :], axis=0),
                              jnp.sum(stats2[:, 1, :], axis=0), g2, b2, inv_cnt)

    # ---- K3: BN2 + ReLU on a lane-dense view (full-lane loads/stores) ----
    # (N, Ho, Wo, Co) and (N*Ho, Wo*Co) share the same HBM bytes -> free reshape.
    rows = N * Ho
    z_ld = z4.reshape(rows, Wo * Co)
    scale2_ld = jnp.tile(scale2, Wo).reshape(1, Wo * Co)   # lane index = w*Co + co
    shift2_ld = jnp.tile(shift2, Wo).reshape(1, Wo * Co)

    tile_rows = _row_tile(rows, Wo * Co * 4)               # (8,128)-safe row tile
    row_spec = pl.BlockSpec((tile_rows, Wo * Co), lambda n: (n, 0))
    out_ld = pl.pallas_call(
        _bn2_relu_kernel,
        out_shape=jax.ShapeDtypeStruct((rows, Wo * Co), jnp.float32),
        grid=(rows // tile_rows,),
        in_specs=[row_spec, _const_spec((1, Wo * Co)), _const_spec((1, Wo * Co))],
        out_specs=row_spec,
        compiler_params=par,
    )(z_ld, scale2_ld, shift2_ld)

    out = out_ld.reshape(N, Ho, Wo, Co)
    # TODO(synk): fusing this NHWC->NCHW relayout into K3's out_spec would save one
    # HBM round trip, but needs an in-kernel 3-D transpose (Mosaic-lowering risk).
    return jnp.transpose(out, (0, 3, 1, 2))                # NHWC -> NCHW


# --------------------------------------------------------------------------
# pure-JAX/XLA reference replicating the PyTorch module
# --------------------------------------------------------------------------
def _reference(x, w_dw, g1, b1, w_pw, g2, b2, stride):
    def bn(o, g, b):
        m = o.mean(axis=(0, 2, 3), keepdims=True)
        v = ((o - m) ** 2).mean(axis=(0, 2, 3), keepdims=True)
        return (o - m) / jnp.sqrt(v + EPS) * g.reshape(1, -1, 1, 1) \
               + b.reshape(1, -1, 1, 1)

    out = jax.lax.conv_general_dilated(
        x, w_dw, (stride, stride), ((1, 1), (1, 1)),
        dimension_numbers=('NCHW', 'OIHW', 'NCHW'),
        feature_group_count=x.shape[1])
    out = jax.nn.relu(bn(out, g1, b1))
    out = jax.lax.conv_general_dilated(
        out, w_pw, (1, 1), ((0, 0), (0, 0)),
        dimension_numbers=('NCHW', 'OIHW', 'NCHW'))
    return jax.nn.relu(bn(out, g2, b2))


if __name__ == "__main__":
    key = jax.random.PRNGKey(0)
    ks = jax.random.split(key, 7)

    N, Cin, Cout, H, W, stride = 2, 8, 16, 16, 16, 1
    x = jax.random.normal(ks[0], (N, Cin, H, W), jnp.float32)

    # deterministic synthetic parameters (shapes follow nn.Module.__init__)
    w_dw = 0.3 * jax.random.normal(ks[1], (Cin, 1, 3, 3), jnp.float32)     # conv1.weight
    w_pw = 0.3 * jax.random.normal(ks[2], (Cout, Cin, 1, 1), jnp.float32)  # conv2.weight
    g1 = 1.0 + 0.1 * jax.random.normal(ks[3], (Cin,), jnp.float32)         # bn1.weight
    b1 = 0.1 * jax.random.normal(ks[4], (Cin,), jnp.float32)               # bn1.bias
    g2 = 1.0 + 0.1 * jax.random.normal(ks[5], (Cout,), jnp.float32)        # bn2.weight
    b2 = 0.1 * jax.random.normal(ks[6], (Cout,), jnp.float32)              # bn2.bias

    out = block_forward(x, (w_dw, g1, b1, w_pw, g2, b2), stride=stride)
    out = jax.block_until_ready(out)

    ref = _reference(x, w_dw, g1, b1, w_pw, g2, b2, stride)
    assert out.shape == ref.shape == (N, Cout, H // stride, W // stride)
    err = float(jnp.max(jnp.abs(out - ref)))
    assert err < 5e-4, f"max abs err too large: {err}"
    print("KERNEL_OK")
</pallas_src>

<mosaic_0001>
module attributes {stable_mosaic.version = 11 : i64} {
  func.func @_dw_stats_kernel(%arg0: i32, %arg1: memref<1x18x18x8xf32, #tpu.memory_space<vmem>>, %arg2: memref<9x8xf32, #tpu.memory_space<vmem>>, %arg3: memref<1x2x8xf32, #tpu.memory_space<vmem>>) attributes {dimension_semantics = [#tpu.dimension_semantics<parallel>], iteration_bounds = array<i64: 2>, scalar_prefetch = 0 : i64, scratch_operands = 0 : i64, tpu.core_type = #tpu.core_type<tc>, window_params = [{transform_indices = @transform_0, window_bounds = array<i64: 1, 18, 18, 8>}, {pipeline_mode = #tpu.pipeline_mode<synchronous>, transform_indices = @transform_1, window_bounds = array<i64: 9, 8>}, {transform_indices = @transform_2, window_bounds = array<i64: 1, 2, 8>}]} {
    %c0 = arith.constant 0 : index
    %c0_0 = arith.constant 0 : index
    %0 = vector.load %arg2[%c0, %c0_0] : memref<9x8xf32, #tpu.memory_space<vmem>>, vector<9x8xf32>
    %c0_1 = arith.constant 0 : index
    %c0_2 = arith.constant 0 : index
    %c0_3 = arith.constant 0 : index
    %c0_4 = arith.constant 0 : index
    %1 = vector.load %arg1[%c0_1, %c0_2, %c0_3, %c0_4] : memref<1x18x18x8xf32, #tpu.memory_space<vmem>>, vector<1x16x16x8xf32>
    %2 = vector.shape_cast %1 : vector<1x16x16x8xf32> to vector<16x16x8xf32>
    %3 = vector.extract_strided_slice %0 {offsets = [0, 0], sizes = [1, 8], strides = [1, 1]} : vector<9x8xf32> to vector<1x8xf32>
    %4 = vector.shape_cast %3 : vector<1x8xf32> to vector<8xf32>
    %5 = vector.shape_cast %4 : vector<8xf32> to vector<1x1x8xf32>
    %6 = vector.broadcast %5 : vector<1x1x8xf32> to vector<16x16x8xf32>
    %7 = arith.mulf %2, %6 : vector<16x16x8xf32>
    %c0_5 = arith.constant 0 : index
    %c0_6 = arith.constant 0 : index
    %c1 = arith.constant 1 : index
    %c0_7 = arith.constant 0 : index
    %8 = vector.load %arg1[%c0_5, %c0_6, %c1, %c0_7] : memref<1x18x18x8xf32, #tpu.memory_space<vmem>>, vector<1x16x16x8xf32>
    %9 = vector.shape_cast %8 : vector<1x16x16x8xf32> to vector<16x16x8xf32>
    %10 = vector.extract_strided_slice %0 {offsets = [1, 0], sizes = [1, 8], strides = [1, 1]} : vector<9x8xf32> to vector<1x8xf32>
    %11 = vector.shape_cast %10 : vector<1x8xf32> to vector<8xf32>
    %12 = vector.shape_cast %11 : vector<8xf32> to vector<1x1x8xf32>
    %13 = vector.broadcast %12 : vector<1x1x8xf32> to vector<16x16x8xf32>
    %14 = arith.mulf %9, %13 : vector<16x16x8xf32>
    %15 = arith.addf %7, %14 : vector<16x16x8xf32>
    %c0_8 = arith.constant 0 : index
    %c0_9 = arith.constant 0 : index
    %c2 = arith.constant 2 : index
    %c0_10 = arith.constant 0 : index
    %16 = vector.load %arg1[%c0_8, %c0_9, %c2, %c0_10] : memref<1x18x18x8xf32, #tpu.memory_space<vmem>>, vector<1x16x16x8xf32>
    %17 = vector.shape_cast %16 : vector<1x16x16x8xf32> to vector<16x16x8xf32>
    %18 = vector.extract_strided_slice %0 {offsets = [2, 0], sizes = [1, 8], strides = [1, 1]} : vector<9x8xf32> to vector<1x8xf32>
    %19 = vector.shape_cast %18 : vector<1x8xf32> to vector<8xf32>
    %20 = vector.shape_cast %19 : vector<8xf32> to vector<1x1x8xf32>
    %21 = vector.broadcast %20 : vector<1x1x8xf32> to vector<16x16x8xf32>
    %22 = arith.mulf %17, %21 : vector<16x16x8xf32>
    %23 = arith.addf %15, %22 : vector<16x16x8xf32>
    %c0_11 = arith.constant 0 : index
    %c1_12 = arith.constant 1 : index
    %c0_13 = arith.constant 0 : index
    %c0_14 = arith.constant 0 : index
    %24 = vector.load %arg1[%c0_11, %c1_12, %c0_13, %c0_14] : memref<1x18x18x8xf32, #tpu.memory_space<vmem>>, vector<1x16x16x8xf32>
    %25 = vector.shape_cast %24 : vector<1x16x16x8xf32> to vector<16x16x8xf32>
    %26 = vector.extract_strided_slice %0 {offsets = [3, 0], sizes = [1, 8], strides = [1, 1]} : vector<9x8xf32> to vector<1x8xf32>
    %27 = vector.shape_cast %26 : vector<1x8xf32> to vector<8xf32>
    %28 = vector.shape_cast %27 : vector<8xf32> to vector<1x1x8xf32>
    %29 = vector.broadcast %28 : vector<1x1x8xf32> to vector<16x16x8xf32>
    %30 = arith.mulf %25, %29 : vector<16x16x8xf32>
    %31 = arith.addf %23, %30 : vector<16x16x8xf32>
    %c0_15 = arith.constant 0 : index
    %c1_16 = arith.constant 1 : index
    %c1_17 = arith.constant 1 : index
    %c0_18 = arith.constant 0 : index
    %32 = vector.load %arg1[%c0_15, %c1_16, %c1_17, %c0_18] : memref<1x18x18x8xf32, #tpu.memory_space<vmem>>, vector<1x16x16x8xf32>
    %33 = vector.shape_cast %32 : vector<1x16x16x8xf32> to vector<16x16x8xf32>
    %34 = vector.extract_strided_slice %0 {offsets = [4, 0], sizes = [1, 8], strides = [1, 1]} : vector<9x8xf32> to vector<1x8xf32>
    %35 = vector.shape_cast %34 : vector<1x8xf32> to vector<8xf32>
    %36 = vector.shape_cast %35 : vector<8xf32> to vector<1x1x8xf32>
    %37 = vector.broadcast %36 : vector<1x1x8xf32> to vector<16x16x8xf32>
    %38 = arith.mulf %33, %37 : vector<16x16x8xf32>
    %39 = arith.addf %31, %38 : vector<16x16x8xf32>
    %c0_19 = arith.constant 0 : index
    %c1_20 = arith.constant 1 : index
    %c2_21 = arith.constant 2 : index
    %c0_22 = arith.constant 0 : index
    %40 = vector.load %arg1[%c0_19, %c1_20, %c2_21, %c0_22] : memref<1x18x18x8xf32, #tpu.memory_space<vmem>>, vector<1x16x16x8xf32>
    %41 = vector.shape_cast %40 : vector<1x16x16x8xf32> to vector<16x16x8xf32>
    %42 = vector.extract_strided_slice %0 {offsets = [5, 0], sizes = [1, 8], strides = [1, 1]} : vector<9x8xf32> to vector<1x8xf32>
    %43 = vector.shape_cast %42 : vector<1x8xf32> to vector<8xf32>
    %44 = vector.shape_cast %43 : vector<8xf32> to vector<1x1x8xf32>
    %45 = vector.broadcast %44 : vector<1x1x8xf32> to vector<16x16x8xf32>
    %46 = arith.mulf %41, %45 : vector<16x16x8xf32>
    %47 = arith.addf %39, %46 : vector<16x16x8xf32>
    %c0_23 = arith.constant 0 : index
    %c2_24 = arith.constant 2 : index
    %c0_25 = arith.constant 0 : index
    %c0_26 = arith.constant 0 : index
    %48 = vector.load %arg1[%c0_23, %c2_24, %c0_25, %c0_26] : memref<1x18x18x8xf32, #tpu.memory_space<vmem>>, vector<1x16x16x8xf32>
    %49 = vector.shape_cast %48 : vector<1x16x16x8xf32> to vector<16x16x8xf32>
    %50 = vector.extract_strided_slice %0 {offsets = [6, 0], sizes = [1, 8], strides = [1, 1]} : vector<9x8xf32> to vector<1x8xf32>
    %51 = vector.shape_cast %50 : vector<1x8xf32> to vector<8xf32>
    %52 = vector.shape_cast %51 : vector<8xf32> to vector<1x1x8xf32>
    %53 = vector.broadcast %52 : vector<1x1x8xf32> to vector<16x16x8xf32>
    %54 = arith.mulf %49, %53 : vector<16x16x8xf32>
    %55 = arith.addf %47, %54 : vector<16x16x8xf32>
    %c0_27 = arith.constant 0 : index
    %c2_28 = arith.constant 2 : index
    %c1_29 = arith.constant 1 : index
    %c0_30 = arith.constant 0 : index
    %56 = vector.load %arg1[%c0_27, %c2_28, %c1_29, %c0_30] : memref<1x18x18x8xf32, #tpu.memory_space<vmem>>, vector<1x16x16x8xf32>
    %57 = vector.shape_cast %56 : vector<1x16x16x8xf32> to vector<16x16x8xf32>
    %58 = vector.extract_strided_slice %0 {offsets = [7, 0], sizes = [1, 8], strides = [1, 1]} : vector<9x8xf32> to vector<1x8xf32>
    %59 = vector.shape_cast %58 : vector<1x8xf32> to vector<8xf32>
    %60 = vector.shape_cast %59 : vector<8xf32> to vector<1x1x8xf32>
    %61 = vector.broadcast %60 : vector<1x1x8xf32> to vector<16x16x8xf32>
    %62 = arith.mulf %57, %61 : vector<16x16x8xf32>
    %63 = arith.addf %55, %62 : vector<16x16x8xf32>
    %c0_31 = arith.constant 0 : index
    %c2_32 = arith.constant 2 : index
    %c2_33 = arith.constant 2 : index
    %c0_34 = arith.constant 0 : index
    %64 = vector.load %arg1[%c0_31, %c2_32, %c2_33, %c0_34] : memref<1x18x18x8xf32, #tpu.memory_space<vmem>>, vector<1x16x16x8xf32>
    %65 = vector.shape_cast %64 : vector<1x16x16x8xf32> to vector<16x16x8xf32>
    %66 = vector.extract_strided_slice %0 {offsets = [8, 0], sizes = [1, 8], strides = [1, 1]} : vector<9x8xf32> to vector<1x8xf32>
    %67 = vector.shape_cast %66 : vector<1x8xf32> to vector<8xf32>
    %68 = vector.shape_cast %67 : vector<8xf32> to vector<1x1x8xf32>
    %69 = vector.broadcast %68 : vector<1x1x8xf32> to vector<16x16x8xf32>
    %70 = arith.mulf %65, %69 : vector<16x16x8xf32>
    %71 = arith.addf %63, %70 : vector<16x16x8xf32>
    %72 = vector.shape_cast %71 : vector<16x16x8xf32> to vector<256x8xf32>
    %cst = arith.constant dense<0.000000e+00> : vector<8xf32>
    %73 = vector.multi_reduction <add>, %72, %cst [0] : vector<256x8xf32> to vector<8xf32>
    %74 = vector.shape_cast %73 : vector<8xf32> to vector<1x8xf32>
    %c0_35 = arith.constant 0 : index
    %c0_36 = arith.constant 0 : index
    %c0_37 = arith.constant 0 : index
    %75 = vector.load %arg3[%c0_35, %c0_36, %c0_37] : memref<1x2x8xf32, #tpu.memory_space<vmem>>, vector<1x1x8xf32>
    %76 = vector.shape_cast %75 : vector<1x1x8xf32> to vector<1x8xf32>
    %77 = vector.shape_cast %74 : vector<1x8xf32> to vector<1x1x8xf32>
    tpu.vector_store %arg3[%c0_35, %c0_36, %c0_37], %77 {strides = array<i32>} : memref<1x2x8xf32, #tpu.memory_space<vmem>>, vector<1x1x8xf32>,
    %78 = arith.mulf %72, %72 : vector<256x8xf32>
    %cst_38 = arith.constant dense<0.000000e+00> : vector<8xf32>
    %79 = vector.multi_reduction <add>, %78, %cst_38 [0] : vector<256x8xf32> to vector<8xf32>
    %80 = vector.shape_cast %79 : vector<8xf32> to vector<1x8xf32>
    %c0_39 = arith.constant 0 : index
    %c1_40 = arith.constant 1 : index
    %c0_41 = arith.constant 0 : index
    %81 = vector.load %arg3[%c0_39, %c1_40, %c0_41] : memref<1x2x8xf32, #tpu.memory_space<vmem>>, vector<1x1x8xf32>
    %82 = vector.shape_cast %81 : vector<1x1x8xf32> to vector<1x8xf32>
    %83 = vector.shape_cast %80 : vector<1x8xf32> to vector<1x1x8xf32>
    tpu.vector_store %arg3[%c0_39, %c1_40, %c0_41], %83 {strides = array<i32>} : memref<1x2x8xf32, #tpu.memory_space<vmem>>, vector<1x1x8xf32>,
    return
  }
  func.func @transform_0(%arg0: i32) -> (i32, i32, i32, i32) {
    %c0_i32 = arith.constant 0 : i32
    %c0_i32_0 = arith.constant 0 : i32
    %c0_i32_1 = arith.constant 0 : i32
    %c0_i32_2 = arith.constant 0 : i32
    return %arg0, %c0_i32, %c0_i32_0, %c0_i32_1 : i32, i32, i32, i32
  }
  func.func @transform_1(%arg0: i32) -> (i32, i32) {
    %c0_i32 = arith.constant 0 : i32
    %c0_i32_0 = arith.constant 0 : i32
    %c0_i32_1 = arith.constant 0 : i32
    return %c0_i32, %c0_i32_0 : i32, i32
  }
  func.func @transform_2(%arg0: i32) -> (i32, i32, i32) {
    %c0_i32 = arith.constant 0 : i32
    %c0_i32_0 = arith.constant 0 : i32
    %c0_i32_1 = arith.constant 0 : i32
    return %arg0, %c0_i32, %c0_i32_0 : i32, i32, i32
  }
}

module attributes {stable_mosaic.version = 11 : i64} {
  func.func @_dw_bn1_pw_kernel(%arg0: i32, %arg1: memref<1x18x18x8xf32, #tpu.memory_space<vmem>>, %arg2: memref<9x8xf32, #tpu.memory_space<vmem>>, %arg3: memref<1x8xf32, #tpu.memory_space<vmem>>, %arg4: memref<1x8xf32, #tpu.memory_space<vmem>>, %arg5: memref<8x16xf32, #tpu.memory_space<vmem>>, %arg6: memref<1x16x16x16xf32, #tpu.memory_space<vmem>>, %arg7: memref<1x2x16xf32, #tpu.memory_space<vmem>>) attributes {dimension_semantics = [#tpu.dimension_semantics<parallel>], iteration_bounds = array<i64: 2>, scalar_prefetch = 0 : i64, scratch_operands = 0 : i64, tpu.core_type = #tpu.core_type<tc>, window_params = [{transform_indices = @transform_0, window_bounds = array<i64: 1, 18, 18, 8>}, {pipeline_mode = #tpu.pipeline_mode<synchronous>, transform_indices = @transform_1, window_bounds = array<i64: 9, 8>}, {pipeline_mode = #tpu.pipeline_mode<synchronous>, transform_indices = @transform_2, window_bounds = array<i64: 1, 8>}, {pipeline_mode = #tpu.pipeline_mode<synchronous>, transform_indices = @transform_3, window_bounds = array<i64: 1, 8>}, {pipeline_mode = #tpu.pipeline_mode<synchronous>, transform_indices = @transform_4, window_bounds = array<i64: 8, 16>}, {transform_indices = @transform_5, window_bounds = array<i64: 1, 16, 16, 16>}, {transform_indices = @transform_6, window_bounds = array<i64: 1, 2, 16>}]} {
    %c0 = arith.constant 0 : index
    %c0_0 = arith.constant 0 : index
    %0 = vector.load %arg2[%c0, %c0_0] : memref<9x8xf32, #tpu.memory_space<vmem>>, vector<9x8xf32>
    %c0_1 = arith.constant 0 : index
    %c0_2 = arith.constant 0 : index
    %c0_3 = arith.constant 0 : index
    %c0_4 = arith.constant 0 : index
    %1 = vector.load %arg1[%c0_1, %c0_2, %c0_3, %c0_4] : memref<1x18x18x8xf32, #tpu.memory_space<vmem>>, vector<1x16x16x8xf32>
    %2 = vector.shape_cast %1 : vector<1x16x16x8xf32> to vector<16x16x8xf32>
    %3 = vector.extract_strided_slice %0 {offsets = [0, 0], sizes = [1, 8], strides = [1, 1]} : vector<9x8xf32> to vector<1x8xf32>
    %4 = vector.shape_cast %3 : vector<1x8xf32> to vector<8xf32>
    %5 = vector.shape_cast %4 : vector<8xf32> to vector<1x1x8xf32>
    %6 = vector.broadcast %5 : vector<1x1x8xf32> to vector<16x16x8xf32>
    %7 = arith.mulf %2, %6 : vector<16x16x8xf32>
    %c0_5 = arith.constant 0 : index
    %c0_6 = arith.constant 0 : index
    %c1 = arith.constant 1 : index
    %c0_7 = arith.constant 0 : index
    %8 = vector.load %arg1[%c0_5, %c0_6, %c1, %c0_7] : memref<1x18x18x8xf32, #tpu.memory_space<vmem>>, vector<1x16x16x8xf32>
    %9 = vector.shape_cast %8 : vector<1x16x16x8xf32> to vector<16x16x8xf32>
    %10 = vector.extract_strided_slice %0 {offsets = [1, 0], sizes = [1, 8], strides = [1, 1]} : vector<9x8xf32> to vector<1x8xf32>
    %11 = vector.shape_cast %10 : vector<1x8xf32> to vector<8xf32>
    %12 = vector.shape_cast %11 : vector<8xf32> to vector<1x1x8xf32>
    %13 = vector.broadcast %12 : vector<1x1x8xf32> to vector<16x16x8xf32>
    %14 = arith.mulf %9, %13 : vector<16x16x8xf32>
    %15 = arith.addf %7, %14 : vector<16x16x8xf32>
    %c0_8 = arith.constant 0 : index
    %c0_9 = arith.constant 0 : index
    %c2 = arith.constant 2 : index
    %c0_10 = arith.constant 0 : index
    %16 = vector.load %arg1[%c0_8, %c0_9, %c2, %c0_10] : memref<1x18x18x8xf32, #tpu.memory_space<vmem>>, vector<1x16x16x8xf32>
    %17 = vector.shape_cast %16 : vector<1x16x16x8xf32> to vector<16x16x8xf32>
    %18 = vector.extract_strided_slice %0 {offsets = [2, 0], sizes = [1, 8], strides = [1, 1]} : vector<9x8xf32> to vector<1x8xf32>
    %19 = vector.shape_cast %18 : vector<1x8xf32> to vector<8xf32>
    %20 = vector.shape_cast %19 : vector<8xf32> to vector<1x1x8xf32>
    %21 = vector.broadcast %20 : vector<1x1x8xf32> to vector<16x16x8xf32>
    %22 = arith.mulf %17, %21 : vector<16x16x8xf32>
    %23 = arith.addf %15, %22 : vector<16x16x8xf32>
    %c0_11 = arith.constant 0 : index
    %c1_12 = arith.constant 1 : index
    %c0_13 = arith.constant 0 : index
    %c0_14 = arith.constant 0 : index
    %24 = vector.load %arg1[%c0_11, %c1_12, %c0_13, %c0_14] : memref<1x18x18x8xf32, #tpu.memory_space<vmem>>, vector<1x16x16x8xf32>
    %25 = vector.shape_cast %24 : vector<1x16x16x8xf32> to vector<16x16x8xf32>
    %26 = vector.extract_strided_slice %0 {offsets = [3, 0], sizes = [1, 8], strides = [1, 1]} : vector<9x8xf32> to vector<1x8xf32>
    %27 = vector.shape_cast %26 : vector<1x8xf32> to vector<8xf32>
    %28 = vector.shape_cast %27 : vector<8xf32> to vector<1x1x8xf32>
    %29 = vector.broadcast %28 : vector<1x1x8xf32> to vector<16x16x8xf32>
    %30 = arith.mulf %25, %29 : vector<16x16x8xf32>
    %31 = arith.addf %23, %30 : vector<16x16x8xf32>
    %c0_15 = arith.constant 0 : index
    %c1_16 = arith.constant 1 : index
    %c1_17 = arith.constant 1 : index
    %c0_18 = arith.constant 0 : index
    %32 = vector.load %arg1[%c0_15, %c1_16, %c1_17, %c0_18] : memref<1x18x18x8xf32, #tpu.memory_space<vmem>>, vector<1x16x16x8xf32>
    %33 = vector.shape_cast %32 : vector<1x16x16x8xf32> to vector<16x16x8xf32>
    %34 = vector.extract_strided_slice %0 {offsets = [4, 0], sizes = [1, 8], strides = [1, 1]} : vector<9x8xf32> to vector<1x8xf32>
    %35 = vector.shape_cast %34 : vector<1x8xf32> to vector<8xf32>
    %36 = vector.shape_cast %35 : vector<8xf32> to vector<1x1x8xf32>
    %37 = vector.broadcast %36 : vector<1x1x8xf32> to vector<16x16x8xf32>
    %38 = arith.mulf %33, %37 : vector<16x16x8xf32>
    %39 = arith.addf %31, %38 : vector<16x16x8xf32>
    %c0_19 = arith.constant 0 : index
    %c1_20 = arith.constant 1 : index
    %c2_21 = arith.constant 2 : index
    %c0_22 = arith.constant 0 : index
    %40 = vector.load %arg1[%c0_19, %c1_20, %c2_21, %c0_22] : memref<1x18x18x8xf32, #tpu.memory_space<vmem>>, vector<1x16x16x8xf32>
    %41 = vector.shape_cast %40 : vector<1x16x16x8xf32> to vector<16x16x8xf32>
    %42 = vector.extract_strided_slice %0 {offsets = [5, 0], sizes = [1, 8], strides = [1, 1]} : vector<9x8xf32> to vector<1x8xf32>
    %43 = vector.shape_cast %42 : vector<1x8xf32> to vector<8xf32>
    %44 = vector.shape_cast %43 : vector<8xf32> to vector<1x1x8xf32>
    %45 = vector.broadcast %44 : vector<1x1x8xf32> to vector<16x16x8xf32>
    %46 = arith.mulf %41, %45 : vector<16x16x8xf32>
    %47 = arith.addf %39, %46 : vector<16x16x8xf32>
    %c0_23 = arith.constant 0 : index
    %c2_24 = arith.constant 2 : index
    %c0_25 = arith.constant 0 : index
    %c0_26 = arith.constant 0 : index
    %48 = vector.load %arg1[%c0_23, %c2_24, %c0_25, %c0_26] : memref<1x18x18x8xf32, #tpu.memory_space<vmem>>, vector<1x16x16x8xf32>
    %49 = vector.shape_cast %48 : vector<1x16x16x8xf32> to vector<16x16x8xf32>
    %50 = vector.extract_strided_slice %0 {offsets = [6, 0], sizes = [1, 8], strides = [1, 1]} : vector<9x8xf32> to vector<1x8xf32>
    %51 = vector.shape_cast %50 : vector<1x8xf32> to vector<8xf32>
    %52 = vector.shape_cast %51 : vector<8xf32> to vector<1x1x8xf32>
    %53 = vector.broadcast %52 : vector<1x1x8xf32> to vector<16x16x8xf32>
    %54 = arith.mulf %49, %53 : vector<16x16x8xf32>
    %55 = arith.addf %47, %54 : vector<16x16x8xf32>
    %c0_27 = arith.constant 0 : index
    %c2_28 = arith.constant 2 : index
    %c1_29 = arith.constant 1 : index
    %c0_30 = arith.constant 0 : index
    %56 = vector.load %arg1[%c0_27, %c2_28, %c1_29, %c0_30] : memref<1x18x18x8xf32, #tpu.memory_space<vmem>>, vector<1x16x16x8xf32>
    %57 = vector.shape_cast %56 : vector<1x16x16x8xf32> to vector<16x16x8xf32>
    %58 = vector.extract_strided_slice %0 {offsets = [7, 0], sizes = [1, 8], strides = [1, 1]} : vector<9x8xf32> to vector<1x8xf32>
    %59 = vector.shape_cast %58 : vector<1x8xf32> to vector<8xf32>
    %60 = vector.shape_cast %59 : vector<8xf32> to vector<1x1x8xf32>
    %61 = vector.broadcast %60 : vector<1x1x8xf32> to vector<16x16x8xf32>
    %62 = arith.mulf %57, %61 : vector<16x16x8xf32>
    %63 = arith.addf %55, %62 : vector<16x16x8xf32>
    %c0_31 = arith.constant 0 : index
    %c2_32 = arith.constant 2 : index
    %c2_33 = arith.constant 2 : index
    %c0_34 = arith.constant 0 : index
    %64 = vector.load %arg1[%c0_31, %c2_32, %c2_33, %c0_34] : memref<1x18x18x8xf32, #tpu.memory_space<vmem>>, vector<1x16x16x8xf32>
    %65 = vector.shape_cast %64 : vector<1x16x16x8xf32> to vector<16x16x8xf32>
    %66 = vector.extract_strided_slice %0 {offsets = [8, 0], sizes = [1, 8], strides = [1, 1]} : vector<9x8xf32> to vector<1x8xf32>
    %67 = vector.shape_cast %66 : vector<1x8xf32> to vector<8xf32>
    %68 = vector.shape_cast %67 : vector<8xf32> to vector<1x1x8xf32>
    %69 = vector.broadcast %68 : vector<1x1x8xf32> to vector<16x16x8xf32>
    %70 = arith.mulf %65, %69 : vector<16x16x8xf32>
    %71 = arith.addf %63, %70 : vector<16x16x8xf32>
    %72 = vector.shape_cast %71 : vector<16x16x8xf32> to vector<256x8xf32>
    %c0_35 = arith.constant 0 : index
    %c0_36 = arith.constant 0 : index
    %73 = vector.load %arg3[%c0_35, %c0_36] : memref<1x8xf32, #tpu.memory_space<vmem>>, vector<1x8xf32>
    %74 = vector.broadcast %73 : vector<1x8xf32> to vector<256x8xf32>
    %75 = arith.mulf %72, %74 : vector<256x8xf32>
    %c0_37 = arith.constant 0 : index
    %c0_38 = arith.constant 0 : index
    %76 = vector.load %arg4[%c0_37, %c0_38] : memref<1x8xf32, #tpu.memory_space<vmem>>, vector<1x8xf32>
    %77 = vector.broadcast %76 : vector<1x8xf32> to vector<256x8xf32>
    %78 = arith.addf %75, %77 : vector<256x8xf32>
    %cst = arith.constant 0.000000e+00 : f32
    %79 = vector.broadcast %cst : f32 to vector<256x8xf32>
    %80 = arith.maximumf %78, %79 : vector<256x8xf32>
    %c0_39 = arith.constant 0 : index
    %c0_40 = arith.constant 0 : index
    %81 = vector.load %arg5[%c0_39, %c0_40] : memref<8x16xf32, #tpu.memory_space<vmem>>, vector<8x16xf32>
    %cst_41 = arith.constant dense<0.000000e+00> : vector<256x16xf32>
    %82 = tpu.matmul %80, %81, %cst_41 {dimension_numbers = #tpu.dot_dimension_numbers<[1], [0], [0], [1], [0, 0, 1, 1], [], []>} : vector<256x8xf32>, vector<8x16xf32>, vector<256x16xf32> -> vector<256x16xf32>
    %cst_42 = arith.constant dense<0.000000e+00> : vector<16xf32>
    %83 = vector.multi_reduction <add>, %82, %cst_42 [0] : vector<256x16xf32> to vector<16xf32>
    %84 = vector.shape_cast %83 : vector<16xf32> to vector<1x16xf32>
    %c0_43 = arith.constant 0 : index
    %c0_44 = arith.constant 0 : index
    %c0_45 = arith.constant 0 : index
    %85 = vector.load %arg7[%c0_43, %c0_44, %c0_45] : memref<1x2x16xf32, #tpu.memory_space<vmem>>, vector<1x1x16xf32>
    %86 = vector.shape_cast %85 : vector<1x1x16xf32> to vector<1x16xf32>
    %87 = vector.shape_cast %84 : vector<1x16xf32> to vector<1x1x16xf32>
    tpu.vector_store %arg7[%c0_43, %c0_44, %c0_45], %87 {strides = array<i32>} : memref<1x2x16xf32, #tpu.memory_space<vmem>>, vector<1x1x16xf32>,
    %88 = arith.mulf %82, %82 : vector<256x16xf32>
    %cst_46 = arith.constant dense<0.000000e+00> : vector<16xf32>
    %89 = vector.multi_reduction <add>, %88, %cst_46 [0] : vector<256x16xf32> to vector<16xf32>
    %90 = vector.shape_cast %89 : vector<16xf32> to vector<1x16xf32>
    %c0_47 = arith.constant 0 : index
    %c1_48 = arith.constant 1 : index
    %c0_49 = arith.constant 0 : index
    %91 = vector.load %arg7[%c0_47, %c1_48, %c0_49] : memref<1x2x16xf32, #tpu.memory_space<vmem>>, vector<1x1x16xf32>
    %92 = vector.shape_cast %91 : vector<1x1x16xf32> to vector<1x16xf32>
    %93 = vector.shape_cast %90 : vector<1x16xf32> to vector<1x1x16xf32>
    tpu.vector_store %arg7[%c0_47, %c1_48, %c0_49], %93 {strides = array<i32>} : memref<1x2x16xf32, #tpu.memory_space<vmem>>, vector<1x1x16xf32>,
    %94 = vector.shape_cast %82 : vector<256x16xf32> to vector<16x16x16xf32>
    %c0_50 = arith.constant 0 : index
    %c0_51 = arith.constant 0 : index
    %c0_52 = arith.constant 0 : index
    %c0_53 = arith.constant 0 : index
    %95 = vector.load %arg6[%c0_50, %c0_51, %c0_52, %c0_53] : memref<1x16x16x16xf32, #tpu.memory_space<vmem>>, vector<1x16x16x16xf32>
    %96 = vector.shape_cast %95 : vector<1x16x16x16xf32> to vector<16x16x16xf32>
    %97 = vector.shape_cast %94 : vector<16x16x16xf32> to vector<1x16x16x16xf32>
    tpu.vector_store %arg6[%c0_50, %c0_51, %c0_52, %c0_53], %97 {strides = array<i32>} : memref<1x16x16x16xf32, #tpu.memory_space<vmem>>, vector<1x16x16x16xf32>,
    return
  }
  func.func @transform_0(%arg0: i32) -> (i32, i32, i32, i32) {
    %c0_i32 = arith.constant 0 : i32
    %c0_i32_0 = arith.constant 0 : i32
    %c0_i32_1 = arith.constant 0 : i32
    %c0_i32_2 = arith.constant 0 : i32
    return %arg0, %c0_i32, %c0_i32_0, %c0_i32_1 : i32, i32, i32, i32
  }
  func.func @transform_1(%arg0: i32) -> (i32, i32) {
    %c0_i32 = arith.constant 0 : i32
    %c0_i32_0 = arith.constant 0 : i32
    %c0_i32_1 = arith.constant 0 : i32
    return %c0_i32, %c0_i32_0 : i32, i32
  }
  func.func @transform_2(%arg0: i32) -> (i32, i32) {
    %c0_i32 = arith.constant 0 : i32
    %c0_i32_0 = arith.constant 0 : i32
    %c0_i32_1 = arith.constant 0 : i32
    return %c0_i32, %c0_i32_0 : i32, i32
  }
  func.func @transform_3(%arg0: i32) -> (i32, i32) {
    %c0_i32 = arith.constant 0 : i32
    %c0_i32_0 = arith.constant 0 : i32
    %c0_i32_1 = arith.constant 0 : i32
    return %c0_i32, %c0_i32_0 : i32, i32
  }
  func.func @transform_4(%arg0: i32) -> (i32, i32) {
    %c0_i32 = arith.constant 0 : i32
    %c0_i32_0 = arith.constant 0 : i32
    %c0_i32_1 = arith.constant 0 : i32
    return %c0_i32, %c0_i32_0 : i32, i32
  }
  func.func @transform_5(%arg0: i32) -> (i32, i32, i32, i32) {
    %c0_i32 = arith.constant 0 : i32
    %c0_i32_0 = arith.constant 0 : i32
    %c0_i32_1 = arith.constant 0 : i32
    %c0_i32_2 = arith.constant 0 : i32
    return %arg0, %c0_i32, %c0_i32_0, %c0_i32_1 : i32, i32, i32, i32
  }
  func.func @transform_6(%arg0: i32) -> (i32, i32, i32) {
    %c0_i32 = arith.constant 0 : i32
    %c0_i32_0 = arith.constant 0 : i32
    %c0_i32_1 = arith.constant 0 : i32
    return %arg0, %c0_i32, %c0_i32_0 : i32, i32, i32
  }
}

module attributes {stable_mosaic.version = 11 : i64} {
  func.func @_bn2_relu_kernel(%arg0: i32, %arg1: memref<32x256xf32, #tpu.memory_space<vmem>>, %arg2: memref<1x256xf32, #tpu.memory_space<vmem>>, %arg3: memref<1x256xf32, #tpu.memory_space<vmem>>, %arg4: memref<32x256xf32, #tpu.memory_space<vmem>>) attributes {dimension_semantics = [#tpu.dimension_semantics<parallel>], iteration_bounds = array<i64: 1>, scalar_prefetch = 0 : i64, scratch_operands = 0 : i64, tpu.core_type = #tpu.core_type<tc>, window_params = [{transform_indices = @transform_0, window_bounds = array<i64: 32, 256>}, {pipeline_mode = #tpu.pipeline_mode<synchronous>, transform_indices = @transform_1, window_bounds = array<i64: 1, 256>}, {pipeline_mode = #tpu.pipeline_mode<synchronous>, transform_indices = @transform_2, window_bounds = array<i64: 1, 256>}, {transform_indices = @transform_3, window_bounds = array<i64: 32, 256>}]} {
    %c0 = arith.constant 0 : index
    %c0_0 = arith.constant 0 : index
    %0 = vector.load %arg1[%c0, %c0_0] : memref<32x256xf32, #tpu.memory_space<vmem>>, vector<32x256xf32>
    %c0_1 = arith.constant 0 : index
    %c0_2 = arith.constant 0 : index
    %1 = vector.load %arg2[%c0_1, %c0_2] : memref<1x256xf32, #tpu.memory_space<vmem>>, vector<1x256xf32>
    %2 = vector.broadcast %1 : vector<1x256xf32> to vector<32x256xf32>
    %3 = arith.mulf %0, %2 : vector<32x256xf32>
    %c0_3 = arith.constant 0 : index
    %c0_4 = arith.constant 0 : index
    %4 = vector.load %arg3[%c0_3, %c0_4] : memref<1x256xf32, #tpu.memory_space<vmem>>, vector<1x256xf32>
    %5 = vector.broadcast %4 : vector<1x256xf32> to vector<32x256xf32>
    %6 = arith.addf %3, %5 : vector<32x256xf32>
    %cst = arith.constant 0.000000e+00 : f32
    %7 = vector.broadcast %cst : f32 to vector<32x256xf32>
    %8 = arith.maximumf %6, %7 : vector<32x256xf32>
    %c0_5 = arith.constant 0 : index
    %c0_6 = arith.constant 0 : index
    %9 = vector.load %arg4[%c0_5, %c0_6] : memref<32x256xf32, #tpu.memory_space<vmem>>, vector<32x256xf32>
    tpu.vector_store %arg4[%c0_5, %c0_6], %8 {strides = array<i32>} : memref<32x256xf32, #tpu.memory_space<vmem>>, vector<32x256xf32>,
    return
  }
  func.func @transform_0(%arg0: i32) -> (i32, i32) {
    %c0_i32 = arith.constant 0 : i32
    %c0_i32_0 = arith.constant 0 : i32
    return %arg0, %c0_i32 : i32, i32
  }
  func.func @transform_1(%arg0: i32) -> (i32, i32) {
    %c0_i32 = arith.constant 0 : i32
    %c0_i32_0 = arith.constant 0 : i32
    %c0_i32_1 = arith.constant 0 : i32
    return %c0_i32, %c0_i32_0 : i32, i32
  }
  func.func @transform_2(%arg0: i32) -> (i32, i32) {
    %c0_i32 = arith.constant 0 : i32
    %c0_i32_0 = arith.constant 0 : i32
    %c0_i32_1 = arith.constant 0 : i32
    return %c0_i32, %c0_i32_0 : i32, i32
  }
  func.func @transform_3(%arg0: i32) -> (i32, i32) {
    %c0_i32 = arith.constant 0 : i32
    %c0_i32_0 = arith.constant 0 : i32
    return %arg0, %c0_i32 : i32, i32
  }
}

</mosaic_0001>

<llo_original>
// kernel: tile.18
$region0: #{tile.18}
  #allocation0 [shape = 's32[1]{0}', space=sflag, size = 0x4, scoped, tag = 'scoped memory for tile.18']
  %s0 = inlined_call_operand.vmem [shape: f32[16], index: 0, kind: input, shape index: {}]
  %s1 = inlined_call_operand.vmem [shape: f32[16,16], index: 1, kind: output, shape index: {}]
  // Predicated region
  $region2: #{tile.18} parent=0 // pred_check
    _
  $region3: #{tile.18} parent=0 // pred_check_branch
    %3 = sbr.rel (0) target = $region5
  $region4: #{tile.18} parent=0 // pred_region
    _
  $region5: #{tile.18} parent=0 // pred_fallthru
    _
  %v4 = vld [vmem:[%s0] ss:$0 sm:$0xff]
  %5 = vst [vmem:[%s1] sm:$0xff] %v4
  %s6 = scalar_lea.vmem %s1, 8
  %7 = vst [vmem:[%s6] sm:$0xff] %v4

// kernel: tile.19
$region0: #{tile.19}
  %s0 = inlined_call_operand.vmem [shape: f32[16,16], index: 0, kind: input, shape index: {}]
  %s1 = inlined_call_operand.vmem [shape: f32[1,256], index: 1, kind: output, shape index: {}]
  $region1: #{tile.19} parent=0
    #allocation0 [shape = 'u8[8192]{0}', space=vmem, size = 0x2000, scoped, tag = 'scoped mem for output reshape']
    %s2 = smov 3
    %v3 = vld [vmem:[%s0] ss:$8 sm:%s2]
    %vm4 = vcmask 130048
    %5 = vst.msk [vmem:[#allocation0] ss:$8 sm:$0x3] %vm4, %v3
    %s6 = scalar_lea.vmem %s0, 7
    %s7 = smov 3
    %v8 = vld [vmem:[%s6] ss:$8 sm:%s7]
    %9 = vrot.lane.b32.xlu0 %v8, 112
    %v10 = vpop.permute.xlu0 %9
    %vm11 = vcmask 1048448
    %12 = vst.msk [vmem:[#allocation0] ss:$8 sm:$0x3] %vm11, %v10
    %s13 = scalar_lea.vmem %s0, 6
    %s14 = smov 3
    %v15 = vld [vmem:[%s13] ss:$8 sm:%s14]
    %16 = vrot.lane.b32.xlu0 %v15, 96
    %v17 = vpop.permute.xlu0 %16
    %vm18 = vcmask 917248
    %19 = vst.msk [vmem:[#allocation0] ss:$8 sm:$0x3] %vm18, %v17
    %s20 = scalar_lea.vmem %s0, 5
    %s21 = smov 3
    %v22 = vld [vmem:[%s20] ss:$8 sm:%s21]
    %23 = vrot.lane.b32.xlu0 %v22, 80
    %v24 = vpop.permute.xlu0 %23
    %vm25 = vcmask 786048
    %26 = vst.msk [vmem:[#allocation0] ss:$8 sm:$0x3] %vm25, %v24
    %s27 = scalar_lea.vmem %s0, 4
    %s28 = smov 3
    %v29 = vld [vmem:[%s27] ss:$8 sm:%s28]
    %30 = vrot.lane.b32.xlu0 %v29, 64
    %v31 = vpop.permute.xlu0 %30
    %vm32 = vcmask 654848
    %33 = vst.msk [vmem:[#allocation0] ss:$8 sm:$0x3] %vm32, %v31
    %s34 = scalar_lea.vmem %s0, 3
    %s35 = smov 3
    %v36 = vld [vmem:[%s34] ss:$8 sm:%s35]
    %37 = vrot.lane.b32.xlu0 %v36, 48
    %v38 = vpop.permute.xlu0 %37
    %vm39 = vcmask 523648
    %40 = vst.msk [vmem:[#allocation0] ss:$8 sm:$0x3] %vm39, %v38
    %s41 = scalar_lea.vmem %s0, 2
    %s42 = smov 3
    %v43 = vld [vmem:[%s41] ss:$8 sm:%s42]
    %44 = vrot.lane.b32.xlu0 %v43, 32
    %v45 = vpop.permute.xlu0 %44
    %vm46 = vcmask 392448
    %47 = vst.msk [vmem:[#allocation0] ss:$8 sm:$0x3] %vm46, %v45
    %s48 = scalar_lea.vmem %s0, 1
    %s49 = smov 3
    %v50 = vld [vmem:[%s48] ss:$8 sm:%s49]
    %51 = vrot.lane.b32.xlu0 %v50, 16
    %v52 = vpop.permute.xlu0 %51
    %vm53 = vcmask 261248
    %54 = vst.msk [vmem:[#allocation0] ss:$8 sm:$0x3] %vm53, %v52
    %s56 = sshllo.u32 0, 1
    %v58 = vld [vmem:[#allocation0] sm:%s56]
    %s59 = sshllo.u32 0, 1
    %60 = vst [vmem:[%s1] sm:%s59] %v58
    %s61 = scalar_lea.vmem [#allocation0], 8
    %v62 = vld [vmem:[%s61] sm:%s56]
    %s63 = sshllo.u32 0, 1
    %s64 = scalar_lea.vmem %s1, 1
    %65 = vst [vmem:[%s64] sm:%s63] %v62

// kernel: block_forward.5
$region0: #{block_forward.5}
  #allocation0 [shape = 'u32[]', space=smem, size = 0x4, offset = 0x4, fixed_abs, tag = 'smem constant byte address 0x4 - core index']
  #allocation1 [shape = 'u32[144,128]{1,0:T(1,128)}', space=vmem, size = 0x12000, scoped, tag = 'internal scratch']
  %s0 = inlined_call_operand.vmem [shape: f32[32,256], index: 0, kind: input, shape index: {}]
  %s1 = inlined_call_operand.vmem [shape: f32[1,256], index: 1, kind: input, shape index: {}]
  %s2 = inlined_call_operand.vmem [shape: f32[1,256], index: 2, kind: input, shape index: {}]
  %s3 = inlined_call_operand.vmem [shape: f32[32,256], index: 3, kind: output, shape index: {}]
  %s4 = sld [smem:[#allocation0]]
  $region22: #{block_forward.5} parent=0
    _
  %s6 = ssub.s32 1, %s4
  %s7 = scalar_select 0, %s6, %s4
  // Predicated region
  $region2: #{block_forward.5} parent=0 // pred_check
    _
  $region3: #{block_forward.5} parent=0 // pred_check_branch
    %9 = sbr.rel (0) target = $region5
  $region4: #{block_forward.5} parent=0 // pred_region
    _
  $region5: #{block_forward.5} parent=0 // pred_fallthru
    _
  // Predicated region
  $region6: #{block_forward.5} parent=0 // pred_check
    _
  $region7: #{block_forward.5} parent=0 // pred_check_branch
    %11 = sbr.rel (0) target = $region9
  $region8: #{block_forward.5} parent=0 // pred_region
    _
  $region9: #{block_forward.5} parent=0 // pred_fallthru
    _
  // Predicated region
  $region10: #{block_forward.5} parent=0 // pred_check
    _
  $region11: #{block_forward.5} parent=0 // pred_check_branch
    %13 = sbr.rel (0) target = $region13
  $region12: #{block_forward.5} parent=0 // pred_region
    _
  $region13: #{block_forward.5} parent=0 // pred_fallthru
    _
  %v14 = vld [vmem:[%s0] sm:$0xff]
  %v15 = vld [vmem:[%s0 + $0x8] sm:$0xff]
  %v16 = vld [vmem:[%s0 + $0x10] sm:$0xff]
  %v17 = vld [vmem:[%s0 + $0x18] sm:$0xff]
  %v18 = vld [vmem:[%s0 + $0x20] sm:$0xff]
  %v19 = vld [vmem:[%s0 + $0x28] sm:$0xff]
  %v20 = vld [vmem:[%s0 + $0x30] sm:$0xff]
  %v21 = vld [vmem:[%s0 + $0x38] sm:$0xff]
  %v22 = vld [vmem:[%s1] sm:$0x3]
  %v24 = vlaneseq
  %v25 = vshrl.u32 %v24, 7
  %v26 = vsub.s32 0, %v25
  %v27 = vrot.slane %v22, %v26
  %v28 = vlaneseq
  %v29 = vshrl.u32 %v28, 7
  %v30 = vsub.s32 1, %v29
  %v31 = vrot.slane %v22, %v30
  %v34 = vmul.f32 %v14, %v27
  %v35 = vmul.f32 %v15, %v31
  %v36 = vmul.f32 %v16, %v27
  %v37 = vmul.f32 %v17, %v31
  %v38 = vmul.f32 %v18, %v27
  %v39 = vmul.f32 %v19, %v31
  %v40 = vmul.f32 %v20, %v27
  %v41 = vmul.f32 %v21, %v31
  %v42 = vld [vmem:[%s2] sm:$0x3]
  %v44 = vlaneseq
  %v45 = vshrl.u32 %v44, 7
  %v46 = vsub.s32 0, %v45
  %v47 = vrot.slane %v42, %v46
  %v48 = vlaneseq
  %v49 = vshrl.u32 %v48, 7
  %v50 = vsub.s32 1, %v49
  %v51 = vrot.slane %v42, %v50
  %v54 = vadd.f32 %v34, %v47
  %v55 = vadd.f32 %v35, %v51
  %v56 = vadd.f32 %v36, %v47
  %v57 = vadd.f32 %v37, %v51
  %v58 = vadd.f32 %v38, %v47
  %v59 = vadd.f32 %v39, %v51
  %v60 = vadd.f32 %v40, %v47
  %v61 = vadd.f32 %v41, %v51
  %v62 = vmax.f32 %v54, 0.0
  %v63 = vmax.f32 %v55, 0.0
  %v64 = vmax.f32 %v56, 0.0
  %v65 = vmax.f32 %v57, 0.0
  %v66 = vmax.f32 %v58, 0.0
  %v67 = vmax.f32 %v59, 0.0
  %v68 = vmax.f32 %v60, 0.0
  %v69 = vmax.f32 %v61, 0.0
  %70 = vst [vmem:[%s3] sm:$0xff] %v62
  %71 = vst [vmem:[%s3 + $0x8] sm:$0xff] %v63
  %72 = vst [vmem:[%s3 + $0x10] sm:$0xff] %v64
  %73 = vst [vmem:[%s3 + $0x18] sm:$0xff] %v65
  %74 = vst [vmem:[%s3 + $0x20] sm:$0xff] %v66
  %75 = vst [vmem:[%s3 + $0x28] sm:$0xff] %v67
  %76 = vst [vmem:[%s3 + $0x30] sm:$0xff] %v68
  %77 = vst [vmem:[%s3 + $0x38] sm:$0xff] %v69
  // Predicated region
  $region14: #{block_forward.5} parent=0 // pred_check
    _
  $region15: #{block_forward.5} parent=0 // pred_check_branch
    %79 = sbr.rel (0) target = $region17
  $region16: #{block_forward.5} parent=0 // pred_region
    _
  $region17: #{block_forward.5} parent=0 // pred_fallthru
    _
  // Predicated region
  $region18: #{block_forward.5} parent=0 // pred_check
    _
  $region19: #{block_forward.5} parent=0 // pred_check_branch
    %81 = sbr.rel (0) target = $region21
  $region20: #{block_forward.5} parent=0 // pred_region
    _
  $region21: #{block_forward.5} parent=0 // pred_fallthru
    _

// kernel: block_forward.3
$region0: #{block_forward.3}
  #allocation0 [shape = 'u32[]', space=smem, size = 0x4, offset = 0x4, fixed_abs, tag = 'smem constant byte address 0x4 - core index']
  #allocation1 [shape = 'u32[144,128]{1,0:T(1,128)}', space=vmem, size = 0x12000, scoped, tag = 'internal scratch']
  %s0 = inlined_call_operand.vmem [shape: f32[2,18,18,8], index: 0, kind: input, shape index: {}]
  %s1 = inlined_call_operand.vmem [shape: f32[9,8], index: 1, kind: input, shape index: {}]
  %s2 = inlined_call_operand.vmem [shape: f32[2,2,8], index: 2, kind: output, shape index: {}]
  %s3 = sld [smem:[#allocation0]]
  $region41: #{block_forward.3} parent=0
    _
  %s5 = ssub.s32 1, %s3
  %s6 = scalar_select 0, %s5, %s3
  loop: start=0, step=1, limit=4
  $region2: #{block_forward.3} parent=0 // loop_pre_header
    _
  $region3: #{block_forward.3} parent=0 // loop_header
    %s8 = sphi 0, %s12
    %p9 = scmp.ge.s32.totalorder %s8, 4
    %s18 = sphi 0, %s20
    %s21 = sphi 0, %s18
    %s22 = sphi 0, %s21
    %s38 = sphi 0, %s22
    %s42 = sphi 0, %s42
    %s44 = sphi 0, %s42
    %s45 = sphi 0, %s44
    %s59 = sphi 0, %s45
    %s65 = sphi 0, %s67
    %s68 = sphi 0, %s65
    %s69 = sphi 0, %s68
    %s85 = sphi 0, %s69
  $region4: #{block_forward.3} parent=0 // loop_header_branch
    %11 = sbr.rel (%p9) target = $region8
  $region5: #{block_forward.3} parent=0 // loop_body
    %s13 = ssub.s32 %s8, 1
    %s14 = ssub.s32 %s8, 2
    %s15 = sadd.s32 %s8, 1
    %s16 = ssub.s32 %s8, %s15
    %p17 = scmp.eq.s32.totalorder %s16, 0
    %s19 = sadd.s32 %s18, 1
    %s20 = scalar_select %p17, %s18, %s19
    %p23 = pneg %p17
    %p24 = scmp.eq.s32.totalorder %s8, 1
    %p25 = por %p23, %p24
    %p26 = scmp.ne.s32.totalorder %s18, %s21
    %p27 = scmp.eq.s32.totalorder %s8, 0
    %p28 = por %p26, %p27
    %p29 = scmp.ne.s32.totalorder %s18, %s21
    %p30 = scmp.eq.s32.totalorder %s13, 1
    %p31 = por %p29, %p30
    %p32 = scmp.ne.s32.totalorder %s21, %s22
    %p33 = scmp.eq.s32.totalorder %s13, 0
    %p34 = por %p32, %p33
    %p35 = scmp.ne.s32.totalorder %s21, %s22
    %p36 = scmp.eq.s32.totalorder %s14, 1
    %p37 = por %p35, %p36
    %p39 = scmp.ne.s32.totalorder %s22, %s38
    %p40 = scmp.eq.s32.totalorder %s14, 0
    %p41 = por %p39, %p40
    %s43 = sadd.s32 %s42, 1
    %p46 = scmp.eq.s32.totalorder %s8, 1
    %p47 = scmp.ne.s32.totalorder %s42, %s44
    %p48 = scmp.eq.s32.totalorder %s8, 0
    %p49 = por %p47, %p48
    %p50 = scmp.ne.s32.totalorder %s42, %s44
    %p51 = scmp.eq.s32.totalorder %s13, 1
    %p52 = por %p50, %p51
    %p53 = scmp.ne.s32.totalorder %s44, %s45
    %p54 = scmp.eq.s32.totalorder %s13, 0
    %p55 = por %p53, %p54
    %p56 = scmp.ne.s32.totalorder %s44, %s45
    %p57 = scmp.eq.s32.totalorder %s14, 1
    %p58 = por %p56, %p57
    %p60 = scmp.ne.s32.totalorder %s45, %s59
    %p61 = scmp.eq.s32.totalorder %s14, 0
    %p62 = por %p60, %p61
    %s63 = ssub.s32 %s8, %s15
    %p64 = scmp.eq.s32.totalorder %s63, 0
    %s66 = sadd.s32 %s65, 1
    %s67 = scalar_select %p64, %s65, %s66
    %p70 = pneg %p64
    %p71 = scmp.eq.s32.totalorder %s8, 1
    %p72 = por %p70, %p71
    %p73 = scmp.ne.s32.totalorder %s65, %s68
    %p74 = scmp.eq.s32.totalorder %s8, 0
    %p75 = por %p73, %p74
    %p76 = scmp.ne.s32.totalorder %s65, %s68
    %p77 = scmp.eq.s32.totalorder %s13, 1
    %p78 = por %p76, %p77
    %p79 = scmp.ne.s32.totalorder %s68, %s69
    %p80 = scmp.eq.s32.totalorder %s13, 0
    %p81 = por %p79, %p80
    %p82 = scmp.ne.s32.totalorder %s68, %s69
    %p83 = scmp.eq.s32.totalorder %s14, 1
    %p84 = por %p82, %p83
    %p86 = scmp.ne.s32.totalorder %s69, %s85
    %p87 = scmp.eq.s32.totalorder %s14, 0
    %p88 = por %p86, %p87
    %p89 = scmp.le.s32.totalorder 1, %s8
    %p90 = scmp.lt.s32.totalorder %s8, 3
    %p91 = pnand %p89, %p90
    %p92 = pneg %p91
    // Predicated region
    $region9: #{block_forward.3} parent=5 // pred_check
      _
    $region10: #{block_forward.3} parent=5 // pred_check_branch
      %94 = sbr.rel (%p91) target = $region12
    $region11: #{block_forward.3} parent=5 // pred_region
      %s95 = ssub.s32 %s8, 1
      // Predicated region
      $region13: #{block_forward.3} parent=11 // pred_check
        %p96 = pneg %p55
      $region14: #{block_forward.3} parent=11 // pred_check_branch
        %98 = sbr.rel (%p96) target = $region16
      $region15: #{block_forward.3} parent=11 // pred_region
        _
      $region16: #{block_forward.3} parent=11 // pred_fallthru
        _
    $region12: #{block_forward.3} parent=5 // pred_fallthru
      _
    %p99 = scmp.lt.s32.totalorder %s8, 2
    // Predicated region
    $region17: #{block_forward.3} parent=5 // pred_check
      %p100 = pneg %p99
    $region18: #{block_forward.3} parent=5 // pred_check_branch
      %102 = sbr.rel (%p100) target = $region20
    $region19: #{block_forward.3} parent=5 // pred_region
      // Predicated region
      $region21: #{block_forward.3} parent=19 // pred_check
        %p103 = pneg %p28
      $region22: #{block_forward.3} parent=19 // pred_check_branch
        %105 = sbr.rel (%p103) target = $region24
      $region23: #{block_forward.3} parent=19 // pred_region
        %p106 = scmp.lt.s32.totalorder %s8, 1
        %s107 = scalar_select %p106, %s8, 1
        %s108 = smul.addr %s107, 54
        %s109 = smul.addr %s108, 8
        %s110 = scalar_lea.vmem %s0, %s109
      $region24: #{block_forward.3} parent=19 // pred_fallthru
        _
    $region20: #{block_forward.3} parent=5 // pred_fallthru
      _
    %p111 = scmp.le.s32.totalorder 1, %s8
    %p112 = scmp.lt.s32.totalorder %s8, 3
    %p113 = pnand %p111, %p112
    %p114 = pneg %p113
    // Predicated region
    $region25: #{block_forward.3} parent=5 // pred_check
      _
    $region26: #{block_forward.3} parent=5 // pred_check_branch
      %116 = sbr.rel (%p113) target = $region28
    $region27: #{block_forward.3} parent=5 // pred_region
      %s117 = ssub.s32 %s8, 1
      %p118 = scmp.lt.s32.totalorder %s13, 1
      %s119 = scalar_select %p118, %s13, 1
      %s120 = smul.addr %s119, 54
      %s121 = smul.addr %s120, 8
      %s122 = scalar_lea.vmem %s0, %s121
      %p123 = pneg %p34
      %p124 = pneg %p31
      %p125 = pneg %p55
      %p126 = pneg %p52
      %p127 = pneg %p81
      %p128 = pneg %p78
      %p129 = scmp.lt.s32.totalorder %s13, 1
      %s130 = scalar_select %p129, %s13, 1
      %s131 = smul.addr %s130, 2
      %s132 = scalar_lea.vmem %s2, %s131
      %p133 = scmp.lt.s32.totalorder %s13, 1
      %s134 = scalar_select %p133, %s13, 1
      %s135 = smul.addr %s134, 54
      %s136 = smul.addr %s135, 8
      %s137 = scalar_lea.vmem %s0, %s136
      %p138 = scmp.lt.s32.totalorder %s13, 1
      %s139 = scalar_select %p138, %s13, 1
      %s140 = smul.addr %s139, 2
      %s141 = scalar_lea.vmem %s2, %s140
      %v142 = vld [vmem:[%s1] sm:$0xff]
      %v143 = vld [vmem:[%s1 + $0x8] sm:$0x1]
      %v144 = vld [vmem:[%s137] sm:$0xff]
      %v145 = vld [vmem:[%s137 + $0x8] sm:$0xff]
      %v146 = vld [vmem:[%s137 + $0x18] sm:$0xff]
      %v147 = vld [vmem:[%s137 + $0x20] sm:$0xff]
      %v148 = vld [vmem:[%s137 + $0x30] sm:$0xff]
      %v149 = vld [vmem:[%s137 + $0x38] sm:$0xff]
      %v150 = vld [vmem:[%s137 + $0x48] sm:$0xff]
      %v151 = vld [vmem:[%s137 + $0x50] sm:$0xff]
      %v152 = vld [vmem:[%s137 + $0x60] sm:$0xff]
      %v153 = vld [vmem:[%s137 + $0x68] sm:$0xff]
      %v154 = vld [vmem:[%s137 + $0x78] sm:$0xff]
      %v155 = vld [vmem:[%s137 + $0x80] sm:$0xff]
      %v156 = vld [vmem:[%s137 + $0x90] sm:$0xff]
      %v157 = vld [vmem:[%s137 + $0x98] sm:$0xff]
      %v158 = vld [vmem:[%s137 + $0xa8] sm:$0xff]
      %v159 = vld [vmem:[%s137 + $0xb0] sm:$0xff]
      %v160 = vld [vmem:[%s137 + $0xc0] sm:$0xff]
      %v161 = vld [vmem:[%s137 + $0xc8] sm:$0xff]
      %v162 = vld [vmem:[%s137 + $0xd8] sm:$0xff]
      %v163 = vld [vmem:[%s137 + $0xe0] sm:$0xff]
      %v164 = vld [vmem:[%s137 + $0xf0] sm:$0xff]
      %v165 = vld [vmem:[%s137 + $0xf8] sm:$0xff]
      %v166 = vld [vmem:[%s137 + $0x108] sm:$0xff]
      %v167 = vld [vmem:[%s137 + $0x110] sm:$0xff]
      %v168 = vld [vmem:[%s137 + $0x120] sm:$0xff]
      %v169 = vld [vmem:[%s137 + $0x128] sm:$0xff]
      %v170 = vld [vmem:[%s137 + $0x138] sm:$0xff]
      %v171 = vld [vmem:[%s137 + $0x140] sm:$0xff]
      %v172 = vld [vmem:[%s137 + $0x150] sm:$0xff]
      %v173 = vld [vmem:[%s137 + $0x158] sm:$0xff]
      %v174 = vld [vmem:[%s137 + $0x168] sm:$0xff]
      %v175 = vld [vmem:[%s137 + $0x170] sm:$0xff]
      %v176 = vlaneseq
      %v177 = vshrl.u32 %v176, 7
      %v178 = vsub.s32 0, %v177
      %v179 = vrot.slane %v142, %v178
      %v180 = vmul.f32 %v144, %v179
      %v181 = vmul.f32 %v145, %v179
      %v182 = vmul.f32 %v146, %v179
      %v183 = vmul.f32 %v147, %v179
      %v184 = vmul.f32 %v148, %v179
      %v185 = vmul.f32 %v149, %v179
      %v186 = vmul.f32 %v150, %v179
      %v187 = vmul.f32 %v151, %v179
      %v188 = vmul.f32 %v152, %v179
      %v189 = vmul.f32 %v153, %v179
      %v190 = vmul.f32 %v154, %v179
      %v191 = vmul.f32 %v155, %v179
      %v192 = vmul.f32 %v156, %v179
      %v193 = vmul.f32 %v157, %v179
      %v194 = vmul.f32 %v158, %v179
      %v195 = vmul.f32 %v159, %v179
      %v196 = vmul.f32 %v160, %v179
      %v197 = vmul.f32 %v161, %v179
      %v198 = vmul.f32 %v162, %v179
      %v199 = vmul.f32 %v163, %v179
      %v200 = vmul.f32 %v164, %v179
      %v201 = vmul.f32 %v165, %v179
      %v202 = vmul.f32 %v166, %v179
      %v203 = vmul.f32 %v167, %v179
      %v204 = vmul.f32 %v168, %v179
      %v205 = vmul.f32 %v169, %v179
      %v206 = vmul.f32 %v170, %v179
      %v207 = vmul.f32 %v171, %v179
      %v208 = vmul.f32 %v172, %v179
      %v209 = vmul.f32 %v173, %v179
      %v210 = vmul.f32 %v174, %v179
      %v211 = vmul.f32 %v175, %v179
      %v212 = vld [vmem:[%s137 + $0x1] sm:$0xff]
      %v213 = vld [vmem:[%s137 + $0x9] sm:$0xff]
      %v214 = vld [vmem:[%s137 + $0x19] sm:$0xff]
      %v215 = vld [vmem:[%s137 + $0x21] sm:$0xff]
      %v216 = vld [vmem:[%s137 + $0x31] sm:$0xff]
      %v217 = vld [vmem:[%s137 + $0x39] sm:$0xff]
      %v218 = vld [vmem:[%s137 + $0x49] sm:$0xff]
      %v219 = vld [vmem:[%s137 + $0x51] sm:$0xff]
      %v220 = vld [vmem:[%s137 + $0x61] sm:$0xff]
      %v221 = vld [vmem:[%s137 + $0x69] sm:$0xff]
      %v222 = vld [vmem:[%s137 + $0x79] sm:$0xff]
      %v223 = vld [vmem:[%s137 + $0x81] sm:$0xff]
      %v224 = vld [vmem:[%s137 + $0x91] sm:$0xff]
      %v225 = vld [vmem:[%s137 + $0x99] sm:$0xff]
      %v226 = vld [vmem:[%s137 + $0xa9] sm:$0xff]
      %v227 = vld [vmem:[%s137 + $0xb1] sm:$0xff]
      %v228 = vld [vmem:[%s137 + $0xc1] sm:$0xff]
      %v229 = vld [vmem:[%s137 + $0xc9] sm:$0xff]
      %v230 = vld [vmem:[%s137 + $0xd9] sm:$0xff]
      %v231 = vld [vmem:[%s137 + $0xe1] sm:$0xff]
      %v232 = vld [vmem:[%s137 + $0xf1] sm:$0xff]
      %v233 = vld [vmem:[%s137 + $0xf9] sm:$0xff]
      %v234 = vld [vmem:[%s137 + $0x109] sm:$0xff]
      %v235 = vld [vmem:[%s137 + $0x111] sm:$0xff]
      %v236 = vld [vmem:[%s137 + $0x121] sm:$0xff]
      %v237 = vld [vmem:[%s137 + $0x129] sm:$0xff]
      %v238 = vld [vmem:[%s137 + $0x139] sm:$0xff]
      %v239 = vld [vmem:[%s137 + $0x141] sm:$0xff]
      %v240 = vld [vmem:[%s137 + $0x151] sm:$0xff]
      %v241 = vld [vmem:[%s137 + $0x159] sm:$0xff]
      %v242 = vld [vmem:[%s137 + $0x169] sm:$0xff]
      %v243 = vld [vmem:[%s137 + $0x171] sm:$0xff]
      %v244 = vlaneseq
      %v245 = vshrl.u32 %v244, 7
      %v246 = vsub.s32 1, %v245
      %v247 = vrot.slane %v142, %v246
      %v248 = vmul.f32 %v212, %v247
      %v249 = vmul.f32 %v213, %v247
      %v250 = vmul.f32 %v214, %v247
      %v251 = vmul.f32 %v215, %v247
      %v252 = vmul.f32 %v216, %v247
      %v253 = vmul.f32 %v217, %v247
      %v254 = vmul.f32 %v218, %v247
      %v255 = vmul.f32 %v219, %v247
      %v256 = vmul.f32 %v220, %v247
      %v257 = vmul.f32 %v221, %v247
      %v258 = vmul.f32 %v222, %v247
      %v259 = vmul.f32 %v223, %v247
      %v260 = vmul.f32 %v224, %v247
      %v261 = vmul.f32 %v225, %v247
      %v262 = vmul.f32 %v226, %v247
      %v263 = vmul.f32 %v227, %v247
      %v264 = vmul.f32 %v228, %v247
      %v265 = vmul.f32 %v229, %v247
      %v266 = vmul.f32 %v230, %v247
      %v267 = vmul.f32 %v231, %v247
      %v268 = vmul.f32 %v232, %v247
      %v269 = vmul.f32 %v233, %v247
      %v270 = vmul.f32 %v234, %v247
      %v271 = vmul.f32 %v235, %v247
      %v272 = vmul.f32 %v236, %v247
      %v273 = vmul.f32 %v237, %v247
      %v274 = vmul.f32 %v238, %v247
      %v275 = vmul.f32 %v239, %v247
      %v276 = vmul.f32 %v240, %v247
      %v277 = vmul.f32 %v241, %v247
      %v278 = vmul.f32 %v242, %v247
      %v279 = vmul.f32 %v243, %v247
      %v280 = vadd.f32 %v180, %v248
      %v281 = vadd.f32 %v181, %v249
      %v282 = vadd.f32 %v182, %v250
      %v283 = vadd.f32 %v183, %v251
      %v284 = vadd.f32 %v184, %v252
      %v285 = vadd.f32 %v185, %v253
      %v286 = vadd.f32 %v186, %v254
      %v287 = vadd.f32 %v187, %v255
      %v288 = vadd.f32 %v188, %v256
      %v289 = vadd.f32 %v189, %v257
      %v290 = vadd.f32 %v190, %v258
      %v291 = vadd.f32 %v191, %v259
      %v292 = vadd.f32 %v192, %v260
      %v293 = vadd.f32 %v193, %v261
      %v294 = vadd.f32 %v194, %v262
      %v295 = vadd.f32 %v195, %v263
      %v296 = vadd.f32 %v196, %v264
      %v297 = vadd.f32 %v197, %v265
      %v298 = vadd.f32 %v198, %v266
      %v299 = vadd.f32 %v199, %v267
      %v300 = vadd.f32 %v200, %v268
      %v301 = vadd.f32 %v201, %v269
      %v302 = vadd.f32 %v202, %v270
      %v303 = vadd.f32 %v203, %v271
      %v304 = vadd.f32 %v204, %v272
      %v305 = vadd.f32 %v205, %v273
      %v306 = vadd.f32 %v206, %v274
      %v307 = vadd.f32 %v207, %v275
      %v308 = vadd.f32 %v208, %v276
      %v309 = vadd.f32 %v209, %v277
      %v310 = vadd.f32 %v210, %v278
      %v311 = vadd.f32 %v211, %v279
      %v312 = vld [vmem:[%s137 + $0x2] sm:$0xff]
      %v313 = vld [vmem:[%s137 + $0xa] sm:$0xff]
      %v314 = vld [vmem:[%s137 + $0x1a] sm:$0xff]
      %v315 = vld [vmem:[%s137 + $0x22] sm:$0xff]
      %v316 = vld [vmem:[%s137 + $0x32] sm:$0xff]
      %v317 = vld [vmem:[%s137 + $0x3a] sm:$0xff]
      %v318 = vld [vmem:[%s137 + $0x4a] sm:$0xff]
      %v319 = vld [vmem:[%s137 + $0x52] sm:$0xff]
      %v320 = vld [vmem:[%s137 + $0x62] sm:$0xff]
      %v321 = vld [vmem:[%s137 + $0x6a] sm:$0xff]
      %v322 = vld [vmem:[%s137 + $0x7a] sm:$0xff]
      %v323 = vld [vmem:[%s137 + $0x82] sm:$0xff]
      %v324 = vld [vmem:[%s137 + $0x92] sm:$0xff]
      %v325 = vld [vmem:[%s137 + $0x9a] sm:$0xff]
      %v326 = vld [vmem:[%s137 + $0xaa] sm:$0xff]
      %v327 = vld [vmem:[%s137 + $0xb2] sm:$0xff]
      %v328 = vld [vmem:[%s137 + $0xc2] sm:$0xff]
      %v329 = vld [vmem:[%s137 + $0xca] sm:$0xff]
      %v330 = vld [vmem:[%s137 + $0xda] sm:$0xff]
      %v331 = vld [vmem:[%s137 + $0xe2] sm:$0xff]
      %v332 = vld [vmem:[%s137 + $0xf2] sm:$0xff]
      %v333 = vld [vmem:[%s137 + $0xfa] sm:$0xff]
      %v334 = vld [vmem:[%s137 + $0x10a] sm:$0xff]
      %v335 = vld [vmem:[%s137 + $0x112] sm:$0xff]
      %v336 = vld [vmem:[%s137 + $0x122] sm:$0xff]
      %v337 = vld [vmem:[%s137 + $0x12a] sm:$0xff]
      %v338 = vld [vmem:[%s137 + $0x13a] sm:$0xff]
      %v339 = vld [vmem:[%s137 + $0x142] sm:$0xff]
      %v340 = vld [vmem:[%s137 + $0x152] sm:$0xff]
      %v341 = vld [vmem:[%s137 + $0x15a] sm:$0xff]
      %v342 = vld [vmem:[%s137 + $0x16a] sm:$0xff]
      %v343 = vld [vmem:[%s137 + $0x172] sm:$0xff]
      %v344 = vlaneseq
      %v345 = vshrl.u32 %v344, 7
      %v346 = vsub.s32 2, %v345
      %v347 = vrot.slane %v142, %v346
      %v348 = vmul.f32 %v312, %v347
      %v349 = vmul.f32 %v313, %v347
      %v350 = vmul.f32 %v314, %v347
      %v351 = vmul.f32 %v315, %v347
      %v352 = vmul.f32 %v316, %v347
      %v353 = vmul.f32 %v317, %v347
      %v354 = vmul.f32 %v318, %v347
      %v355 = vmul.f32 %v319, %v347
      %v356 = vmul.f32 %v320, %v347
      %v357 = vmul.f32 %v321, %v347
      %v358 = vmul.f32 %v322, %v347
      %v359 = vmul.f32 %v323, %v347
      %v360 = vmul.f32 %v324, %v347
      %v361 = vmul.f32 %v325, %v347
      %v362 = vmul.f32 %v326, %v347
      %v363 = vmul.f32 %v327, %v347
      %v364 = vmul.f32 %v328, %v347
      %v365 = vmul.f32 %v329, %v347
      %v366 = vmul.f32 %v330, %v347
      %v367 = vmul.f32 %v331, %v347
      %v368 = vmul.f32 %v332, %v347
      %v369 = vmul.f32 %v333, %v347
      %v370 = vmul.f32 %v334, %v347
      %v371 = vmul.f32 %v335, %v347
      %v372 = vmul.f32 %v336, %v347
      %v373 = vmul.f32 %v337, %v347
      %v374 = vmul.f32 %v338, %v347
      %v375 = vmul.f32 %v339, %v347
      %v376 = vmul.f32 %v340, %v347
      %v377 = vmul.f32 %v341, %v347
      %v378 = vmul.f32 %v342, %v347
      %v379 = vmul.f32 %v343, %v347
      %v380 = vadd.f32 %v280, %v348
      %v381 = vadd.f32 %v281, %v349
      %v382 = vadd.f32 %v282, %v350
      %v383 = vadd.f32 %v283, %v351
      %v384 = vadd.f32 %v284, %v352
      %v385 = vadd.f32 %v285, %v353
      %v386 = vadd.f32 %v286, %v354
      %v387 = vadd.f32 %v287, %v355
      %v388 = vadd.f32 %v288, %v356
      %v389 = vadd.f32 %v289, %v357
      %v390 = vadd.f32 %v290, %v358
      %v391 = vadd.f32 %v291, %v359
      %v392 = vadd.f32 %v292, %v360
      %v393 = vadd.f32 %v293, %v361
      %v394 = vadd.f32 %v294, %v362
      %v395 = vadd.f32 %v295, %v363
      %v396 = vadd.f32 %v296, %v364
      %v397 = vadd.f32 %v297, %v365
      %v398 = vadd.f32 %v298, %v366
      %v399 = vadd.f32 %v299, %v367
      %v400 = vadd.f32 %v300, %v368
      %v401 = vadd.f32 %v301, %v369
      %v402 = vadd.f32 %v302, %v370
      %v403 = vadd.f32 %v303, %v371
      %v404 = vadd.f32 %v304, %v372
      %v405 = vadd.f32 %v305, %v373
      %v406 = vadd.f32 %v306, %v374
      %v407 = vadd.f32 %v307, %v375
      %v408 = vadd.f32 %v308, %v376
      %v409 = vadd.f32 %v309, %v377
      %v410 = vadd.f32 %v310, %v378
      %v411 = vadd.f32 %v311, %v379
      %s412 = scalar_lea.vmem %s137, 24
      %v413 = vld [vmem:[%s412] sm:$0xff]
      %v414 = vld [vmem:[%s412 + $0x8] sm:$0xff]
      %v415 = vld [vmem:[%s412 + $0x18] sm:$0xff]
      %v416 = vld [vmem:[%s412 + $0x20] sm:$0xff]
      %v417 = vld [vmem:[%s412 + $0x30] sm:$0xff]
      %v418 = vld [vmem:[%s412 + $0x38] sm:$0xff]
      %v419 = vld [vmem:[%s412 + $0x48] sm:$0xff]
      %v420 = vld [vmem:[%s412 + $0x50] sm:$0xff]
      %v421 = vld [vmem:[%s412 + $0x60] sm:$0xff]
      %v422 = vld [vmem:[%s412 + $0x68] sm:$0xff]
      %v423 = vld [vmem:[%s412 + $0x78] sm:$0xff]
      %v424 = vld [vmem:[%s412 + $0x80] sm:$0xff]
      %v425 = vld [vmem:[%s412 + $0x90] sm:$0xff]
      %v426 = vld [vmem:[%s412 + $0x98] sm:$0xff]
      %v427 = vld [vmem:[%s412 + $0xa8] sm:$0xff]
      %v428 = vld [vmem:[%s412 + $0xb0] sm:$0xff]
      %v429 = vld [vmem:[%s412 + $0xc0] sm:$0xff]
      %v430 = vld [vmem:[%s412 + $0xc8] sm:$0xff]
      %v431 = vld [vmem:[%s412 + $0xd8] sm:$0xff]
      %v432 = vld [vmem:[%s412 + $0xe0] sm:$0xff]
      %v433 = vld [vmem:[%s412 + $0xf0] sm:$0xff]
      %v434 = vld [vmem:[%s412 + $0xf8] sm:$0xff]
      %v435 = vld [vmem:[%s412 + $0x108] sm:$0xff]
      %v436 = vld [vmem:[%s412 + $0x110] sm:$0xff]
      %v437 = vld [vmem:[%s412 + $0x120] sm:$0xff]
      %v438 = vld [vmem:[%s412 + $0x128] sm:$0xff]
      %v439 = vld [vmem:[%s412 + $0x138] sm:$0xff]
      %v440 = vld [vmem:[%s412 + $0x140] sm:$0xff]
      %v441 = vld [vmem:[%s412 + $0x150] sm:$0xff]
      %v442 = vld [vmem:[%s412 + $0x158] sm:$0xff]
      %v443 = vld [vmem:[%s412 + $0x168] sm:$0xff]
      %v444 = vld [vmem:[%s412 + $0x170] sm:$0xff]
      %v445 = vlaneseq
      %v446 = vshrl.u32 %v445, 7
      %v447 = vsub.s32 3, %v446
      %v448 = vrot.slane %v142, %v447
      %v449 = vmul.f32 %v413, %v448
      %v450 = vmul.f32 %v414, %v448
      %v451 = vmul.f32 %v415, %v448
      %v452 = vmul.f32 %v416, %v448
      %v453 = vmul.f32 %v417, %v448
      %v454 = vmul.f32 %v418, %v448
      %v455 = vmul.f32 %v419, %v448
      %v456 = vmul.f32 %v420, %v448
      %v457 = vmul.f32 %v421, %v448
      %v458 = vmul.f32 %v422, %v448
      %v459 = vmul.f32 %v423, %v448
      %v460 = vmul.f32 %v424, %v448
      %v461 = vmul.f32 %v425, %v448
      %v462 = vmul.f32 %v426, %v448
      %v463 = vmul.f32 %v427, %v448
      %v464 = vmul.f32 %v428, %v448
      %v465 = vmul.f32 %v429, %v448
      %v466 = vmul.f32 %v430, %v448
      %v467 = vmul.f32 %v431, %v448
      %v468 = vmul.f32 %v432, %v448
      %v469 = vmul.f32 %v433, %v448
      %v470 = vmul.f32 %v434, %v448
      %v471 = vmul.f32 %v435, %v448
      %v472 = vmul.f32 %v436, %v448
      %v473 = vmul.f32 %v437, %v448
      %v474 = vmul.f32 %v438, %v448
      %v475 = vmul.f32 %v439, %v448
      %v476 = vmul.f32 %v440, %v448
      %v477 = vmul.f32 %v441, %v448
      %v478 = vmul.f32 %v442, %v448
      %v479 = vmul.f32 %v443, %v448
      %v480 = vmul.f32 %v444, %v448
      %v481 = vadd.f32 %v380, %v449
      %v482 = vadd.f32 %v381, %v450
      %v483 = vadd.f32 %v382, %v451
      %v484 = vadd.f32 %v383, %v452
      %v485 = vadd.f32 %v384, %v453
      %v486 = vadd.f32 %v385, %v454
      %v487 = vadd.f32 %v386, %v455
      %v488 = vadd.f32 %v387, %v456
      %v489 = vadd.f32 %v388, %v457
      %v490 = vadd.f32 %v389, %v458
      %v491 = vadd.f32 %v390, %v459
      %v492 = vadd.f32 %v391, %v460
      %v493 = vadd.f32 %v392, %v461
      %v494 = vadd.f32 %v393, %v462
      %v495 = vadd.f32 %v394, %v463
      %v496 = vadd.f32 %v395, %v464
      %v497 = vadd.f32 %v396, %v465
      %v498 = vadd.f32 %v397, %v466
      %v499 = vadd.f32 %v398, %v467
      %v500 = vadd.f32 %v399, %v468
      %v501 = vadd.f32 %v400, %v469
      %v502 = vadd.f32 %v401, %v470
      %v503 = vadd.f32 %v402, %v471
      %v504 = vadd.f32 %v403, %v472
      %v505 = vadd.f32 %v404, %v473
      %v506 = vadd.f32 %v405, %v474
      %v507 = vadd.f32 %v406, %v475
      %v508 = vadd.f32 %v407, %v476
      %v509 = vadd.f32 %v408, %v477
      %v510 = vadd.f32 %v409, %v478
      %v511 = vadd.f32 %v410, %v479
      %v512 = vadd.f32 %v411, %v480
      %v513 = vld [vmem:[%s412 + $0x1] sm:$0xff]
      %v514 = vld [vmem:[%s412 + $0x9] sm:$0xff]
      %v515 = vld [vmem:[%s412 + $0x19] sm:$0xff]
      %v516 = vld [vmem:[%s412 + $0x21] sm:$0xff]
      %v517 = vld [vmem:[%s412 + $0x31] sm:$0xff]
      %v518 = vld [vmem:[%s412 + $0x39] sm:$0xff]
      %v519 = vld [vmem:[%s412 + $0x49] sm:$0xff]
      %v520 = vld [vmem:[%s412 + $0x51] sm:$0xff]
      %v521 = vld [vmem:[%s412 + $0x61] sm:$0xff]
      %v522 = vld [vmem:[%s412 + $0x69] sm:$0xff]
      %v523 = vld [vmem:[%s412 + $0x79] sm:$0xff]
      %v524 = vld [vmem:[%s412 + $0x81] sm:$0xff]
      %v525 = vld [vmem:[%s412 + $0x91] sm:$0xff]
      %v526 = vld [vmem:[%s412 + $0x99] sm:$0xff]
      %v527 = vld [vmem:[%s412 + $0xa9] sm:$0xff]
      %v528 = vld [vmem:[%s412 + $0xb1] sm:$0xff]
      %v529 = vld [vmem:[%s412 + $0xc1] sm:$0xff]
      %v530 = vld [vmem:[%s412 + $0xc9] sm:$0xff]
      %v531 = vld [vmem:[%s412 + $0xd9] sm:$0xff]
      %v532 = vld [vmem:[%s412 + $0xe1] sm:$0xff]
      %v533 = vld [vmem:[%s412 + $0xf1] sm:$0xff]
      %v534 = vld [vmem:[%s412 + $0xf9] sm:$0xff]
      %v535 = vld [vmem:[%s412 + $0x109] sm:$0xff]
      %v536 = vld [vmem:[%s412 + $0x111] sm:$0xff]
      %v537 = vld [vmem:[%s412 + $0x121] sm:$0xff]
      %v538 = vld [vmem:[%s412 + $0x129] sm:$0xff]
      %v539 = vld [vmem:[%s412 + $0x139] sm:$0xff]
      %v540 = vld [vmem:[%s412 + $0x141] sm:$0xff]
      %v541 = vld [vmem:[%s412 + $0x151] sm:$0xff]
      %v542 = vld [vmem:[%s412 + $0x159] sm:$0xff]
      %v543 = vld [vmem:[%s412 + $0x169] sm:$0xff]
      %v544 = vld [vmem:[%s412 + $0x171] sm:$0xff]
      %v545 = vlaneseq
      %v546 = vshrl.u32 %v545, 7
      %v547 = vsub.s32 4, %v546
      %v548 = vrot.slane %v142, %v547
      %v549 = vmul.f32 %v513, %v548
      %v550 = vmul.f32 %v514, %v548
      %v551 = vmul.f32 %v515, %v548
      %v552 = vmul.f32 %v516, %v548
      %v553 = vmul.f32 %v517, %v548
      %v554 = vmul.f32 %v518, %v548
      %v555 = vmul.f32 %v519, %v548
      %v556 = vmul.f32 %v520, %v548
      %v557 = vmul.f32 %v521, %v548
      %v558 = vmul.f32 %v522, %v548
      %v559 = vmul.f32 %v523, %v548
      %v560 = vmul.f32 %v524, %v548
      %v561 = vmul.f32 %v525, %v548
      %v562 = vmul.f32 %v526, %v548
      %v563 = vmul.f32 %v527, %v548
      %v564 = vmul.f32 %v528, %v548
      %v565 = vmul.f32 %v529, %v548
      %v566 = vmul.f32 %v530, %v548
      %v567 = vmul.f32 %v531, %v548
      %v568 = vmul.f32 %v532, %v548
      %v569 = vmul.f32 %v533, %v548
      %v570 = vmul.f32 %v534, %v548
      %v571 = vmul.f32 %v535, %v548
      %v572 = vmul.f32 %v536, %v548
      %v573 = vmul.f32 %v537, %v548
      %v574 = vmul.f32 %v538, %v548
      %v575 = vmul.f32 %v539, %v548
      %v576 = vmul.f32 %v540, %v548
      %v577 = vmul.f32 %v541, %v548
      %v578 = vmul.f32 %v542, %v548
      %v579 = vmul.f32 %v543, %v548
      %v580 = vmul.f32 %v544, %v548
      %v581 = vadd.f32 %v481, %v549
      %v582 = vadd.f32 %v482, %v550
      %v583 = vadd.f32 %v483, %v551
      %v584 = vadd.f32 %v484, %v552
      %v585 = vadd.f32 %v485, %v553
      %v586 = vadd.f32 %v486, %v554
      %v587 = vadd.f32 %v487, %v555
      %v588 = vadd.f32 %v488, %v556
      %v589 = vadd.f32 %v489, %v557
      %v590 = vadd.f32 %v490, %v558
      %v591 = vadd.f32 %v491, %v559
      %v592 = vadd.f32 %v492, %v560
      %v593 = vadd.f32 %v493, %v561
      %v594 = vadd.f32 %v494, %v562
      %v595 = vadd.f32 %v495, %v563
      %v596 = vadd.f32 %v496, %v564
      %v597 = vadd.f32 %v497, %v565
      %v598 = vadd.f32 %v498, %v566
      %v599 = vadd.f32 %v499, %v567
      %v600 = vadd.f32 %v500, %v568
      %v601 = vadd.f32 %v501, %v569
      %v602 = vadd.f32 %v502, %v570
      %v603 = vadd.f32 %v503, %v571
      %v604 = vadd.f32 %v504, %v572
      %v605 = vadd.f32 %v505, %v573
      %v606 = vadd.f32 %v506, %v574
      %v607 = vadd.f32 %v507, %v575
      %v608 = vadd.f32 %v508, %v576
      %v609 = vadd.f32 %v509, %v577
      %v610 = vadd.f32 %v510, %v578
      %v611 = vadd.f32 %v511, %v579
      %v612 = vadd.f32 %v512, %v580
      %v613 = vld [vmem:[%s412 + $0x2] sm:$0xff]
      %v614 = vld [vmem:[%s412 + $0xa] sm:$0xff]
      %v615 = vld [vmem:[%s412 + $0x1a] sm:$0xff]
      %v616 = vld [vmem:[%s412 + $0x22] sm:$0xff]
      %v617 = vld [vmem:[%s412 + $0x32] sm:$0xff]
      %v618 = vld [vmem:[%s412 + $0x3a] sm:$0xff]
      %v619 = vld [vmem:[%s412 + $0x4a] sm:$0xff]
      %v620 = vld [vmem:[%s412 + $0x52] sm:$0xff]
      %v621 = vld [vmem:[%s412 + $0x62] sm:$0xff]
      %v622 = vld [vmem:[%s412 + $0x6a] sm:$0xff]
      %v623 = vld [vmem:[%s412 + $0x7a] sm:$0xff]
      %v624 = vld [vmem:[%s412 + $0x82] sm:$0xff]
      %v625 = vld [vmem:[%s412 + $0x92] sm:$0xff]
      %v626 = vld [vmem:[%s412 + $0x9a] sm:$0xff]
      %v627 = vld [vmem:[%s412 + $0xaa] sm:$0xff]
      %v628 = vld [vmem:[%s412 + $0xb2] sm:$0xff]
      %v629 = vld [vmem:[%s412 + $0xc2] sm:$0xff]
      %v630 = vld [vmem:[%s412 + $0xca] sm:$0xff]
      %v631 = vld [vmem:[%s412 + $0xda] sm:$0xff]
      %v632 = vld [vmem:[%s412 + $0xe2] sm:$0xff]
      %v633 = vld [vmem:[%s412 + $0xf2] sm:$0xff]
      %v634 = vld [vmem:[%s412 + $0xfa] sm:$0xff]
      %v635 = vld [vmem:[%s412 + $0x10a] sm:$0xff]
      %v636 = vld [vmem:[%s412 + $0x112] sm:$0xff]
      %v637 = vld [vmem:[%s412 + $0x122] sm:$0xff]
      %v638 = vld [vmem:[%s412 + $0x12a] sm:$0xff]
      %v639 = vld [vmem:[%s412 + $0x13a] sm:$0xff]
      %v640 = vld [vmem:[%s412 + $0x142] sm:$0xff]
      %v641 = vld [vmem:[%s412 + $0x152] sm:$0xff]
      %v642 = vld [vmem:[%s412 + $0x15a] sm:$0xff]
      %v643 = vld [vmem:[%s412 + $0x16a] sm:$0xff]
      %v644 = vld [vmem:[%s412 + $0x172] sm:$0xff]
      %v645 = vlaneseq
      %v646 = vshrl.u32 %v645, 7
      %v647 = vsub.s32 5, %v646
      %v648 = vrot.slane %v142, %v647
      %v649 = vmul.f32 %v613, %v648
      %v650 = vmul.f32 %v614, %v648
      %v651 = vmul.f32 %v615, %v648
      %v652 = vmul.f32 %v616, %v648
      %v653 = vmul.f32 %v617, %v648
      %v654 = vmul.f32 %v618, %v648
      %v655 = vmul.f32 %v619, %v648
      %v656 = vmul.f32 %v620, %v648
      %v657 = vmul.f32 %v621, %v648
      %v658 = vmul.f32 %v622, %v648
      %v659 = vmul.f32 %v623, %v648
      %v660 = vmul.f32 %v624, %v648
      %v661 = vmul.f32 %v625, %v648
      %v662 = vmul.f32 %v626, %v648
      %v663 = vmul.f32 %v627, %v648
      %v664 = vmul.f32 %v628, %v648
      %v665 = vmul.f32 %v629, %v648
      %v666 = vmul.f32 %v630, %v648
      %v667 = vmul.f32 %v631, %v648
      %v668 = vmul.f32 %v632, %v648
      %v669 = vmul.f32 %v633, %v648
      %v670 = vmul.f32 %v634, %v648
      %v671 = vmul.f32 %v635, %v648
      %v672 = vmul.f32 %v636, %v648
      %v673 = vmul.f32 %v637, %v648
      %v674 = vmul.f32 %v638, %v648
      %v675 = vmul.f32 %v639, %v648
      %v676 = vmul.f32 %v640, %v648
      %v677 = vmul.f32 %v641, %v648
      %v678 = vmul.f32 %v642, %v648
      %v679 = vmul.f32 %v643, %v648
      %v680 = vmul.f32 %v644, %v648
      %v681 = vadd.f32 %v581, %v649
      %v682 = vadd.f32 %v582, %v650
      %v683 = vadd.f32 %v583, %v651
      %v684 = vadd.f32 %v584, %v652
      %v685 = vadd.f32 %v585, %v653
      %v686 = vadd.f32 %v586, %v654
      %v687 = vadd.f32 %v587, %v655
      %v688 = vadd.f32 %v588, %v656
      %v689 = vadd.f32 %v589, %v657
      %v690 = vadd.f32 %v590, %v658
      %v691 = vadd.f32 %v591, %v659
      %v692 = vadd.f32 %v592, %v660
      %v693 = vadd.f32 %v593, %v661
      %v694 = vadd.f32 %v594, %v662
      %v695 = vadd.f32 %v595, %v663
      %v696 = vadd.f32 %v596, %v664
      %v697 = vadd.f32 %v597, %v665
      %v698 = vadd.f32 %v598, %v666
      %v699 = vadd.f32 %v599, %v667
      %v700 = vadd.f32 %v600, %v668
      %v701 = vadd.f32 %v601, %v669
      %v702 = vadd.f32 %v602, %v670
      %v703 = vadd.f32 %v603, %v671
      %v704 = vadd.f32 %v604, %v672
      %v705 = vadd.f32 %v605, %v673
      %v706 = vadd.f32 %v606, %v674
      %v707 = vadd.f32 %v607, %v675
      %v708 = vadd.f32 %v608, %v676
      %v709 = vadd.f32 %v609, %v677
      %v710 = vadd.f32 %v610, %v678
      %v711 = vadd.f32 %v611, %v679
      %v712 = vadd.f32 %v612, %v680
      %s713 = scalar_lea.vmem %s137, 48
      %v714 = vld [vmem:[%s713] sm:$0xff]
      %v715 = vld [vmem:[%s713 + $0x8] sm:$0xff]
      %v716 = vld [vmem:[%s713 + $0x18] sm:$0xff]
      %v717 = vld [vmem:[%s713 + $0x20] sm:$0xff]
      %v718 = vld [vmem:[%s713 + $0x30] sm:$0xff]
      %v719 = vld [vmem:[%s713 + $0x38] sm:$0xff]
      %v720 = vld [vmem:[%s713 + $0x48] sm:$0xff]
      %v721 = vld [vmem:[%s713 + $0x50] sm:$0xff]
      %v722 = vld [vmem:[%s713 + $0x60] sm:$0xff]
      %v723 = vld [vmem:[%s713 + $0x68] sm:$0xff]
      %v724 = vld [vmem:[%s713 + $0x78] sm:$0xff]
      %v725 = vld [vmem:[%s713 + $0x80] sm:$0xff]
      %v726 = vld [vmem:[%s713 + $0x90] sm:$0xff]
      %v727 = vld [vmem:[%s713 + $0x98] sm:$0xff]
      %v728 = vld [vmem:[%s713 + $0xa8] sm:$0xff]
      %v729 = vld [vmem:[%s713 + $0xb0] sm:$0xff]
      %v730 = vld [vmem:[%s713 + $0xc0] sm:$0xff]
      %v731 = vld [vmem:[%s713 + $0xc8] sm:$0xff]
      %v732 = vld [vmem:[%s713 + $0xd8] sm:$0xff]
      %v733 = vld [vmem:[%s713 + $0xe0] sm:$0xff]
      %v734 = vld [vmem:[%s713 + $0xf0] sm:$0xff]
      %v735 = vld [vmem:[%s713 + $0xf8] sm:$0xff]
      %v736 = vld [vmem:[%s713 + $0x108] sm:$0xff]
      %v737 = vld [vmem:[%s713 + $0x110] sm:$0xff]
      %v738 = vld [vmem:[%s713 + $0x120] sm:$0xff]
      %v739 = vld [vmem:[%s713 + $0x128] sm:$0xff]
      %v740 = vld [vmem:[%s713 + $0x138] sm:$0xff]
      %v741 = vld [vmem:[%s713 + $0x140] sm:$0xff]
      %v742 = vld [vmem:[%s713 + $0x150] sm:$0xff]
      %v743 = vld [vmem:[%s713 + $0x158] sm:$0xff]
      %v744 = vld [vmem:[%s713 + $0x168] sm:$0xff]
      %v745 = vld [vmem:[%s713 + $0x170] sm:$0xff]
      %v746 = vlaneseq
      %v747 = vshrl.u32 %v746, 7
      %v748 = vsub.s32 6, %v747
      %v749 = vrot.slane %v142, %v748
      %v750 = vmul.f32 %v714, %v749
      %v751 = vmul.f32 %v715, %v749
      %v752 = vmul.f32 %v716, %v749
      %v753 = vmul.f32 %v717, %v749
      %v754 = vmul.f32 %v718, %v749
      %v755 = vmul.f32 %v719, %v749
      %v756 = vmul.f32 %v720, %v749
      %v757 = vmul.f32 %v721, %v749
      %v758 = vmul.f32 %v722, %v749
      %v759 = vmul.f32 %v723, %v749
      %v760 = vmul.f32 %v724, %v749
      %v761 = vmul.f32 %v725, %v749
      %v762 = vmul.f32 %v726, %v749
      %v763 = vmul.f32 %v727, %v749
      %v764 = vmul.f32 %v728, %v749
      %v765 = vmul.f32 %v729, %v749
      %v766 = vmul.f32 %v730, %v749
      %v767 = vmul.f32 %v731, %v749
      %v768 = vmul.f32 %v732, %v749
      %v769 = vmul.f32 %v733, %v749
      %v770 = vmul.f32 %v734, %v749
      %v771 = vmul.f32 %v735, %v749
      %v772 = vmul.f32 %v736, %v749
      %v773 = vmul.f32 %v737, %v749
      %v774 = vmul.f32 %v738, %v749
      %v775 = vmul.f32 %v739, %v749
      %v776 = vmul.f32 %v740, %v749
      %v777 = vmul.f32 %v741, %v749
      %v778 = vmul.f32 %v742, %v749
      %v779 = vmul.f32 %v743, %v749
      %v780 = vmul.f32 %v744, %v749
      %v781 = vmul.f32 %v745, %v749
      %v782 = vadd.f32 %v681, %v750
      %v783 = vadd.f32 %v682, %v751
      %v784 = vadd.f32 %v683, %v752
      %v785 = vadd.f32 %v684, %v753
      %v786 = vadd.f32 %v685, %v754
      %v787 = vadd.f32 %v686, %v755
      %v788 = vadd.f32 %v687, %v756
      %v789 = vadd.f32 %v688, %v757
      %v790 = vadd.f32 %v689, %v758
      %v791 = vadd.f32 %v690, %v759
      %v792 = vadd.f32 %v691, %v760
      %v793 = vadd.f32 %v692, %v761
      %v794 = vadd.f32 %v693, %v762
      %v795 = vadd.f32 %v694, %v763
      %v796 = vadd.f32 %v695, %v764
      %v797 = vadd.f32 %v696, %v765
      %v798 = vadd.f32 %v697, %v766
      %v799 = vadd.f32 %v698, %v767
      %v800 = vadd.f32 %v699, %v768
      %v801 = vadd.f32 %v700, %v769
      %v802 = vadd.f32 %v701, %v770
      %v803 = vadd.f32 %v702, %v771
      %v804 = vadd.f32 %v703, %v772
      %v805 = vadd.f32 %v704, %v773
      %v806 = vadd.f32 %v705, %v774
      %v807 = vadd.f32 %v706, %v775
      %v808 = vadd.f32 %v707, %v776
      %v809 = vadd.f32 %v708, %v777
      %v810 = vadd.f32 %v709, %v778
      %v811 = vadd.f32 %v710, %v779
      %v812 = vadd.f32 %v711, %v780
      %v813 = vadd.f32 %v712, %v781
      %v814 = vld [vmem:[%s713 + $0x1] sm:$0xff]
      %v815 = vld [vmem:[%s713 + $0x9] sm:$0xff]
      %v816 = vld [vmem:[%s713 + $0x19] sm:$0xff]
      %v817 = vld [vmem:[%s713 + $0x21] sm:$0xff]
      %v818 = vld [vmem:[%s713 + $0x31] sm:$0xff]
      %v819 = vld [vmem:[%s713 + $0x39] sm:$0xff]
      %v820 = vld [vmem:[%s713 + $0x49] sm:$0xff]
      %v821 = vld [vmem:[%s713 + $0x51] sm:$0xff]
      %v822 = vld [vmem:[%s713 + $0x61] sm:$0xff]
      %v823 = vld [vmem:[%s713 + $0x69] sm:$0xff]
      %v824 = vld [vmem:[%s713 + $0x79] sm:$0xff]
      %v825 = vld [vmem:[%s713 + $0x81] sm:$0xff]
      %v826 = vld [vmem:[%s713 + $0x91] sm:$0xff]
      %v827 = vld [vmem:[%s713 + $0x99] sm:$0xff]
      %v828 = vld [vmem:[%s713 + $0xa9] sm:$0xff]
      %v829 = vld [vmem:[%s713 + $0xb1] sm:$0xff]
      %v830 = vld [vmem:[%s713 + $0xc1] sm:$0xff]
      %v831 = vld [vmem:[%s713 + $0xc9] sm:$0xff]
      %v832 = vld [vmem:[%s713 + $0xd9] sm:$0xff]
      %v833 = vld [vmem:[%s713 + $0xe1] sm:$0xff]
      %v834 = vld [vmem:[%s713 + $0xf1] sm:$0xff]
      %v835 = vld [vmem:[%s713 + $0xf9] sm:$0xff]
      %v836 = vld [vmem:[%s713 + $0x109] sm:$0xff]
      %v837 = vld [vmem:[%s713 + $0x111] sm:$0xff]
      %v838 = vld [vmem:[%s713 + $0x121] sm:$0xff]
      %v839 = vld [vmem:[%s713 + $0x129] sm:$0xff]
      %v840 = vld [vmem:[%s713 + $0x139] sm:$0xff]
      %v841 = vld [vmem:[%s713 + $0x141] sm:$0xff]
      %v842 = vld [vmem:[%s713 + $0x151] sm:$0xff]
      %v843 = vld [vmem:[%s713 + $0x159] sm:$0xff]
      %v844 = vld [vmem:[%s713 + $0x169] sm:$0xff]
      %v845 = vld [vmem:[%s713 + $0x171] sm:$0xff]
      %v846 = vlaneseq
      %v847 = vshrl.u32 %v846, 7
      %v848 = vsub.s32 7, %v847
      %v849 = vrot.slane %v142, %v848
      %v850 = vmul.f32 %v814, %v849
      %v851 = vmul.f32 %v815, %v849
      %v852 = vmul.f32 %v816, %v849
      %v853 = vmul.f32 %v817, %v849
      %v854 = vmul.f32 %v818, %v849
      %v855 = vmul.f32 %v819, %v849
      %v856 = vmul.f32 %v820, %v849
      %v857 = vmul.f32 %v821, %v849
      %v858 = vmul.f32 %v822, %v849
      %v859 = vmul.f32 %v823, %v849
      %v860 = vmul.f32 %v824, %v849
      %v861 = vmul.f32 %v825, %v849
      %v862 = vmul.f32 %v826, %v849
      %v863 = vmul.f32 %v827, %v849
      %v864 = vmul.f32 %v828, %v849
      %v865 = vmul.f32 %v829, %v849
      %v866 = vmul.f32 %v830, %v849
      %v867 = vmul.f32 %v831, %v849
      %v868 = vmul.f32 %v832, %v849
      %v869 = vmul.f32 %v833, %v849
      %v870 = vmul.f32 %v834, %v849
      %v871 = vmul.f32 %v835, %v849
      %v872 = vmul.f32 %v836, %v849
      %v873 = vmul.f32 %v837, %v849
      %v874 = vmul.f32 %v838, %v849
      %v875 = vmul.f32 %v839, %v849
      %v876 = vmul.f32 %v840, %v849
      %v877 = vmul.f32 %v841, %v849
      %v878 = vmul.f32 %v842, %v849
      %v879 = vmul.f32 %v843, %v849
      %v880 = vmul.f32 %v844, %v849
      %v881 = vmul.f32 %v845, %v849
      %v882 = vadd.f32 %v782, %v850
      %v883 = vadd.f32 %v783, %v851
      %v884 = vadd.f32 %v784, %v852
      %v885 = vadd.f32 %v785, %v853
      %v886 = vadd.f32 %v786, %v854
      %v887 = vadd.f32 %v787, %v855
      %v888 = vadd.f32 %v788, %v856
      %v889 = vadd.f32 %v789, %v857
      %v890 = vadd.f32 %v790, %v858
      %v891 = vadd.f32 %v791, %v859
      %v892 = vadd.f32 %v792, %v860
      %v893 = vadd.f32 %v793, %v861
      %v894 = vadd.f32 %v794, %v862
      %v895 = vadd.f32 %v795, %v863
      %v896 = vadd.f32 %v796, %v864
      %v897 = vadd.f32 %v797, %v865
      %v898 = vadd.f32 %v798, %v866
      %v899 = vadd.f32 %v799, %v867
      %v900 = vadd.f32 %v800, %v868
      %v901 = vadd.f32 %v801, %v869
      %v902 = vadd.f32 %v802, %v870
      %v903 = vadd.f32 %v803, %v871
      %v904 = vadd.f32 %v804, %v872
      %v905 = vadd.f32 %v805, %v873
      %v906 = vadd.f32 %v806, %v874
      %v907 = vadd.f32 %v807, %v875
      %v908 = vadd.f32 %v808, %v876
      %v909 = vadd.f32 %v809, %v877
      %v910 = vadd.f32 %v810, %v878
      %v911 = vadd.f32 %v811, %v879
      %v912 = vadd.f32 %v812, %v880
      %v913 = vadd.f32 %v813, %v881
      %v914 = vld [vmem:[%s713 + $0x2] sm:$0xff]
      %v915 = vld [vmem:[%s713 + $0xa] sm:$0xff]
      %v916 = vld [vmem:[%s713 + $0x1a] sm:$0xff]
      %v917 = vld [vmem:[%s713 + $0x22] sm:$0xff]
      %v918 = vld [vmem:[%s713 + $0x32] sm:$0xff]
      %v919 = vld [vmem:[%s713 + $0x3a] sm:$0xff]
      %v920 = vld [vmem:[%s713 + $0x4a] sm:$0xff]
      %v921 = vld [vmem:[%s713 + $0x52] sm:$0xff]
      %v922 = vld [vmem:[%s713 + $0x62] sm:$0xff]
      %v923 = vld [vmem:[%s713 + $0x6a] sm:$0xff]
      %v924 = vld [vmem:[%s713 + $0x7a] sm:$0xff]
      %v925 = vld [vmem:[%s713 + $0x82] sm:$0xff]
      %v926 = vld [vmem:[%s713 + $0x92] sm:$0xff]
      %v927 = vld [vmem:[%s713 + $0x9a] sm:$0xff]
      %v928 = vld [vmem:[%s713 + $0xaa] sm:$0xff]
      %v929 = vld [vmem:[%s713 + $0xb2] sm:$0xff]
      %v930 = vld [vmem:[%s713 + $0xc2] sm:$0xff]
      %v931 = vld [vmem:[%s713 + $0xca] sm:$0xff]
      %v932 = vld [vmem:[%s713 + $0xda] sm:$0xff]
      %v933 = vld [vmem:[%s713 + $0xe2] sm:$0xff]
      %v934 = vld [vmem:[%s713 + $0xf2] sm:$0xff]
      %v935 = vld [vmem:[%s713 + $0xfa] sm:$0xff]
      %v936 = vld [vmem:[%s713 + $0x10a] sm:$0xff]
      %v937 = vld [vmem:[%s713 + $0x112] sm:$0xff]
      %v938 = vld [vmem:[%s713 + $0x122] sm:$0xff]
      %v939 = vld [vmem:[%s713 + $0x12a] sm:$0xff]
      %v940 = vld [vmem:[%s713 + $0x13a] sm:$0xff]
      %v941 = vld [vmem:[%s713 + $0x142] sm:$0xff]
      %v942 = vld [vmem:[%s713 + $0x152] sm:$0xff]
      %v943 = vld [vmem:[%s713 + $0x15a] sm:$0xff]
      %v944 = vld [vmem:[%s713 + $0x16a] sm:$0xff]
      %v945 = vld [vmem:[%s713 + $0x172] sm:$0xff]
      %v946 = vlaneseq
      %v947 = vshrl.u32 %v946, 7
      %v948 = vsub.s32 0, %v947
      %v949 = vrot.slane %v143, %v948
      %v950 = vmul.f32 %v914, %v949
      %v951 = vmul.f32 %v915, %v949
      %v952 = vmul.f32 %v916, %v949
      %v953 = vmul.f32 %v917, %v949
      %v954 = vmul.f32 %v918, %v949
      %v955 = vmul.f32 %v919, %v949
      %v956 = vmul.f32 %v920, %v949
      %v957 = vmul.f32 %v921, %v949
      %v958 = vmul.f32 %v922, %v949
      %v959 = vmul.f32 %v923, %v949
      %v960 = vmul.f32 %v924, %v949
      %v961 = vmul.f32 %v925, %v949
      %v962 = vmul.f32 %v926, %v949
      %v963 = vmul.f32 %v927, %v949
      %v964 = vmul.f32 %v928, %v949
      %v965 = vmul.f32 %v929, %v949
      %v966 = vmul.f32 %v930, %v949
      %v967 = vmul.f32 %v931, %v949
      %v968 = vmul.f32 %v932, %v949
      %v969 = vmul.f32 %v933, %v949
      %v970 = vmul.f32 %v934, %v949
      %v971 = vmul.f32 %v935, %v949
      %v972 = vmul.f32 %v936, %v949
      %v973 = vmul.f32 %v937, %v949
      %v974 = vmul.f32 %v938, %v949
      %v975 = vmul.f32 %v939, %v949
      %v976 = vmul.f32 %v940, %v949
      %v977 = vmul.f32 %v941, %v949
      %v978 = vmul.f32 %v942, %v949
      %v979 = vmul.f32 %v943, %v949
      %v980 = vmul.f32 %v944, %v949
      %v981 = vmul.f32 %v945, %v949
      %v982 = vadd.f32 %v882, %v950
      %v983 = vadd.f32 %v883, %v951
      %v984 = vadd.f32 %v884, %v952
      %v985 = vadd.f32 %v885, %v953
      %v986 = vadd.f32 %v886, %v954
      %v987 = vadd.f32 %v887, %v955
      %v988 = vadd.f32 %v888, %v956
      %v989 = vadd.f32 %v889, %v957
      %v990 = vadd.f32 %v890, %v958
      %v991 = vadd.f32 %v891, %v959
      %v992 = vadd.f32 %v892, %v960
      %v993 = vadd.f32 %v893, %v961
      %v994 = vadd.f32 %v894, %v962
      %v995 = vadd.f32 %v895, %v963
      %v996 = vadd.f32 %v896, %v964
      %v997 = vadd.f32 %v897, %v965
      %v998 = vadd.f32 %v898, %v966
      %v999 = vadd.f32 %v899, %v967
      %v1000 = vadd.f32 %v900, %v968
      %v1001 = vadd.f32 %v901, %v969
      %v1002 = vadd.f32 %v902, %v970
      %v1003 = vadd.f32 %v903, %v971
      %v1004 = vadd.f32 %v904, %v972
      %v1005 = vadd.f32 %v905, %v973
      %v1006 = vadd.f32 %v906, %v974
      %v1007 = vadd.f32 %v907, %v975
      %v1008 = vadd.f32 %v908, %v976
      %v1009 = vadd.f32 %v909, %v977
      %v1010 = vadd.f32 %v910, %v978
      %v1011 = vadd.f32 %v911, %v979
      %v1012 = vadd.f32 %v912, %v980
      %v1013 = vadd.f32 %v913, %v981
      %vm1014 = vcmask 64512
      %v1015 = vsel %vm1014, %v982, 0.0
      %v1016 = vsel %vm1014, %v983, 0.0
      %v1017 = vadd.f32 %v1015, %v1016
      %v1018 = vsel %vm1014, %v984, 0.0
      %v1019 = vadd.f32 %v1017, %v1018
      %v1020 = vsel %vm1014, %v985, 0.0
      %v1021 = vadd.f32 %v1019, %v1020
      %v1022 = vsel %vm1014, %v986, 0.0
      %v1023 = vadd.f32 %v1021, %v1022
      %v1024 = vsel %vm1014, %v987, 0.0
      %v1025 = vadd.f32 %v1023, %v1024
      %v1026 = vsel %vm1014, %v988, 0.0
      %v1027 = vadd.f32 %v1025, %v1026
      %v1028 = vsel %vm1014, %v989, 0.0
      %v1029 = vadd.f32 %v1027, %v1028
      %v1030 = vsel %vm1014, %v990, 0.0
      %v1031 = vadd.f32 %v1029, %v1030
      %v1032 = vsel %vm1014, %v991, 0.0
      %v1033 = vadd.f32 %v1031, %v1032
      %v1034 = vsel %vm1014, %v992, 0.0
      %v1035 = vadd.f32 %v1033, %v1034
      %v1036 = vsel %vm1014, %v993, 0.0
      %v1037 = vadd.f32 %v1035, %v1036
      %v1038 = vsel %vm1014, %v994, 0.0
      %v1039 = vadd.f32 %v1037, %v1038
      %v1040 = vsel %vm1014, %v995, 0.0
      %v1041 = vadd.f32 %v1039, %v1040
      %v1042 = vsel %vm1014, %v996, 0.0
      %v1043 = vadd.f32 %v1041, %v1042
      %v1044 = vsel %vm1014, %v997, 0.0
      %v1045 = vadd.f32 %v1043, %v1044
      %v1046 = vsel %vm1014, %v998, 0.0
      %v1047 = vadd.f32 %v1045, %v1046
      %v1048 = vsel %vm1014, %v999, 0.0
      %v1049 = vadd.f32 %v1047, %v1048
      %v1050 = vsel %vm1014, %v1000, 0.0
      %v1051 = vadd.f32 %v1049, %v1050
      %v1052 = vsel %vm1014, %v1001, 0.0
      %v1053 = vadd.f32 %v1051, %v1052
      %v1054 = vsel %vm1014, %v1002, 0.0
      %v1055 = vadd.f32 %v1053, %v1054
      %v1056 = vsel %vm1014, %v1003, 0.0
      %v1057 = vadd.f32 %v1055, %v1056
      %v1058 = vsel %vm1014, %v1004, 0.0
      %v1059 = vadd.f32 %v1057, %v1058
      %v1060 = vsel %vm1014, %v1005, 0.0
      %v1061 = vadd.f32 %v1059, %v1060
      %v1062 = vsel %vm1014, %v1006, 0.0
      %v1063 = vadd.f32 %v1061, %v1062
      %v1064 = vsel %vm1014, %v1007, 0.0
      %v1065 = vadd.f32 %v1063, %v1064
      %v1066 = vsel %vm1014, %v1008, 0.0
      %v1067 = vadd.f32 %v1065, %v1066
      %v1068 = vsel %vm1014, %v1009, 0.0
      %v1069 = vadd.f32 %v1067, %v1068
      %v1070 = vsel %vm1014, %v1010, 0.0
      %v1071 = vadd.f32 %v1069, %v1070
      %v1072 = vsel %vm1014, %v1011, 0.0
      %v1073 = vadd.f32 %v1071, %v1072
      %v1074 = vsel %vm1014, %v1012, 0.0
      %v1075 = vadd.f32 %v1073, %v1074
      %v1076 = vsel %vm1014, %v1013, 0.0
      %v1077 = vadd.f32 %v1075, %v1076
      %v1078 = vrot.slane %v1077, 4
      %v1079 = vadd.f32 %v1077, %v1078
      %v1080 = vrot.slane %v1079, 2
      %v1081 = vadd.f32 %v1079, %v1080
      %v1082 = vrot.slane %v1081, 1
      %v1083 = vadd.f32 %v1081, %v1082
      %vm1084 = vcmask 57344
      %1085 = vst.msk [vmem:[%s141] sm:$0x1] %vm1084, %v1083
      %v1086 = vmul.f32 %v982, %v982
      %v1087 = vmul.f32 %v983, %v983
      %v1088 = vmul.f32 %v984, %v984
      %v1089 = vmul.f32 %v985, %v985
      %v1090 = vmul.f32 %v986, %v986
      %v1091 = vmul.f32 %v987, %v987
      %v1092 = vmul.f32 %v988, %v988
      %v1093 = vmul.f32 %v989, %v989
      %v1094 = vmul.f32 %v990, %v990
      %v1095 = vmul.f32 %v991, %v991
      %v1096 = vmul.f32 %v992, %v992
      %v1097 = vmul.f32 %v993, %v993
      %v1098 = vmul.f32 %v994, %v994
      %v1099 = vmul.f32 %v995, %v995
      %v1100 = vmul.f32 %v996, %v996
      %v1101 = vmul.f32 %v997, %v997
      %v1102 = vmul.f32 %v998, %v998
      %v1103 = vmul.f32 %v999, %v999
      %v1104 = vmul.f32 %v1000, %v1000
      %v1105 = vmul.f32 %v1001, %v1001
      %v1106 = vmul.f32 %v1002, %v1002
      %v1107 = vmul.f32 %v1003, %v1003
      %v1108 = vmul.f32 %v1004, %v1004
      %v1109 = vmul.f32 %v1005, %v1005
      %v1110 = vmul.f32 %v1006, %v1006
      %v1111 = vmul.f32 %v1007, %v1007
      %v1112 = vmul.f32 %v1008, %v1008
      %v1113 = vmul.f32 %v1009, %v1009
      %v1114 = vmul.f32 %v1010, %v1010
      %v1115 = vmul.f32 %v1011, %v1011
      %v1116 = vmul.f32 %v1012, %v1012
      %v1117 = vmul.f32 %v1013, %v1013
      %v1118 = vsel %vm1014, %v1086, 0.0
      %v1119 = vsel %vm1014, %v1087, 0.0
      %v1120 = vadd.f32 %v1118, %v1119
      %v1121 = vsel %vm1014, %v1088, 0.0
      %v1122 = vadd.f32 %v1120, %v1121
      %v1123 = vsel %vm1014, %v1089, 0.0
      %v1124 = vadd.f32 %v1122, %v1123
      %v1125 = vsel %vm1014, %v1090, 0.0
      %v1126 = vadd.f32 %v1124, %v1125
      %v1127 = vsel %vm1014, %v1091, 0.0
      %v1128 = vadd.f32 %v1126, %v1127
      %v1129 = vsel %vm1014, %v1092, 0.0
      %v1130 = vadd.f32 %v1128, %v1129
      %v1131 = vsel %vm1014, %v1093, 0.0
      %v1132 = vadd.f32 %v1130, %v1131
      %v1133 = vsel %vm1014, %v1094, 0.0
      %v1134 = vadd.f32 %v1132, %v1133
      %v1135 = vsel %vm1014, %v1095, 0.0
      %v1136 = vadd.f32 %v1134, %v1135
      %v1137 = vsel %vm1014, %v1096, 0.0
      %v1138 = vadd.f32 %v1136, %v1137
      %v1139 = vsel %vm1014, %v1097, 0.0
      %v1140 = vadd.f32 %v1138, %v1139
      %v1141 = vsel %vm1014, %v1098, 0.0
      %v1142 = vadd.f32 %v1140, %v1141
      %v1143 = vsel %vm1014, %v1099, 0.0
      %v1144 = vadd.f32 %v1142, %v1143
      %v1145 = vsel %vm1014, %v1100, 0.0
      %v1146 = vadd.f32 %v1144, %v1145
      %v1147 = vsel %vm1014, %v1101, 0.0
      %v1148 = vadd.f32 %v1146, %v1147
      %v1149 = vsel %vm1014, %v1102, 0.0
      %v1150 = vadd.f32 %v1148, %v1149
      %v1151 = vsel %vm1014, %v1103, 0.0
      %v1152 = vadd.f32 %v1150, %v1151
      %v1153 = vsel %vm1014, %v1104, 0.0
      %v1154 = vadd.f32 %v1152, %v1153
      %v1155 = vsel %vm1014, %v1105, 0.0
      %v1156 = vadd.f32 %v1154, %v1155
      %v1157 = vsel %vm1014, %v1106, 0.0
      %v1158 = vadd.f32 %v1156, %v1157
      %v1159 = vsel %vm1014, %v1107, 0.0
      %v1160 = vadd.f32 %v1158, %v1159
      %v1161 = vsel %vm1014, %v1108, 0.0
      %v1162 = vadd.f32 %v1160, %v1161
      %v1163 = vsel %vm1014, %v1109, 0.0
      %v1164 = vadd.f32 %v1162, %v1163
      %v1165 = vsel %vm1014, %v1110, 0.0
      %v1166 = vadd.f32 %v1164, %v1165
      %v1167 = vsel %vm1014, %v1111, 0.0
      %v1168 = vadd.f32 %v1166, %v1167
      %v1169 = vsel %vm1014, %v1112, 0.0
      %v1170 = vadd.f32 %v1168, %v1169
      %v1171 = vsel %vm1014, %v1113, 0.0
      %v1172 = vadd.f32 %v1170, %v1171
      %v1173 = vsel %vm1014, %v1114, 0.0
      %v1174 = vadd.f32 %v1172, %v1173
      %v1175 = vsel %vm1014, %v1115, 0.0
      %v1176 = vadd.f32 %v1174, %v1175
      %v1177 = vsel %vm1014, %v1116, 0.0
      %v1178 = vadd.f32 %v1176, %v1177
      %v1179 = vsel %vm1014, %v1117, 0.0
      %v1180 = vadd.f32 %v1178, %v1179
      %v1181 = vrot.slane %v1180, 4
      %v1182 = vadd.f32 %v1180, %v1181
      %v1183 = vrot.slane %v1182, 2
      %v1184 = vadd.f32 %v1182, %v1183
      %v1185 = vrot.slane %v1184, 1
      %v1186 = vadd.f32 %v1184, %v1185
      %1187 = vst.msk [vmem:[%s141 + $0x1] sm:$0x1] %vm1084, %v1186
      %p1188 = scmp.lt.s32.totalorder %s13, 1
      %s1189 = scalar_select %p1188, %s13, 1
      %s1190 = smul.addr %s1189, 2
      %s1191 = scalar_lea.vmem %s2, %s1190
      // Predicated region
      $region29: #{block_forward.3} parent=27 // pred_check
        %p1192 = pneg %p78
      $region30: #{block_forward.3} parent=27 // pred_check_branch
        %1194 = sbr.rel (%p1192) target = $region32
      $region31: #{block_forward.3} parent=27 // pred_region
        _
      $region32: #{block_forward.3} parent=27 // pred_fallthru
        _
    $region28: #{block_forward.3} parent=5 // pred_fallthru
      _
    %p1195 = scmp.le.s32.totalorder 2, %s8
    // Predicated region
    $region33: #{block_forward.3} parent=5 // pred_check
      %p1196 = pneg %p1195
    $region34: #{block_forward.3} parent=5 // pred_check_branch
      %1198 = sbr.rel (%p1196) target = $region36
    $region35: #{block_forward.3} parent=5 // pred_region
      %s1199 = ssub.s32 %s8, 2
      // Predicated region
      $region37: #{block_forward.3} parent=35 // pred_check
        %p1200 = pneg %p84
      $region38: #{block_forward.3} parent=35 // pred_check_branch
        %1202 = sbr.rel (%p1200) target = $region40
      $region39: #{block_forward.3} parent=35 // pred_region
        %p1203 = scmp.lt.s32.totalorder %s14, 1
        %s1204 = scalar_select %p1203, %s14, 1
        %s1205 = smul.addr %s1204, 2
        %s1206 = scalar_lea.vmem %s2, %s1205
      $region40: #{block_forward.3} parent=35 // pred_fallthru
        _
    $region36: #{block_forward.3} parent=5 // pred_fallthru
      _
  $region6: #{block_forward.3} parent=0 // loop_footer
    %s12 = sadd.s32 1, %s8
  $region7: #{block_forward.3} parent=0 // loop_footer_branch
    %7 = sbr.rel target = $region3
  $region8: #{block_forward.3} parent=0 // loop_exit
    _

// kernel: block_forward.4
$region0: #{block_forward.4}
  #allocation0 [shape = 'u32[]', space=smem, size = 0x4, offset = 0x4, fixed_abs, tag = 'smem constant byte address 0x4 - core index']
  #allocation1 [shape = 'u32[144,128]{1,0:T(1,128)}', space=vmem, size = 0x12000, scoped, tag = 'internal scratch']
  %s0 = inlined_call_operand.vmem [shape: f32[2,18,18,8], index: 0, kind: input, shape index: {}]
  %s1 = inlined_call_operand.vmem [shape: f32[9,8], index: 1, kind: input, shape index: {}]
  %s2 = inlined_call_operand.vmem [shape: f32[1,8], index: 2, kind: input, shape index: {}]
  %s3 = inlined_call_operand.vmem [shape: f32[1,8], index: 3, kind: input, shape index: {}]
  %s4 = inlined_call_operand.vmem [shape: f32[8,16], index: 4, kind: input, shape index: {}]
  %s5 = inlined_call_operand.vmem [shape: f32[2,16,16,16], index: 5, kind: output, shape index: {0}]
  %s6 = inlined_call_operand.vmem [shape: f32[2,2,16], index: 6, kind: output, shape index: {1}]
  %7 = xla_tuple %s5, %s6
  %s8 = sld [smem:[#allocation0]]
  $region61: #{block_forward.4} parent=0
    _
  %s10 = ssub.s32 1, %s8
  %s11 = scalar_select 0, %s10, %s8
  loop: start=0, step=1, limit=4
  $region2: #{block_forward.4} parent=0 // loop_pre_header
    _
  $region3: #{block_forward.4} parent=0 // loop_header
    %s13 = sphi 0, %s17
    %p14 = scmp.ge.s32.totalorder %s13, 4
    %s23 = sphi 0, %s25
    %s26 = sphi 0, %s23
    %s27 = sphi 0, %s26
    %s43 = sphi 0, %s27
    %s47 = sphi 0, %s47
    %s49 = sphi 0, %s47
    %s50 = sphi 0, %s49
    %s64 = sphi 0, %s50
    %s68 = sphi 0, %s68
    %s70 = sphi 0, %s68
    %s71 = sphi 0, %s70
    %s85 = sphi 0, %s71
    %s89 = sphi 0, %s89
    %s91 = sphi 0, %s89
    %s92 = sphi 0, %s91
    %s106 = sphi 0, %s92
    %s110 = sphi 0, %s110
    %s112 = sphi 0, %s110
    %s113 = sphi 0, %s112
    %s127 = sphi 0, %s113
    %s133 = sphi 0, %s135
    %s136 = sphi 0, %s133
    %s137 = sphi 0, %s136
    %s153 = sphi 0, %s137
    %s159 = sphi 0, %s161
    %s162 = sphi 0, %s159
    %s163 = sphi 0, %s162
    %s179 = sphi 0, %s163
  $region4: #{block_forward.4} parent=0 // loop_header_branch
    %16 = sbr.rel (%p14) target = $region8
  $region5: #{block_forward.4} parent=0 // loop_body
    %s18 = ssub.s32 %s13, 1
    %s19 = ssub.s32 %s13, 2
    %s20 = sadd.s32 %s13, 1
    %s21 = ssub.s32 %s13, %s20
    %p22 = scmp.eq.s32.totalorder %s21, 0
    %s24 = sadd.s32 %s23, 1
    %s25 = scalar_select %p22, %s23, %s24
    %p28 = pneg %p22
    %p29 = scmp.eq.s32.totalorder %s13, 1
    %p30 = por %p28, %p29
    %p31 = scmp.ne.s32.totalorder %s23, %s26
    %p32 = scmp.eq.s32.totalorder %s13, 0
    %p33 = por %p31, %p32
    %p34 = scmp.ne.s32.totalorder %s23, %s26
    %p35 = scmp.eq.s32.totalorder %s18, 1
    %p36 = por %p34, %p35
    %p37 = scmp.ne.s32.totalorder %s26, %s27
    %p38 = scmp.eq.s32.totalorder %s18, 0
    %p39 = por %p37, %p38
    %p40 = scmp.ne.s32.totalorder %s26, %s27
    %p41 = scmp.eq.s32.totalorder %s19, 1
    %p42 = por %p40, %p41
    %p44 = scmp.ne.s32.totalorder %s27, %s43
    %p45 = scmp.eq.s32.totalorder %s19, 0
    %p46 = por %p44, %p45
    %s48 = sadd.s32 %s47, 1
    %p51 = scmp.eq.s32.totalorder %s13, 1
    %p52 = scmp.ne.s32.totalorder %s47, %s49
    %p53 = scmp.eq.s32.totalorder %s13, 0
    %p54 = por %p52, %p53
    %p55 = scmp.ne.s32.totalorder %s47, %s49
    %p56 = scmp.eq.s32.totalorder %s18, 1
    %p57 = por %p55, %p56
    %p58 = scmp.ne.s32.totalorder %s49, %s50
    %p59 = scmp.eq.s32.totalorder %s18, 0
    %p60 = por %p58, %p59
    %p61 = scmp.ne.s32.totalorder %s49, %s50
    %p62 = scmp.eq.s32.totalorder %s19, 1
    %p63 = por %p61, %p62
    %p65 = scmp.ne.s32.totalorder %s50, %s64
    %p66 = scmp.eq.s32.totalorder %s19, 0
    %p67 = por %p65, %p66
    %s69 = sadd.s32 %s68, 1
    %p72 = scmp.eq.s32.totalorder %s13, 1
    %p73 = scmp.ne.s32.totalorder %s68, %s70
    %p74 = scmp.eq.s32.totalorder %s13, 0
    %p75 = por %p73, %p74
    %p76 = scmp.ne.s32.totalorder %s68, %s70
    %p77 = scmp.eq.s32.totalorder %s18, 1
    %p78 = por %p76, %p77
    %p79 = scmp.ne.s32.totalorder %s70, %s71
    %p80 = scmp.eq.s32.totalorder %s18, 0
    %p81 = por %p79, %p80
    %p82 = scmp.ne.s32.totalorder %s70, %s71
    %p83 = scmp.eq.s32.totalorder %s19, 1
    %p84 = por %p82, %p83
    %p86 = scmp.ne.s32.totalorder %s71, %s85
    %p87 = scmp.eq.s32.totalorder %s19, 0
    %p88 = por %p86, %p87
    %s90 = sadd.s32 %s89, 1
    %p93 = scmp.eq.s32.totalorder %s13, 1
    %p94 = scmp.ne.s32.totalorder %s89, %s91
    %p95 = scmp.eq.s32.totalorder %s13, 0
    %p96 = por %p94, %p95
    %p97 = scmp.ne.s32.totalorder %s89, %s91
    %p98 = scmp.eq.s32.totalorder %s18, 1
    %p99 = por %p97, %p98
    %p100 = scmp.ne.s32.totalorder %s91, %s92
    %p101 = scmp.eq.s32.totalorder %s18, 0
    %p102 = por %p100, %p101
    %p103 = scmp.ne.s32.totalorder %s91, %s92
    %p104 = scmp.eq.s32.totalorder %s19, 1
    %p105 = por %p103, %p104
    %p107 = scmp.ne.s32.totalorder %s92, %s106
    %p108 = scmp.eq.s32.totalorder %s19, 0
    %p109 = por %p107, %p108
    %s111 = sadd.s32 %s110, 1
    %p114 = scmp.eq.s32.totalorder %s13, 1
    %p115 = scmp.ne.s32.totalorder %s110, %s112
    %p116 = scmp.eq.s32.totalorder %s13, 0
    %p117 = por %p115, %p116
    %p118 = scmp.ne.s32.totalorder %s110, %s112
    %p119 = scmp.eq.s32.totalorder %s18, 1
    %p120 = por %p118, %p119
    %p121 = scmp.ne.s32.totalorder %s112, %s113
    %p122 = scmp.eq.s32.totalorder %s18, 0
    %p123 = por %p121, %p122
    %p124 = scmp.ne.s32.totalorder %s112, %s113
    %p125 = scmp.eq.s32.totalorder %s19, 1
    %p126 = por %p124, %p125
    %p128 = scmp.ne.s32.totalorder %s113, %s127
    %p129 = scmp.eq.s32.totalorder %s19, 0
    %p130 = por %p128, %p129
    %s131 = ssub.s32 %s13, %s20
    %p132 = scmp.eq.s32.totalorder %s131, 0
    %s134 = sadd.s32 %s133, 1
    %s135 = scalar_select %p132, %s133, %s134
    %p138 = pneg %p132
    %p139 = scmp.eq.s32.totalorder %s13, 1
    %p140 = por %p138, %p139
    %p141 = scmp.ne.s32.totalorder %s133, %s136
    %p142 = scmp.eq.s32.totalorder %s13, 0
    %p143 = por %p141, %p142
    %p144 = scmp.ne.s32.totalorder %s133, %s136
    %p145 = scmp.eq.s32.totalorder %s18, 1
    %p146 = por %p144, %p145
    %p147 = scmp.ne.s32.totalorder %s136, %s137
    %p148 = scmp.eq.s32.totalorder %s18, 0
    %p149 = por %p147, %p148
    %p150 = scmp.ne.s32.totalorder %s136, %s137
    %p151 = scmp.eq.s32.totalorder %s19, 1
    %p152 = por %p150, %p151
    %p154 = scmp.ne.s32.totalorder %s137, %s153
    %p155 = scmp.eq.s32.totalorder %s19, 0
    %p156 = por %p154, %p155
    %s157 = ssub.s32 %s13, %s20
    %p158 = scmp.eq.s32.totalorder %s157, 0
    %s160 = sadd.s32 %s159, 1
    %s161 = scalar_select %p158, %s159, %s160
    %p164 = pneg %p158
    %p165 = scmp.eq.s32.totalorder %s13, 1
    %p166 = por %p164, %p165
    %p167 = scmp.ne.s32.totalorder %s159, %s162
    %p168 = scmp.eq.s32.totalorder %s13, 0
    %p169 = por %p167, %p168
    %p170 = scmp.ne.s32.totalorder %s159, %s162
    %p171 = scmp.eq.s32.totalorder %s18, 1
    %p172 = por %p170, %p171
    %p173 = scmp.ne.s32.totalorder %s162, %s163
    %p174 = scmp.eq.s32.totalorder %s18, 0
    %p175 = por %p173, %p174
    %p176 = scmp.ne.s32.totalorder %s162, %s163
    %p177 = scmp.eq.s32.totalorder %s19, 1
    %p178 = por %p176, %p177
    %p180 = scmp.ne.s32.totalorder %s163, %s179
    %p181 = scmp.eq.s32.totalorder %s19, 0
    %p182 = por %p180, %p181
    %p183 = scmp.le.s32.totalorder 1, %s13
    %p184 = scmp.lt.s32.totalorder %s13, 3
    %p185 = pnand %p183, %p184
    %p186 = pneg %p185
    // Predicated region
    $region9: #{block_forward.4} parent=5 // pred_check
      _
    $region10: #{block_forward.4} parent=5 // pred_check_branch
      %188 = sbr.rel (%p185) target = $region12
    $region11: #{block_forward.4} parent=5 // pred_region
      %s189 = ssub.s32 %s13, 1
      // Predicated region
      $region13: #{block_forward.4} parent=11 // pred_check
        %p190 = pneg %p60
      $region14: #{block_forward.4} parent=11 // pred_check_branch
        %192 = sbr.rel (%p190) target = $region16
      $region15: #{block_forward.4} parent=11 // pred_region
        _
      $region16: #{block_forward.4} parent=11 // pred_fallthru
        _
      // Predicated region
      $region17: #{block_forward.4} parent=11 // pred_check
        %p193 = pneg %p81
      $region18: #{block_forward.4} parent=11 // pred_check_branch
        %195 = sbr.rel (%p193) target = $region20
      $region19: #{block_forward.4} parent=11 // pred_region
        _
      $region20: #{block_forward.4} parent=11 // pred_fallthru
        _
      // Predicated region
      $region21: #{block_forward.4} parent=11 // pred_check
        %p196 = pneg %p102
      $region22: #{block_forward.4} parent=11 // pred_check_branch
        %198 = sbr.rel (%p196) target = $region24
      $region23: #{block_forward.4} parent=11 // pred_region
        _
      $region24: #{block_forward.4} parent=11 // pred_fallthru
        _
      // Predicated region
      $region25: #{block_forward.4} parent=11 // pred_check
        %p199 = pneg %p123
      $region26: #{block_forward.4} parent=11 // pred_check_branch
        %201 = sbr.rel (%p199) target = $region28
      $region27: #{block_forward.4} parent=11 // pred_region
        _
      $region28: #{block_forward.4} parent=11 // pred_fallthru
        _
    $region12: #{block_forward.4} parent=5 // pred_fallthru
      _
    %p202 = scmp.lt.s32.totalorder %s13, 2
    // Predicated region
    $region29: #{block_forward.4} parent=5 // pred_check
      %p203 = pneg %p202
    $region30: #{block_forward.4} parent=5 // pred_check_branch
      %205 = sbr.rel (%p203) target = $region32
    $region31: #{block_forward.4} parent=5 // pred_region
      // Predicated region
      $region33: #{block_forward.4} parent=31 // pred_check
        %p206 = pneg %p33
      $region34: #{block_forward.4} parent=31 // pred_check_branch
        %208 = sbr.rel (%p206) target = $region36
      $region35: #{block_forward.4} parent=31 // pred_region
        %p209 = scmp.lt.s32.totalorder %s13, 1
        %s210 = scalar_select %p209, %s13, 1
        %s211 = smul.addr %s210, 54
        %s212 = smul.addr %s211, 8
        %s213 = scalar_lea.vmem %s0, %s212
      $region36: #{block_forward.4} parent=31 // pred_fallthru
        _
    $region32: #{block_forward.4} parent=5 // pred_fallthru
      _
    %p214 = scmp.le.s32.totalorder 1, %s13
    %p215 = scmp.lt.s32.totalorder %s13, 3
    %p216 = pnand %p214, %p215
    %p217 = pneg %p216
    // Predicated region
    $region37: #{block_forward.4} parent=5 // pred_check
      _
    $region38: #{block_forward.4} parent=5 // pred_check_branch
      %219 = sbr.rel (%p216) target = $region40
    $region39: #{block_forward.4} parent=5 // pred_region
      %s220 = ssub.s32 %s13, 1
      %p221 = scmp.lt.s32.totalorder %s18, 1
      %s222 = scalar_select %p221, %s18, 1
      %s223 = smul.addr %s222, 54
      %s224 = smul.addr %s223, 8
      %s225 = scalar_lea.vmem %s0, %s224
      %p226 = pneg %p39
      %p227 = pneg %p36
      %p228 = pneg %p60
      %p229 = pneg %p57
      %p230 = pneg %p81
      %p231 = pneg %p78
      %p232 = pneg %p102
      %p233 = pneg %p99
      %p234 = pneg %p123
      %p235 = pneg %p120
      %p236 = pneg %p149
      %p237 = pneg %p146
      %p238 = scmp.lt.s32.totalorder %s18, 1
      %s239 = scalar_select %p238, %s18, 1
      %s240 = smul.addr %s239, 32
      %s241 = smul.addr %s240, 8
      %s242 = scalar_lea.vmem %s5, %s241
      %p243 = pneg %p175
      %p244 = pneg %p172
      %p245 = scmp.lt.s32.totalorder %s18, 1
      %s246 = scalar_select %p245, %s18, 1
      %s247 = smul.addr %s246, 2
      %s248 = scalar_lea.vmem %s6, %s247
      %p249 = scmp.lt.s32.totalorder %s18, 1
      %s250 = scalar_select %p249, %s18, 1
      %s251 = smul.addr %s250, 54
      %s252 = smul.addr %s251, 8
      %s253 = scalar_lea.vmem %s0, %s252
      %p254 = scmp.lt.s32.totalorder %s18, 1
      %s255 = scalar_select %p254, %s18, 1
      %s256 = smul.addr %s255, 32
      %s257 = smul.addr %s256, 8
      %s258 = scalar_lea.vmem %s5, %s257
      %p259 = scmp.lt.s32.totalorder %s18, 1
      %s260 = scalar_select %p259, %s18, 1
      %s261 = smul.addr %s260, 2
      %s262 = scalar_lea.vmem %s6, %s261
      %v263 = vld [vmem:[%s1] sm:$0xff]
      %v264 = vld [vmem:[%s1 + $0x8] sm:$0x1]
      %v265 = vld [vmem:[%s253] sm:$0xff]
      %v266 = vld [vmem:[%s253 + $0x8] sm:$0xff]
      %v267 = vld [vmem:[%s253 + $0x18] sm:$0xff]
      %v268 = vld [vmem:[%s253 + $0x20] sm:$0xff]
      %v269 = vld [vmem:[%s253 + $0x30] sm:$0xff]
      %v270 = vld [vmem:[%s253 + $0x38] sm:$0xff]
      %v271 = vld [vmem:[%s253 + $0x48] sm:$0xff]
      %v272 = vld [vmem:[%s253 + $0x50] sm:$0xff]
      %v273 = vld [vmem:[%s253 + $0x60] sm:$0xff]
      %v274 = vld [vmem:[%s253 + $0x68] sm:$0xff]
      %v275 = vld [vmem:[%s253 + $0x78] sm:$0xff]
      %v276 = vld [vmem:[%s253 + $0x80] sm:$0xff]
      %v277 = vld [vmem:[%s253 + $0x90] sm:$0xff]
      %v278 = vld [vmem:[%s253 + $0x98] sm:$0xff]
      %v279 = vld [vmem:[%s253 + $0xa8] sm:$0xff]
      %v280 = vld [vmem:[%s253 + $0xb0] sm:$0xff]
      %v281 = vld [vmem:[%s253 + $0xc0] sm:$0xff]
      %v282 = vld [vmem:[%s253 + $0xc8] sm:$0xff]
      %v283 = vld [vmem:[%s253 + $0xd8] sm:$0xff]
      %v284 = vld [vmem:[%s253 + $0xe0] sm:$0xff]
      %v285 = vld [vmem:[%s253 + $0xf0] sm:$0xff]
      %v286 = vld [vmem:[%s253 + $0xf8] sm:$0xff]
      %v287 = vld [vmem:[%s253 + $0x108] sm:$0xff]
      %v288 = vld [vmem:[%s253 + $0x110] sm:$0xff]
      %v289 = vld [vmem:[%s253 + $0x120] sm:$0xff]
      %v290 = vld [vmem:[%s253 + $0x128] sm:$0xff]
      %v291 = vld [vmem:[%s253 + $0x138] sm:$0xff]
      %v292 = vld [vmem:[%s253 + $0x140] sm:$0xff]
      %v293 = vld [vmem:[%s253 + $0x150] sm:$0xff]
      %v294 = vld [vmem:[%s253 + $0x158] sm:$0xff]
      %v295 = vld [vmem:[%s253 + $0x168] sm:$0xff]
      %v296 = vld [vmem:[%s253 + $0x170] sm:$0xff]
      %v297 = vlaneseq
      %v298 = vshrl.u32 %v297, 7
      %v299 = vsub.s32 0, %v298
      %v300 = vrot.slane %v263, %v299
      %v301 = vmul.f32 %v265, %v300
      %v302 = vmul.f32 %v266, %v300
      %v303 = vmul.f32 %v267, %v300
      %v304 = vmul.f32 %v268, %v300
      %v305 = vmul.f32 %v269, %v300
      %v306 = vmul.f32 %v270, %v300
      %v307 = vmul.f32 %v271, %v300
      %v308 = vmul.f32 %v272, %v300
      %v309 = vmul.f32 %v273, %v300
      %v310 = vmul.f32 %v274, %v300
      %v311 = vmul.f32 %v275, %v300
      %v312 = vmul.f32 %v276, %v300
      %v313 = vmul.f32 %v277, %v300
      %v314 = vmul.f32 %v278, %v300
      %v315 = vmul.f32 %v279, %v300
      %v316 = vmul.f32 %v280, %v300
      %v317 = vmul.f32 %v281, %v300
      %v318 = vmul.f32 %v282, %v300
      %v319 = vmul.f32 %v283, %v300
      %v320 = vmul.f32 %v284, %v300
      %v321 = vmul.f32 %v285, %v300
      %v322 = vmul.f32 %v286, %v300
      %v323 = vmul.f32 %v287, %v300
      %v324 = vmul.f32 %v288, %v300
      %v325 = vmul.f32 %v289, %v300
      %v326 = vmul.f32 %v290, %v300
      %v327 = vmul.f32 %v291, %v300
      %v328 = vmul.f32 %v292, %v300
      %v329 = vmul.f32 %v293, %v300
      %v330 = vmul.f32 %v294, %v300
      %v331 = vmul.f32 %v295, %v300
      %v332 = vmul.f32 %v296, %v300
      %v333 = vld [vmem:[%s253 + $0x1] sm:$0xff]
      %v334 = vld [vmem:[%s253 + $0x9] sm:$0xff]
      %v335 = vld [vmem:[%s253 + $0x19] sm:$0xff]
      %v336 = vld [vmem:[%s253 + $0x21] sm:$0xff]
      %v337 = vld [vmem:[%s253 + $0x31] sm:$0xff]
      %v338 = vld [vmem:[%s253 + $0x39] sm:$0xff]
      %v339 = vld [vmem:[%s253 + $0x49] sm:$0xff]
      %v340 = vld [vmem:[%s253 + $0x51] sm:$0xff]
      %v341 = vld [vmem:[%s253 + $0x61] sm:$0xff]
      %v342 = vld [vmem:[%s253 + $0x69] sm:$0xff]
      %v343 = vld [vmem:[%s253 + $0x79] sm:$0xff]
      %v344 = vld [vmem:[%s253 + $0x81] sm:$0xff]
      %v345 = vld [vmem:[%s253 + $0x91] sm:$0xff]
      %v346 = vld [vmem:[%s253 + $0x99] sm:$0xff]
      %v347 = vld [vmem:[%s253 + $0xa9] sm:$0xff]
      %v348 = vld [vmem:[%s253 + $0xb1] sm:$0xff]
      %v349 = vld [vmem:[%s253 + $0xc1] sm:$0xff]
      %v350 = vld [vmem:[%s253 + $0xc9] sm:$0xff]
      %v351 = vld [vmem:[%s253 + $0xd9] sm:$0xff]
      %v352 = vld [vmem:[%s253 + $0xe1] sm:$0xff]
      %v353 = vld [vmem:[%s253 + $0xf1] sm:$0xff]
      %v354 = vld [vmem:[%s253 + $0xf9] sm:$0xff]
      %v355 = vld [vmem:[%s253 + $0x109] sm:$0xff]
      %v356 = vld [vmem:[%s253 + $0x111] sm:$0xff]
      %v357 = vld [vmem:[%s253 + $0x121] sm:$0xff]
      %v358 = vld [vmem:[%s253 + $0x129] sm:$0xff]
      %v359 = vld [vmem:[%s253 + $0x139] sm:$0xff]
      %v360 = vld [vmem:[%s253 + $0x141] sm:$0xff]
      %v361 = vld [vmem:[%s253 + $0x151] sm:$0xff]
      %v362 = vld [vmem:[%s253 + $0x159] sm:$0xff]
      %v363 = vld [vmem:[%s253 + $0x169] sm:$0xff]
      %v364 = vld [vmem:[%s253 + $0x171] sm:$0xff]
      %v365 = vlaneseq
      %v366 = vshrl.u32 %v365, 7
      %v367 = vsub.s32 1, %v366
      %v368 = vrot.slane %v263, %v367
      %v369 = vmul.f32 %v333, %v368
      %v370 = vmul.f32 %v334, %v368
      %v371 = vmul.f32 %v335, %v368
      %v372 = vmul.f32 %v336, %v368
      %v373 = vmul.f32 %v337, %v368
      %v374 = vmul.f32 %v338, %v368
      %v375 = vmul.f32 %v339, %v368
      %v376 = vmul.f32 %v340, %v368
      %v377 = vmul.f32 %v341, %v368
      %v378 = vmul.f32 %v342, %v368
      %v379 = vmul.f32 %v343, %v368
      %v380 = vmul.f32 %v344, %v368
      %v381 = vmul.f32 %v345, %v368
      %v382 = vmul.f32 %v346, %v368
      %v383 = vmul.f32 %v347, %v368
      %v384 = vmul.f32 %v348, %v368
      %v385 = vmul.f32 %v349, %v368
      %v386 = vmul.f32 %v350, %v368
      %v387 = vmul.f32 %v351, %v368
      %v388 = vmul.f32 %v352, %v368
      %v389 = vmul.f32 %v353, %v368
      %v390 = vmul.f32 %v354, %v368
      %v391 = vmul.f32 %v355, %v368
      %v392 = vmul.f32 %v356, %v368
      %v393 = vmul.f32 %v357, %v368
      %v394 = vmul.f32 %v358, %v368
      %v395 = vmul.f32 %v359, %v368
      %v396 = vmul.f32 %v360, %v368
      %v397 = vmul.f32 %v361, %v368
      %v398 = vmul.f32 %v362, %v368
      %v399 = vmul.f32 %v363, %v368
      %v400 = vmul.f32 %v364, %v368
      %v401 = vadd.f32 %v301, %v369
      %v402 = vadd.f32 %v302, %v370
      %v403 = vadd.f32 %v303, %v371
      %v404 = vadd.f32 %v304, %v372
      %v405 = vadd.f32 %v305, %v373
      %v406 = vadd.f32 %v306, %v374
      %v407 = vadd.f32 %v307, %v375
      %v408 = vadd.f32 %v308, %v376
      %v409 = vadd.f32 %v309, %v377
      %v410 = vadd.f32 %v310, %v378
      %v411 = vadd.f32 %v311, %v379
      %v412 = vadd.f32 %v312, %v380
      %v413 = vadd.f32 %v313, %v381
      %v414 = vadd.f32 %v314, %v382
      %v415 = vadd.f32 %v315, %v383
      %v416 = vadd.f32 %v316, %v384
      %v417 = vadd.f32 %v317, %v385
      %v418 = vadd.f32 %v318, %v386
      %v419 = vadd.f32 %v319, %v387
      %v420 = vadd.f32 %v320, %v388
      %v421 = vadd.f32 %v321, %v389
      %v422 = vadd.f32 %v322, %v390
      %v423 = vadd.f32 %v323, %v391
      %v424 = vadd.f32 %v324, %v392
      %v425 = vadd.f32 %v325, %v393
      %v426 = vadd.f32 %v326, %v394
      %v427 = vadd.f32 %v327, %v395
      %v428 = vadd.f32 %v328, %v396
      %v429 = vadd.f32 %v329, %v397
      %v430 = vadd.f32 %v330, %v398
      %v431 = vadd.f32 %v331, %v399
      %v432 = vadd.f32 %v332, %v400
      %v433 = vld [vmem:[%s253 + $0x2] sm:$0xff]
      %v434 = vld [vmem:[%s253 + $0xa] sm:$0xff]
      %v435 = vld [vmem:[%s253 + $0x1a] sm:$0xff]
      %v436 = vld [vmem:[%s253 + $0x22] sm:$0xff]
      %v437 = vld [vmem:[%s253 + $0x32] sm:$0xff]
      %v438 = vld [vmem:[%s253 + $0x3a] sm:$0xff]
      %v439 = vld [vmem:[%s253 + $0x4a] sm:$0xff]
      %v440 = vld [vmem:[%s253 + $0x52] sm:$0xff]
      %v441 = vld [vmem:[%s253 + $0x62] sm:$0xff]
      %v442 = vld [vmem:[%s253 + $0x6a] sm:$0xff]
      %v443 = vld [vmem:[%s253 + $0x7a] sm:$0xff]
      %v444 = vld [vmem:[%s253 + $0x82] sm:$0xff]
      %v445 = vld [vmem:[%s253 + $0x92] sm:$0xff]
      %v446 = vld [vmem:[%s253 + $0x9a] sm:$0xff]
      %v447 = vld [vmem:[%s253 + $0xaa] sm:$0xff]
      %v448 = vld [vmem:[%s253 + $0xb2] sm:$0xff]
      %v449 = vld [vmem:[%s253 + $0xc2] sm:$0xff]
      %v450 = vld [vmem:[%s253 + $0xca] sm:$0xff]
      %v451 = vld [vmem:[%s253 + $0xda] sm:$0xff]
      %v452 = vld [vmem:[%s253 + $0xe2] sm:$0xff]
      %v453 = vld [vmem:[%s253 + $0xf2] sm:$0xff]
      %v454 = vld [vmem:[%s253 + $0xfa] sm:$0xff]
      %v455 = vld [vmem:[%s253 + $0x10a] sm:$0xff]
      %v456 = vld [vmem:[%s253 + $0x112] sm:$0xff]
      %v457 = vld [vmem:[%s253 + $0x122] sm:$0xff]
      %v458 = vld [vmem:[%s253 + $0x12a] sm:$0xff]
      %v459 = vld [vmem:[%s253 + $0x13a] sm:$0xff]
      %v460 = vld [vmem:[%s253 + $0x142] sm:$0xff]
      %v461 = vld [vmem:[%s253 + $0x152] sm:$0xff]
      %v462 = vld [vmem:[%s253 + $0x15a] sm:$0xff]
      %v463 = vld [vmem:[%s253 + $0x16a] sm:$0xff]
      %v464 = vld [vmem:[%s253 + $0x172] sm:$0xff]
      %v465 = vlaneseq
      %v466 = vshrl.u32 %v465, 7
      %v467 = vsub.s32 2, %v466
      %v468 = vrot.slane %v263, %v467
      %v469 = vmul.f32 %v433, %v468
      %v470 = vmul.f32 %v434, %v468
      %v471 = vmul.f32 %v435, %v468
      %v472 = vmul.f32 %v436, %v468
      %v473 = vmul.f32 %v437, %v468
      %v474 = vmul.f32 %v438, %v468
      %v475 = vmul.f32 %v439, %v468
      %v476 = vmul.f32 %v440, %v468
      %v477 = vmul.f32 %v441, %v468
      %v478 = vmul.f32 %v442, %v468
      %v479 = vmul.f32 %v443, %v468
      %v480 = vmul.f32 %v444, %v468
      %v481 = vmul.f32 %v445, %v468
      %v482 = vmul.f32 %v446, %v468
      %v483 = vmul.f32 %v447, %v468
      %v484 = vmul.f32 %v448, %v468
      %v485 = vmul.f32 %v449, %v468
      %v486 = vmul.f32 %v450, %v468
      %v487 = vmul.f32 %v451, %v468
      %v488 = vmul.f32 %v452, %v468
      %v489 = vmul.f32 %v453, %v468
      %v490 = vmul.f32 %v454, %v468
      %v491 = vmul.f32 %v455, %v468
      %v492 = vmul.f32 %v456, %v468
      %v493 = vmul.f32 %v457, %v468
      %v494 = vmul.f32 %v458, %v468
      %v495 = vmul.f32 %v459, %v468
      %v496 = vmul.f32 %v460, %v468
      %v497 = vmul.f32 %v461, %v468
      %v498 = vmul.f32 %v462, %v468
      %v499 = vmul.f32 %v463, %v468
      %v500 = vmul.f32 %v464, %v468
      %v501 = vadd.f32 %v401, %v469
      %v502 = vadd.f32 %v402, %v470
      %v503 = vadd.f32 %v403, %v471
      %v504 = vadd.f32 %v404, %v472
      %v505 = vadd.f32 %v405, %v473
      %v506 = vadd.f32 %v406, %v474
      %v507 = vadd.f32 %v407, %v475
      %v508 = vadd.f32 %v408, %v476
      %v509 = vadd.f32 %v409, %v477
      %v510 = vadd.f32 %v410, %v478
      %v511 = vadd.f32 %v411, %v479
      %v512 = vadd.f32 %v412, %v480
      %v513 = vadd.f32 %v413, %v481
      %v514 = vadd.f32 %v414, %v482
      %v515 = vadd.f32 %v415, %v483
      %v516 = vadd.f32 %v416, %v484
      %v517 = vadd.f32 %v417, %v485
      %v518 = vadd.f32 %v418, %v486
      %v519 = vadd.f32 %v419, %v487
      %v520 = vadd.f32 %v420, %v488
      %v521 = vadd.f32 %v421, %v489
      %v522 = vadd.f32 %v422, %v490
      %v523 = vadd.f32 %v423, %v491
      %v524 = vadd.f32 %v424, %v492
      %v525 = vadd.f32 %v425, %v493
      %v526 = vadd.f32 %v426, %v494
      %v527 = vadd.f32 %v427, %v495
      %v528 = vadd.f32 %v428, %v496
      %v529 = vadd.f32 %v429, %v497
      %v530 = vadd.f32 %v430, %v498
      %v531 = vadd.f32 %v431, %v499
      %v532 = vadd.f32 %v432, %v500
      %s533 = scalar_lea.vmem %s253, 24
      %v534 = vld [vmem:[%s533] sm:$0xff]
      %v535 = vld [vmem:[%s533 + $0x8] sm:$0xff]
      %v536 = vld [vmem:[%s533 + $0x18] sm:$0xff]
      %v537 = vld [vmem:[%s533 + $0x20] sm:$0xff]
      %v538 = vld [vmem:[%s533 + $0x30] sm:$0xff]
      %v539 = vld [vmem:[%s533 + $0x38] sm:$0xff]
      %v540 = vld [vmem:[%s533 + $0x48] sm:$0xff]
      %v541 = vld [vmem:[%s533 + $0x50] sm:$0xff]
      %v542 = vld [vmem:[%s533 + $0x60] sm:$0xff]
      %v543 = vld [vmem:[%s533 + $0x68] sm:$0xff]
      %v544 = vld [vmem:[%s533 + $0x78] sm:$0xff]
      %v545 = vld [vmem:[%s533 + $0x80] sm:$0xff]
      %v546 = vld [vmem:[%s533 + $0x90] sm:$0xff]
      %v547 = vld [vmem:[%s533 + $0x98] sm:$0xff]
      %v548 = vld [vmem:[%s533 + $0xa8] sm:$0xff]
      %v549 = vld [vmem:[%s533 + $0xb0] sm:$0xff]
      %v550 = vld [vmem:[%s533 + $0xc0] sm:$0xff]
      %v551 = vld [vmem:[%s533 + $0xc8] sm:$0xff]
      %v552 = vld [vmem:[%s533 + $0xd8] sm:$0xff]
      %v553 = vld [vmem:[%s533 + $0xe0] sm:$0xff]
      %v554 = vld [vmem:[%s533 + $0xf0] sm:$0xff]
      %v555 = vld [vmem:[%s533 + $0xf8] sm:$0xff]
      %v556 = vld [vmem:[%s533 + $0x108] sm:$0xff]
      %v557 = vld [vmem:[%s533 + $0x110] sm:$0xff]
      %v558 = vld [vmem:[%s533 + $0x120] sm:$0xff]
      %v559 = vld [vmem:[%s533 + $0x128] sm:$0xff]
      %v560 = vld [vmem:[%s533 + $0x138] sm:$0xff]
      %v561 = vld [vmem:[%s533 + $0x140] sm:$0xff]
      %v562 = vld [vmem:[%s533 + $0x150] sm:$0xff]
      %v563 = vld [vmem:[%s533 + $0x158] sm:$0xff]
      %v564 = vld [vmem:[%s533 + $0x168] sm:$0xff]
      %v565 = vld [vmem:[%s533 + $0x170] sm:$0xff]
      %v566 = vlaneseq
      %v567 = vshrl.u32 %v566, 7
      %v568 = vsub.s32 3, %v567
      %v569 = vrot.slane %v263, %v568
      %v570 = vmul.f32 %v534, %v569
      %v571 = vmul.f32 %v535, %v569
      %v572 = vmul.f32 %v536, %v569
      %v573 = vmul.f32 %v537, %v569
      %v574 = vmul.f32 %v538, %v569
      %v575 = vmul.f32 %v539, %v569
      %v576 = vmul.f32 %v540, %v569
      %v577 = vmul.f32 %v541, %v569
      %v578 = vmul.f32 %v542, %v569
      %v579 = vmul.f32 %v543, %v569
      %v580 = vmul.f32 %v544, %v569
      %v581 = vmul.f32 %v545, %v569
      %v582 = vmul.f32 %v546, %v569
      %v583 = vmul.f32 %v547, %v569
      %v584 = vmul.f32 %v548, %v569
      %v585 = vmul.f32 %v549, %v569
      %v586 = vmul.f32 %v550, %v569
      %v587 = vmul.f32 %v551, %v569
      %v588 = vmul.f32 %v552, %v569
      %v589 = vmul.f32 %v553, %v569
      %v590 = vmul.f32 %v554, %v569
      %v591 = vmul.f32 %v555, %v569
      %v592 = vmul.f32 %v556, %v569
      %v593 = vmul.f32 %v557, %v569
      %v594 = vmul.f32 %v558, %v569
      %v595 = vmul.f32 %v559, %v569
      %v596 = vmul.f32 %v560, %v569
      %v597 = vmul.f32 %v561, %v569
      %v598 = vmul.f32 %v562, %v569
      %v599 = vmul.f32 %v563, %v569
      %v600 = vmul.f32 %v564, %v569
      %v601 = vmul.f32 %v565, %v569
      %v602 = vadd.f32 %v501, %v570
      %v603 = vadd.f32 %v502, %v571
      %v604 = vadd.f32 %v503, %v572
      %v605 = vadd.f32 %v504, %v573
      %v606 = vadd.f32 %v505, %v574
      %v607 = vadd.f32 %v506, %v575
      %v608 = vadd.f32 %v507, %v576
      %v609 = vadd.f32 %v508, %v577
      %v610 = vadd.f32 %v509, %v578
      %v611 = vadd.f32 %v510, %v579
      %v612 = vadd.f32 %v511, %v580
      %v613 = vadd.f32 %v512, %v581
      %v614 = vadd.f32 %v513, %v582
      %v615 = vadd.f32 %v514, %v583
      %v616 = vadd.f32 %v515, %v584
      %v617 = vadd.f32 %v516, %v585
      %v618 = vadd.f32 %v517, %v586
      %v619 = vadd.f32 %v518, %v587
      %v620 = vadd.f32 %v519, %v588
      %v621 = vadd.f32 %v520, %v589
      %v622 = vadd.f32 %v521, %v590
      %v623 = vadd.f32 %v522, %v591
      %v624 = vadd.f32 %v523, %v592
      %v625 = vadd.f32 %v524, %v593
      %v626 = vadd.f32 %v525, %v594
      %v627 = vadd.f32 %v526, %v595
      %v628 = vadd.f32 %v527, %v596
      %v629 = vadd.f32 %v528, %v597
      %v630 = vadd.f32 %v529, %v598
      %v631 = vadd.f32 %v530, %v599
      %v632 = vadd.f32 %v531, %v600
      %v633 = vadd.f32 %v532, %v601
      %v634 = vld [vmem:[%s533 + $0x1] sm:$0xff]
      %v635 = vld [vmem:[%s533 + $0x9] sm:$0xff]
      %v636 = vld [vmem:[%s533 + $0x19] sm:$0xff]
      %v637 = vld [vmem:[%s533 + $0x21] sm:$0xff]
      %v638 = vld [vmem:[%s533 + $0x31] sm:$0xff]
      %v639 = vld [vmem:[%s533 + $0x39] sm:$0xff]
      %v640 = vld [vmem:[%s533 + $0x49] sm:$0xff]
      %v641 = vld [vmem:[%s533 + $0x51] sm:$0xff]
      %v642 = vld [vmem:[%s533 + $0x61] sm:$0xff]
      %v643 = vld [vmem:[%s533 + $0x69] sm:$0xff]
      %v644 = vld [vmem:[%s533 + $0x79] sm:$0xff]
      %v645 = vld [vmem:[%s533 + $0x81] sm:$0xff]
      %v646 = vld [vmem:[%s533 + $0x91] sm:$0xff]
      %v647 = vld [vmem:[%s533 + $0x99] sm:$0xff]
      %v648 = vld [vmem:[%s533 + $0xa9] sm:$0xff]
      %v649 = vld [vmem:[%s533 + $0xb1] sm:$0xff]
      %v650 = vld [vmem:[%s533 + $0xc1] sm:$0xff]
      %v651 = vld [vmem:[%s533 + $0xc9] sm:$0xff]
      %v652 = vld [vmem:[%s533 + $0xd9] sm:$0xff]
      %v653 = vld [vmem:[%s533 + $0xe1] sm:$0xff]
      %v654 = vld [vmem:[%s533 + $0xf1] sm:$0xff]
      %v655 = vld [vmem:[%s533 + $0xf9] sm:$0xff]
      %v656 = vld [vmem:[%s533 + $0x109] sm:$0xff]
      %v657 = vld [vmem:[%s533 + $0x111] sm:$0xff]
      %v658 = vld [vmem:[%s533 + $0x121] sm:$0xff]
      %v659 = vld [vmem:[%s533 + $0x129] sm:$0xff]
      %v660 = vld [vmem:[%s533 + $0x139] sm:$0xff]
      %v661 = vld [vmem:[%s533 + $0x141] sm:$0xff]
      %v662 = vld [vmem:[%s533 + $0x151] sm:$0xff]
      %v663 = vld [vmem:[%s533 + $0x159] sm:$0xff]
      %v664 = vld [vmem:[%s533 + $0x169] sm:$0xff]
      %v665 = vld [vmem:[%s533 + $0x171] sm:$0xff]
      %v666 = vlaneseq
      %v667 = vshrl.u32 %v666, 7
      %v668 = vsub.s32 4, %v667
      %v669 = vrot.slane %v263, %v668
      %v670 = vmul.f32 %v634, %v669
      %v671 = vmul.f32 %v635, %v669
      %v672 = vmul.f32 %v636, %v669
      %v673 = vmul.f32 %v637, %v669
      %v674 = vmul.f32 %v638, %v669
      %v675 = vmul.f32 %v639, %v669
      %v676 = vmul.f32 %v640, %v669
      %v677 = vmul.f32 %v641, %v669
      %v678 = vmul.f32 %v642, %v669
      %v679 = vmul.f32 %v643, %v669
      %v680 = vmul.f32 %v644, %v669
      %v681 = vmul.f32 %v645, %v669
      %v682 = vmul.f32 %v646, %v669
      %v683 = vmul.f32 %v647, %v669
      %v684 = vmul.f32 %v648, %v669
      %v685 = vmul.f32 %v649, %v669
      %v686 = vmul.f32 %v650, %v669
      %v687 = vmul.f32 %v651, %v669
      %v688 = vmul.f32 %v652, %v669
      %v689 = vmul.f32 %v653, %v669
      %v690 = vmul.f32 %v654, %v669
      %v691 = vmul.f32 %v655, %v669
      %v692 = vmul.f32 %v656, %v669
      %v693 = vmul.f32 %v657, %v669
      %v694 = vmul.f32 %v658, %v669
      %v695 = vmul.f32 %v659, %v669
      %v696 = vmul.f32 %v660, %v669
      %v697 = vmul.f32 %v661, %v669
      %v698 = vmul.f32 %v662, %v669
      %v699 = vmul.f32 %v663, %v669
      %v700 = vmul.f32 %v664, %v669
      %v701 = vmul.f32 %v665, %v669
      %v702 = vadd.f32 %v602, %v670
      %v703 = vadd.f32 %v603, %v671
      %v704 = vadd.f32 %v604, %v672
      %v705 = vadd.f32 %v605, %v673
      %v706 = vadd.f32 %v606, %v674
      %v707 = vadd.f32 %v607, %v675
      %v708 = vadd.f32 %v608, %v676
      %v709 = vadd.f32 %v609, %v677
      %v710 = vadd.f32 %v610, %v678
      %v711 = vadd.f32 %v611, %v679
      %v712 = vadd.f32 %v612, %v680
      %v713 = vadd.f32 %v613, %v681
      %v714 = vadd.f32 %v614, %v682
      %v715 = vadd.f32 %v615, %v683
      %v716 = vadd.f32 %v616, %v684
      %v717 = vadd.f32 %v617, %v685
      %v718 = vadd.f32 %v618, %v686
      %v719 = vadd.f32 %v619, %v687
      %v720 = vadd.f32 %v620, %v688
      %v721 = vadd.f32 %v621, %v689
      %v722 = vadd.f32 %v622, %v690
      %v723 = vadd.f32 %v623, %v691
      %v724 = vadd.f32 %v624, %v692
      %v725 = vadd.f32 %v625, %v693
      %v726 = vadd.f32 %v626, %v694
      %v727 = vadd.f32 %v627, %v695
      %v728 = vadd.f32 %v628, %v696
      %v729 = vadd.f32 %v629, %v697
      %v730 = vadd.f32 %v630, %v698
      %v731 = vadd.f32 %v631, %v699
      %v732 = vadd.f32 %v632, %v700
      %v733 = vadd.f32 %v633, %v701
      %v734 = vld [vmem:[%s533 + $0x2] sm:$0xff]
      %v735 = vld [vmem:[%s533 + $0xa] sm:$0xff]
      %v736 = vld [vmem:[%s533 + $0x1a] sm:$0xff]
      %v737 = vld [vmem:[%s533 + $0x22] sm:$0xff]
      %v738 = vld [vmem:[%s533 + $0x32] sm:$0xff]
      %v739 = vld [vmem:[%s533 + $0x3a] sm:$0xff]
      %v740 = vld [vmem:[%s533 + $0x4a] sm:$0xff]
      %v741 = vld [vmem:[%s533 + $0x52] sm:$0xff]
      %v742 = vld [vmem:[%s533 + $0x62] sm:$0xff]
      %v743 = vld [vmem:[%s533 + $0x6a] sm:$0xff]
      %v744 = vld [vmem:[%s533 + $0x7a] sm:$0xff]
      %v745 = vld [vmem:[%s533 + $0x82] sm:$0xff]
      %v746 = vld [vmem:[%s533 + $0x92] sm:$0xff]
      %v747 = vld [vmem:[%s533 + $0x9a] sm:$0xff]
      %v748 = vld [vmem:[%s533 + $0xaa] sm:$0xff]
      %v749 = vld [vmem:[%s533 + $0xb2] sm:$0xff]
      %v750 = vld [vmem:[%s533 + $0xc2] sm:$0xff]
      %v751 = vld [vmem:[%s533 + $0xca] sm:$0xff]
      %v752 = vld [vmem:[%s533 + $0xda] sm:$0xff]
      %v753 = vld [vmem:[%s533 + $0xe2] sm:$0xff]
      %v754 = vld [vmem:[%s533 + $0xf2] sm:$0xff]
      %v755 = vld [vmem:[%s533 + $0xfa] sm:$0xff]
      %v756 = vld [vmem:[%s533 + $0x10a] sm:$0xff]
      %v757 = vld [vmem:[%s533 + $0x112] sm:$0xff]
      %v758 = vld [vmem:[%s533 + $0x122] sm:$0xff]
      %v759 = vld [vmem:[%s533 + $0x12a] sm:$0xff]
      %v760 = vld [vmem:[%s533 + $0x13a] sm:$0xff]
      %v761 = vld [vmem:[%s533 + $0x142] sm:$0xff]
      %v762 = vld [vmem:[%s533 + $0x152] sm:$0xff]
      %v763 = vld [vmem:[%s533 + $0x15a] sm:$0xff]
      %v764 = vld [vmem:[%s533 + $0x16a] sm:$0xff]
      %v765 = vld [vmem:[%s533 + $0x172] sm:$0xff]
      %v766 = vlaneseq
      %v767 = vshrl.u32 %v766, 7
      %v768 = vsub.s32 5, %v767
      %v769 = vrot.slane %v263, %v768
      %v770 = vmul.f32 %v734, %v769
      %v771 = vmul.f32 %v735, %v769
      %v772 = vmul.f32 %v736, %v769
      %v773 = vmul.f32 %v737, %v769
      %v774 = vmul.f32 %v738, %v769
      %v775 = vmul.f32 %v739, %v769
      %v776 = vmul.f32 %v740, %v769
      %v777 = vmul.f32 %v741, %v769
      %v778 = vmul.f32 %v742, %v769
      %v779 = vmul.f32 %v743, %v769
      %v780 = vmul.f32 %v744, %v769
      %v781 = vmul.f32 %v745, %v769
      %v782 = vmul.f32 %v746, %v769
      %v783 = vmul.f32 %v747, %v769
      %v784 = vmul.f32 %v748, %v769
      %v785 = vmul.f32 %v749, %v769
      %v786 = vmul.f32 %v750, %v769
      %v787 = vmul.f32 %v751, %v769
      %v788 = vmul.f32 %v752, %v769
      %v789 = vmul.f32 %v753, %v769
      %v790 = vmul.f32 %v754, %v769
      %v791 = vmul.f32 %v755, %v769
      %v792 = vmul.f32 %v756, %v769
      %v793 = vmul.f32 %v757, %v769
      %v794 = vmul.f32 %v758, %v769
      %v795 = vmul.f32 %v759, %v769
      %v796 = vmul.f32 %v760, %v769
      %v797 = vmul.f32 %v761, %v769
      %v798 = vmul.f32 %v762, %v769
      %v799 = vmul.f32 %v763, %v769
      %v800 = vmul.f32 %v764, %v769
      %v801 = vmul.f32 %v765, %v769
      %v802 = vadd.f32 %v702, %v770
      %v803 = vadd.f32 %v703, %v771
      %v804 = vadd.f32 %v704, %v772
      %v805 = vadd.f32 %v705, %v773
      %v806 = vadd.f32 %v706, %v774
      %v807 = vadd.f32 %v707, %v775
      %v808 = vadd.f32 %v708, %v776
      %v809 = vadd.f32 %v709, %v777
      %v810 = vadd.f32 %v710, %v778
      %v811 = vadd.f32 %v711, %v779
      %v812 = vadd.f32 %v712, %v780
      %v813 = vadd.f32 %v713, %v781
      %v814 = vadd.f32 %v714, %v782
      %v815 = vadd.f32 %v715, %v783
      %v816 = vadd.f32 %v716, %v784
      %v817 = vadd.f32 %v717, %v785
      %v818 = vadd.f32 %v718, %v786
      %v819 = vadd.f32 %v719, %v787
      %v820 = vadd.f32 %v720, %v788
      %v821 = vadd.f32 %v721, %v789
      %v822 = vadd.f32 %v722, %v790
      %v823 = vadd.f32 %v723, %v791
      %v824 = vadd.f32 %v724, %v792
      %v825 = vadd.f32 %v725, %v793
      %v826 = vadd.f32 %v726, %v794
      %v827 = vadd.f32 %v727, %v795
      %v828 = vadd.f32 %v728, %v796
      %v829 = vadd.f32 %v729, %v797
      %v830 = vadd.f32 %v730, %v798
      %v831 = vadd.f32 %v731, %v799
      %v832 = vadd.f32 %v732, %v800
      %v833 = vadd.f32 %v733, %v801
      %s834 = scalar_lea.vmem %s253, 48
      %v835 = vld [vmem:[%s834] sm:$0xff]
      %v836 = vld [vmem:[%s834 + $0x8] sm:$0xff]
      %v837 = vld [vmem:[%s834 + $0x18] sm:$0xff]
      %v838 = vld [vmem:[%s834 + $0x20] sm:$0xff]
      %v839 = vld [vmem:[%s834 + $0x30] sm:$0xff]
      %v840 = vld [vmem:[%s834 + $0x38] sm:$0xff]
      %v841 = vld [vmem:[%s834 + $0x48] sm:$0xff]
      %v842 = vld [vmem:[%s834 + $0x50] sm:$0xff]
      %v843 = vld [vmem:[%s834 + $0x60] sm:$0xff]
      %v844 = vld [vmem:[%s834 + $0x68] sm:$0xff]
      %v845 = vld [vmem:[%s834 + $0x78] sm:$0xff]
      %v846 = vld [vmem:[%s834 + $0x80] sm:$0xff]
      %v847 = vld [vmem:[%s834 + $0x90] sm:$0xff]
      %v848 = vld [vmem:[%s834 + $0x98] sm:$0xff]
      %v849 = vld [vmem:[%s834 + $0xa8] sm:$0xff]
      %v850 = vld [vmem:[%s834 + $0xb0] sm:$0xff]
      %v851 = vld [vmem:[%s834 + $0xc0] sm:$0xff]
      %v852 = vld [vmem:[%s834 + $0xc8] sm:$0xff]
      %v853 = vld [vmem:[%s834 + $0xd8] sm:$0xff]
      %v854 = vld [vmem:[%s834 + $0xe0] sm:$0xff]
      %v855 = vld [vmem:[%s834 + $0xf0] sm:$0xff]
      %v856 = vld [vmem:[%s834 + $0xf8] sm:$0xff]
      %v857 = vld [vmem:[%s834 + $0x108] sm:$0xff]
      %v858 = vld [vmem:[%s834 + $0x110] sm:$0xff]
      %v859 = vld [vmem:[%s834 + $0x120] sm:$0xff]
      %v860 = vld [vmem:[%s834 + $0x128] sm:$0xff]
      %v861 = vld [vmem:[%s834 + $0x138] sm:$0xff]
      %v862 = vld [vmem:[%s834 + $0x140] sm:$0xff]
      %v863 = vld [vmem:[%s834 + $0x150] sm:$0xff]
      %v864 = vld [vmem:[%s834 + $0x158] sm:$0xff]
      %v865 = vld [vmem:[%s834 + $0x168] sm:$0xff]
      %v866 = vld [vmem:[%s834 + $0x170] sm:$0xff]
      %v867 = vlaneseq
      %v868 = vshrl.u32 %v867, 7
      %v869 = vsub.s32 6, %v868
      %v870 = vrot.slane %v263, %v869
      %v871 = vmul.f32 %v835, %v870
      %v872 = vmul.f32 %v836, %v870
      %v873 = vmul.f32 %v837, %v870
      %v874 = vmul.f32 %v838, %v870
      %v875 = vmul.f32 %v839, %v870
      %v876 = vmul.f32 %v840, %v870
      %v877 = vmul.f32 %v841, %v870
      %v878 = vmul.f32 %v842, %v870
      %v879 = vmul.f32 %v843, %v870
      %v880 = vmul.f32 %v844, %v870
      %v881 = vmul.f32 %v845, %v870
      %v882 = vmul.f32 %v846, %v870
      %v883 = vmul.f32 %v847, %v870
      %v884 = vmul.f32 %v848, %v870
      %v885 = vmul.f32 %v849, %v870
      %v886 = vmul.f32 %v850, %v870
      %v887 = vmul.f32 %v851, %v870
      %v888 = vmul.f32 %v852, %v870
      %v889 = vmul.f32 %v853, %v870
      %v890 = vmul.f32 %v854, %v870
      %v891 = vmul.f32 %v855, %v870
      %v892 = vmul.f32 %v856, %v870
      %v893 = vmul.f32 %v857, %v870
      %v894 = vmul.f32 %v858, %v870
      %v895 = vmul.f32 %v859, %v870
      %v896 = vmul.f32 %v860, %v870
      %v897 = vmul.f32 %v861, %v870
      %v898 = vmul.f32 %v862, %v870
      %v899 = vmul.f32 %v863, %v870
      %v900 = vmul.f32 %v864, %v870
      %v901 = vmul.f32 %v865, %v870
      %v902 = vmul.f32 %v866, %v870
      %v903 = vadd.f32 %v802, %v871
      %v904 = vadd.f32 %v803, %v872
      %v905 = vadd.f32 %v804, %v873
      %v906 = vadd.f32 %v805, %v874
      %v907 = vadd.f32 %v806, %v875
      %v908 = vadd.f32 %v807, %v876
      %v909 = vadd.f32 %v808, %v877
      %v910 = vadd.f32 %v809, %v878
      %v911 = vadd.f32 %v810, %v879
      %v912 = vadd.f32 %v811, %v880
      %v913 = vadd.f32 %v812, %v881
      %v914 = vadd.f32 %v813, %v882
      %v915 = vadd.f32 %v814, %v883
      %v916 = vadd.f32 %v815, %v884
      %v917 = vadd.f32 %v816, %v885
      %v918 = vadd.f32 %v817, %v886
      %v919 = vadd.f32 %v818, %v887
      %v920 = vadd.f32 %v819, %v888
      %v921 = vadd.f32 %v820, %v889
      %v922 = vadd.f32 %v821, %v890
      %v923 = vadd.f32 %v822, %v891
      %v924 = vadd.f32 %v823, %v892
      %v925 = vadd.f32 %v824, %v893
      %v926 = vadd.f32 %v825, %v894
      %v927 = vadd.f32 %v826, %v895
      %v928 = vadd.f32 %v827, %v896
      %v929 = vadd.f32 %v828, %v897
      %v930 = vadd.f32 %v829, %v898
      %v931 = vadd.f32 %v830, %v899
      %v932 = vadd.f32 %v831, %v900
      %v933 = vadd.f32 %v832, %v901
      %v934 = vadd.f32 %v833, %v902
      %v935 = vld [vmem:[%s834 + $0x1] sm:$0xff]
      %v936 = vld [vmem:[%s834 + $0x9] sm:$0xff]
      %v937 = vld [vmem:[%s834 + $0x19] sm:$0xff]
      %v938 = vld [vmem:[%s834 + $0x21] sm:$0xff]
      %v939 = vld [vmem:[%s834 + $0x31] sm:$0xff]
      %v940 = vld [vmem:[%s834 + $0x39] sm:$0xff]
      %v941 = vld [vmem:[%s834 + $0x49] sm:$0xff]
      %v942 = vld [vmem:[%s834 + $0x51] sm:$0xff]
      %v943 = vld [vmem:[%s834 + $0x61] sm:$0xff]
      %v944 = vld [vmem:[%s834 + $0x69] sm:$0xff]
      %v945 = vld [vmem:[%s834 + $0x79] sm:$0xff]
      %v946 = vld [vmem:[%s834 + $0x81] sm:$0xff]
      %v947 = vld [vmem:[%s834 + $0x91] sm:$0xff]
      %v948 = vld [vmem:[%s834 + $0x99] sm:$0xff]
      %v949 = vld [vmem:[%s834 + $0xa9] sm:$0xff]
      %v950 = vld [vmem:[%s834 + $0xb1] sm:$0xff]
      %v951 = vld [vmem:[%s834 + $0xc1] sm:$0xff]
      %v952 = vld [vmem:[%s834 + $0xc9] sm:$0xff]
      %v953 = vld [vmem:[%s834 + $0xd9] sm:$0xff]
      %v954 = vld [vmem:[%s834 + $0xe1] sm:$0xff]
      %v955 = vld [vmem:[%s834 + $0xf1] sm:$0xff]
      %v956 = vld [vmem:[%s834 + $0xf9] sm:$0xff]
      %v957 = vld [vmem:[%s834 + $0x109] sm:$0xff]
      %v958 = vld [vmem:[%s834 + $0x111] sm:$0xff]
      %v959 = vld [vmem:[%s834 + $0x121] sm:$0xff]
      %v960 = vld [vmem:[%s834 + $0x129] sm:$0xff]
      %v961 = vld [vmem:[%s834 + $0x139] sm:$0xff]
      %v962 = vld [vmem:[%s834 + $0x141] sm:$0xff]
      %v963 = vld [vmem:[%s834 + $0x151] sm:$0xff]
      %v964 = vld [vmem:[%s834 + $0x159] sm:$0xff]
      %v965 = vld [vmem:[%s834 + $0x169] sm:$0xff]
      %v966 = vld [vmem:[%s834 + $0x171] sm:$0xff]
      %v967 = vlaneseq
      %v968 = vshrl.u32 %v967, 7
      %v969 = vsub.s32 7, %v968
      %v970 = vrot.slane %v263, %v969
      %v971 = vmul.f32 %v935, %v970
      %v972 = vmul.f32 %v936, %v970
      %v973 = vmul.f32 %v937, %v970
      %v974 = vmul.f32 %v938, %v970
      %v975 = vmul.f32 %v939, %v970
      %v976 = vmul.f32 %v940, %v970
      %v977 = vmul.f32 %v941, %v970
      %v978 = vmul.f32 %v942, %v970
      %v979 = vmul.f32 %v943, %v970
      %v980 = vmul.f32 %v944, %v970
      %v981 = vmul.f32 %v945, %v970
      %v982 = vmul.f32 %v946, %v970
      %v983 = vmul.f32 %v947, %v970
      %v984 = vmul.f32 %v948, %v970
      %v985 = vmul.f32 %v949, %v970
      %v986 = vmul.f32 %v950, %v970
      %v987 = vmul.f32 %v951, %v970
      %v988 = vmul.f32 %v952, %v970
      %v989 = vmul.f32 %v953, %v970
      %v990 = vmul.f32 %v954, %v970
      %v991 = vmul.f32 %v955, %v970
      %v992 = vmul.f32 %v956, %v970
      %v993 = vmul.f32 %v957, %v970
      %v994 = vmul.f32 %v958, %v970
      %v995 = vmul.f32 %v959, %v970
      %v996 = vmul.f32 %v960, %v970
      %v997 = vmul.f32 %v961, %v970
      %v998 = vmul.f32 %v962, %v970
      %v999 = vmul.f32 %v963, %v970
      %v1000 = vmul.f32 %v964, %v970
      %v1001 = vmul.f32 %v965, %v970
      %v1002 = vmul.f32 %v966, %v970
      %v1003 = vadd.f32 %v903, %v971
      %v1004 = vadd.f32 %v904, %v972
      %v1005 = vadd.f32 %v905, %v973
      %v1006 = vadd.f32 %v906, %v974
      %v1007 = vadd.f32 %v907, %v975
      %v1008 = vadd.f32 %v908, %v976
      %v1009 = vadd.f32 %v909, %v977
      %v1010 = vadd.f32 %v910, %v978
      %v1011 = vadd.f32 %v911, %v979
      %v1012 = vadd.f32 %v912, %v980
      %v1013 = vadd.f32 %v913, %v981
      %v1014 = vadd.f32 %v914, %v982
      %v1015 = vadd.f32 %v915, %v983
      %v1016 = vadd.f32 %v916, %v984
      %v1017 = vadd.f32 %v917, %v985
      %v1018 = vadd.f32 %v918, %v986
      %v1019 = vadd.f32 %v919, %v987
      %v1020 = vadd.f32 %v920, %v988
      %v1021 = vadd.f32 %v921, %v989
      %v1022 = vadd.f32 %v922, %v990
      %v1023 = vadd.f32 %v923, %v991
      %v1024 = vadd.f32 %v924, %v992
      %v1025 = vadd.f32 %v925, %v993
      %v1026 = vadd.f32 %v926, %v994
      %v1027 = vadd.f32 %v927, %v995
      %v1028 = vadd.f32 %v928, %v996
      %v1029 = vadd.f32 %v929, %v997
      %v1030 = vadd.f32 %v930, %v998
      %v1031 = vadd.f32 %v931, %v999
      %v1032 = vadd.f32 %v932, %v1000
      %v1033 = vadd.f32 %v933, %v1001
      %v1034 = vadd.f32 %v934, %v1002
      %v1035 = vld [vmem:[%s834 + $0x2] sm:$0xff]
      %v1036 = vld [vmem:[%s834 + $0xa] sm:$0xff]
      %v1037 = vld [vmem:[%s834 + $0x1a] sm:$0xff]
      %v1038 = vld [vmem:[%s834 + $0x22] sm:$0xff]
      %v1039 = vld [vmem:[%s834 + $0x32] sm:$0xff]
      %v1040 = vld [vmem:[%s834 + $0x3a] sm:$0xff]
      %v1041 = vld [vmem:[%s834 + $0x4a] sm:$0xff]
      %v1042 = vld [vmem:[%s834 + $0x52] sm:$0xff]
      %v1043 = vld [vmem:[%s834 + $0x62] sm:$0xff]
      %v1044 = vld [vmem:[%s834 + $0x6a] sm:$0xff]
      %v1045 = vld [vmem:[%s834 + $0x7a] sm:$0xff]
      %v1046 = vld [vmem:[%s834 + $0x82] sm:$0xff]
      %v1047 = vld [vmem:[%s834 + $0x92] sm:$0xff]
      %v1048 = vld [vmem:[%s834 + $0x9a] sm:$0xff]
      %v1049 = vld [vmem:[%s834 + $0xaa] sm:$0xff]
      %v1050 = vld [vmem:[%s834 + $0xb2] sm:$0xff]
      %v1051 = vld [vmem:[%s834 + $0xc2] sm:$0xff]
      %v1052 = vld [vmem:[%s834 + $0xca] sm:$0xff]
      %v1053 = vld [vmem:[%s834 + $0xda] sm:$0xff]
      %v1054 = vld [vmem:[%s834 + $0xe2] sm:$0xff]
      %v1055 = vld [vmem:[%s834 + $0xf2] sm:$0xff]
      %v1056 = vld [vmem:[%s834 + $0xfa] sm:$0xff]
      %v1057 = vld [vmem:[%s834 + $0x10a] sm:$0xff]
      %v1058 = vld [vmem:[%s834 + $0x112] sm:$0xff]
      %v1059 = vld [vmem:[%s834 + $0x122] sm:$0xff]
      %v1060 = vld [vmem:[%s834 + $0x12a] sm:$0xff]
      %v1061 = vld [vmem:[%s834 + $0x13a] sm:$0xff]
      %v1062 = vld [vmem:[%s834 + $0x142] sm:$0xff]
      %v1063 = vld [vmem:[%s834 + $0x152] sm:$0xff]
      %v1064 = vld [vmem:[%s834 + $0x15a] sm:$0xff]
      %v1065 = vld [vmem:[%s834 + $0x16a] sm:$0xff]
      %v1066 = vld [vmem:[%s834 + $0x172] sm:$0xff]
      %v1067 = vlaneseq
      %v1068 = vshrl.u32 %v1067, 7
      %v1069 = vsub.s32 0, %v1068
      %v1070 = vrot.slane %v264, %v1069
      %v1071 = vmul.f32 %v1035, %v1070
      %v1072 = vmul.f32 %v1036, %v1070
      %v1073 = vmul.f32 %v1037, %v1070
      %v1074 = vmul.f32 %v1038, %v1070
      %v1075 = vmul.f32 %v1039, %v1070
      %v1076 = vmul.f32 %v1040, %v1070
      %v1077 = vmul.f32 %v1041, %v1070
      %v1078 = vmul.f32 %v1042, %v1070
      %v1079 = vmul.f32 %v1043, %v1070
      %v1080 = vmul.f32 %v1044, %v1070
      %v1081 = vmul.f32 %v1045, %v1070
      %v1082 = vmul.f32 %v1046, %v1070
      %v1083 = vmul.f32 %v1047, %v1070
      %v1084 = vmul.f32 %v1048, %v1070
      %v1085 = vmul.f32 %v1049, %v1070
      %v1086 = vmul.f32 %v1050, %v1070
      %v1087 = vmul.f32 %v1051, %v1070
      %v1088 = vmul.f32 %v1052, %v1070
      %v1089 = vmul.f32 %v1053, %v1070
      %v1090 = vmul.f32 %v1054, %v1070
      %v1091 = vmul.f32 %v1055, %v1070
      %v1092 = vmul.f32 %v1056, %v1070
      %v1093 = vmul.f32 %v1057, %v1070
      %v1094 = vmul.f32 %v1058, %v1070
      %v1095 = vmul.f32 %v1059, %v1070
      %v1096 = vmul.f32 %v1060, %v1070
      %v1097 = vmul.f32 %v1061, %v1070
      %v1098 = vmul.f32 %v1062, %v1070
      %v1099 = vmul.f32 %v1063, %v1070
      %v1100 = vmul.f32 %v1064, %v1070
      %v1101 = vmul.f32 %v1065, %v1070
      %v1102 = vmul.f32 %v1066, %v1070
      %v1103 = vadd.f32 %v1003, %v1071
      %v1104 = vadd.f32 %v1004, %v1072
      %v1105 = vadd.f32 %v1005, %v1073
      %v1106 = vadd.f32 %v1006, %v1074
      %v1107 = vadd.f32 %v1007, %v1075
      %v1108 = vadd.f32 %v1008, %v1076
      %v1109 = vadd.f32 %v1009, %v1077
      %v1110 = vadd.f32 %v1010, %v1078
      %v1111 = vadd.f32 %v1011, %v1079
      %v1112 = vadd.f32 %v1012, %v1080
      %v1113 = vadd.f32 %v1013, %v1081
      %v1114 = vadd.f32 %v1014, %v1082
      %v1115 = vadd.f32 %v1015, %v1083
      %v1116 = vadd.f32 %v1016, %v1084
      %v1117 = vadd.f32 %v1017, %v1085
      %v1118 = vadd.f32 %v1018, %v1086
      %v1119 = vadd.f32 %v1019, %v1087
      %v1120 = vadd.f32 %v1020, %v1088
      %v1121 = vadd.f32 %v1021, %v1089
      %v1122 = vadd.f32 %v1022, %v1090
      %v1123 = vadd.f32 %v1023, %v1091
      %v1124 = vadd.f32 %v1024, %v1092
      %v1125 = vadd.f32 %v1025, %v1093
      %v1126 = vadd.f32 %v1026, %v1094
      %v1127 = vadd.f32 %v1027, %v1095
      %v1128 = vadd.f32 %v1028, %v1096
      %v1129 = vadd.f32 %v1029, %v1097
      %v1130 = vadd.f32 %v1030, %v1098
      %v1131 = vadd.f32 %v1031, %v1099
      %v1132 = vadd.f32 %v1032, %v1100
      %v1133 = vadd.f32 %v1033, %v1101
      %v1134 = vadd.f32 %v1034, %v1102
      %v1135 = vld [vmem:[%s2] sm:$0x1]
      %v1137 = vlaneseq
      %v1138 = vshrl.u32 %v1137, 7
      %v1139 = vsub.s32 0, %v1138
      %v1140 = vrot.slane %v1135, %v1139
      %v1142 = vmul.f32 %v1103, %v1140
      %v1143 = vmul.f32 %v1104, %v1140
      %v1144 = vmul.f32 %v1105, %v1140
      %v1145 = vmul.f32 %v1106, %v1140
      %v1146 = vmul.f32 %v1107, %v1140
      %v1147 = vmul.f32 %v1108, %v1140
      %v1148 = vmul.f32 %v1109, %v1140
      %v1149 = vmul.f32 %v1110, %v1140
      %v1150 = vmul.f32 %v1111, %v1140
      %v1151 = vmul.f32 %v1112, %v1140
      %v1152 = vmul.f32 %v1113, %v1140
      %v1153 = vmul.f32 %v1114, %v1140
      %v1154 = vmul.f32 %v1115, %v1140
      %v1155 = vmul.f32 %v1116, %v1140
      %v1156 = vmul.f32 %v1117, %v1140
      %v1157 = vmul.f32 %v1118, %v1140
      %v1158 = vmul.f32 %v1119, %v1140
      %v1159 = vmul.f32 %v1120, %v1140
      %v1160 = vmul.f32 %v1121, %v1140
      %v1161 = vmul.f32 %v1122, %v1140
      %v1162 = vmul.f32 %v1123, %v1140
      %v1163 = vmul.f32 %v1124, %v1140
      %v1164 = vmul.f32 %v1125, %v1140
      %v1165 = vmul.f32 %v1126, %v1140
      %v1166 = vmul.f32 %v1127, %v1140
      %v1167 = vmul.f32 %v1128, %v1140
      %v1168 = vmul.f32 %v1129, %v1140
      %v1169 = vmul.f32 %v1130, %v1140
      %v1170 = vmul.f32 %v1131, %v1140
      %v1171 = vmul.f32 %v1132, %v1140
      %v1172 = vmul.f32 %v1133, %v1140
      %v1173 = vmul.f32 %v1134, %v1140
      %v1174 = vld [vmem:[%s3] sm:$0x1]
      %v1176 = vlaneseq
      %v1177 = vshrl.u32 %v1176, 7
      %v1178 = vsub.s32 0, %v1177
      %v1179 = vrot.slane %v1174, %v1178
      %v1181 = vadd.f32 %v1142, %v1179
      %v1182 = vadd.f32 %v1143, %v1179
      %v1183 = vadd.f32 %v1144, %v1179
      %v1184 = vadd.f32 %v1145, %v1179
      %v1185 = vadd.f32 %v1146, %v1179
      %v1186 = vadd.f32 %v1147, %v1179
      %v1187 = vadd.f32 %v1148, %v1179
      %v1188 = vadd.f32 %v1149, %v1179
      %v1189 = vadd.f32 %v1150, %v1179
      %v1190 = vadd.f32 %v1151, %v1179
      %v1191 = vadd.f32 %v1152, %v1179
      %v1192 = vadd.f32 %v1153, %v1179
      %v1193 = vadd.f32 %v1154, %v1179
      %v1194 = vadd.f32 %v1155, %v1179
      %v1195 = vadd.f32 %v1156, %v1179
      %v1196 = vadd.f32 %v1157, %v1179
      %v1197 = vadd.f32 %v1158, %v1179
      %v1198 = vadd.f32 %v1159, %v1179
      %v1199 = vadd.f32 %v1160, %v1179
      %v1200 = vadd.f32 %v1161, %v1179
      %v1201 = vadd.f32 %v1162, %v1179
      %v1202 = vadd.f32 %v1163, %v1179
      %v1203 = vadd.f32 %v1164, %v1179
      %v1204 = vadd.f32 %v1165, %v1179
      %v1205 = vadd.f32 %v1166, %v1179
      %v1206 = vadd.f32 %v1167, %v1179
      %v1207 = vadd.f32 %v1168, %v1179
      %v1208 = vadd.f32 %v1169, %v1179
      %v1209 = vadd.f32 %v1170, %v1179
      %v1210 = vadd.f32 %v1171, %v1179
      %v1211 = vadd.f32 %v1172, %v1179
      %v1212 = vadd.f32 %v1173, %v1179
      %v1213 = vmax.f32 %v1181, 0.0
      %v1214 = vmax.f32 %v1182, 0.0
      %v1215 = vmax.f32 %v1183, 0.0
      %v1216 = vmax.f32 %v1184, 0.0
      %v1217 = vmax.f32 %v1185, 0.0
      %v1218 = vmax.f32 %v1186, 0.0
      %v1219 = vmax.f32 %v1187, 0.0
      %v1220 = vmax.f32 %v1188, 0.0
      %v1221 = vmax.f32 %v1189, 0.0
      %v1222 = vmax.f32 %v1190, 0.0
      %v1223 = vmax.f32 %v1191, 0.0
      %v1224 = vmax.f32 %v1192, 0.0
      %v1225 = vmax.f32 %v1193, 0.0
      %v1226 = vmax.f32 %v1194, 0.0
      %v1227 = vmax.f32 %v1195, 0.0
      %v1228 = vmax.f32 %v1196, 0.0
      %v1229 = vmax.f32 %v1197, 0.0
      %v1230 = vmax.f32 %v1198, 0.0
      %v1231 = vmax.f32 %v1199, 0.0
      %v1232 = vmax.f32 %v1200, 0.0
      %v1233 = vmax.f32 %v1201, 0.0
      %v1234 = vmax.f32 %v1202, 0.0
      %v1235 = vmax.f32 %v1203, 0.0
      %v1236 = vmax.f32 %v1204, 0.0
      %v1237 = vmax.f32 %v1205, 0.0
      %v1238 = vmax.f32 %v1206, 0.0
      %v1239 = vmax.f32 %v1207, 0.0
      %v1240 = vmax.f32 %v1208, 0.0
      %v1241 = vmax.f32 %v1209, 0.0
      %v1242 = vmax.f32 %v1210, 0.0
      %v1243 = vmax.f32 %v1211, 0.0
      %v1244 = vmax.f32 %v1212, 0.0
      %v1245 = vld [vmem:[%s4] sm:$0xff]
      %vm1246 = vcmask 64512
      %v1248 = vsel %vm1246, %v1213, 0
      %v1251 = vsel %vm1246, %v1214, 0
      %v1254 = vsel %vm1246, %v1215, 0
      %v1257 = vsel %vm1246, %v1216, 0
      %v1260 = vsel %vm1246, %v1217, 0
      %v1263 = vsel %vm1246, %v1218, 0
      %v1266 = vsel %vm1246, %v1219, 0
      %v1269 = vsel %vm1246, %v1220, 0
      %v1272 = vsel %vm1246, %v1221, 0
      %v1275 = vsel %vm1246, %v1222, 0
      %v1278 = vsel %vm1246, %v1223, 0
      %v1281 = vsel %vm1246, %v1224, 0
      %v1284 = vsel %vm1246, %v1225, 0
      %v1287 = vsel %vm1246, %v1226, 0
      %v1290 = vsel %vm1246, %v1227, 0
      %v1293 = vsel %vm1246, %v1228, 0
      %v1296 = vsel %vm1246, %v1229, 0
      %v1299 = vsel %vm1246, %v1230, 0
      %v1302 = vsel %vm1246, %v1231, 0
      %v1305 = vsel %vm1246, %v1232, 0
      %v1308 = vsel %vm1246, %v1233, 0
      %v1311 = vsel %vm1246, %v1234, 0
      %v1314 = vsel %vm1246, %v1235, 0
      %v1317 = vsel %vm1246, %v1236, 0
      %v1320 = vsel %vm1246, %v1237, 0
      %v1323 = vsel %vm1246, %v1238, 0
      %v1326 = vsel %vm1246, %v1239, 0
      %v1329 = vsel %vm1246, %v1240, 0
      %v1332 = vsel %vm1246, %v1241, 0
      %v1335 = vsel %vm1246, %v1242, 0
      %v1338 = vsel %vm1246, %v1243, 0
      %v1341 = vsel %vm1246, %v1244, 0
      %1343 = vmatprep.subr.mxu0 0.0
      %1344 = vmatpush1.msra.mxu0 %v1245
      %1345 = vmatprep.subr.mxu0 0.0
      %1346 = vmatpush1.msra.mxu0 0.0
      %1347 = vmatprep.subr.mxu0 0.0
      %1348 = vmatpush1.msra.mxu0 0.0
      %1349 = vmatprep.subr.mxu0 0.0
      %1350 = vmatpush1.msra.mxu0 0.0
      %1351 = vmatprep.subr.mxu0 0.0
      %1352 = vmatpush1.msra.mxu0 0.0
      %1353 = vmatprep.subr.mxu0 0.0
      %1354 = vmatpush1.msra.mxu0 0.0
      %1355 = vmatprep.subr.mxu0 0.0
      %1356 = vmatpush1.msra.mxu0 0.0
      %1357 = vmatprep.subr.mxu0 0.0
      %1358 = vmatpush1.msra.mxu0 0.0
      %1359 = vmatprep.subr.mxu0 0.0
      %1360 = vmatpush1.msra.mxu0 0.0
      %1361 = vmatprep.subr.mxu0 0.0
      %1362 = vmatpush1.msra.mxu0 0.0
      %1363 = vmatprep.subr.mxu0 0.0
      %1364 = vmatpush1.msra.mxu0 0.0
      %1365 = vmatprep.subr.mxu0 0.0
      %1366 = vmatpush1.msra.mxu0 0.0
      %1367 = vmatprep.subr.mxu0 0.0
      %1368 = vmatpush1.msra.mxu0 0.0
      %1369 = vmatprep.subr.mxu0 0.0
      %1370 = vmatpush1.msra.mxu0 0.0
      %1371 = vmatprep.subr.mxu0 0.0
      %1372 = vmatpush1.msra.mxu0 0.0
      %1373 = vmatprep.subr.mxu0 0.0
      %1374 = vmatpush1.msra.mxu0 0.0
      %1375 = vmatprep.subr.mxu0 0.0
      %1376 = vmatpush1.msra.mxu0 0.0
      %1377 = vmatprep.subr.mxu0 0.0
      %1378 = vmatpush1.msra.mxu0 0.0
      %1379 = vmatprep.subr.mxu0 0.0
      %1380 = vmatpush1.msra.mxu0 0.0
      %1381 = vmatprep.subr.mxu0 0.0
      %1382 = vmatpush1.msra.mxu0 0.0
      %1383 = vmatprep.subr.mxu0 0.0
      %1384 = vmatpush1.msra.mxu0 0.0
      %1385 = vmatprep.subr.mxu0 0.0
      %1386 = vmatpush1.msra.mxu0 0.0
      %1387 = vmatprep.subr.mxu0 0.0
      %1388 = vmatpush1.msra.mxu0 0.0
      %1389 = vmatprep.subr.mxu0 0.0
      %1390 = vmatpush1.msra.mxu0 0.0
      %1391 = vmatprep.subr.mxu0 0.0
      %1392 = vmatpush1.msra.mxu0 0.0
      %1393 = vmatprep.subr.mxu0 0.0
      %1394 = vmatpush1.msra.mxu0 0.0
      %1395 = vmatprep.subr.mxu0 0.0
      %1396 = vmatpush1.msra.mxu0 0.0
      %1397 = vmatprep.subr.mxu0 0.0
      %1398 = vmatpush1.msra.mxu0 0.0
      %1399 = vmatprep.subr.mxu0 0.0
      %1400 = vmatpush1.msra.mxu0 0.0
      %1401 = vmatprep.subr.mxu0 0.0
      %1402 = vmatpush1.msra.mxu0 0.0
      %1403 = vmatprep.subr.mxu0 0.0
      %1404 = vmatpush1.msra.mxu0 0.0
      %1405 = vmatprep.subr.mxu0 0.0
      %1406 = vmatpush1.msra.mxu0 0.0
      %1407 = vmatprep.mubr.f32.mxu0 0.0
      %1408 = vmatmul.mubr.f32.gmra.mrb[0].mxu0 %v1248
      %v1409 = vpop.f32.mrb[0].mxu0
      %v1410 = vadd.f32 0.0, %v1409
      %v1411 = vpop.f32.mrb[0].mxu0
      %1412 = vmatprep.mubr.f32.mxu0 0.0
      %1413 = vmatmul.mubr.f32.gmra.mrb[0].mxu0 %v1251
      %v1414 = vpop.f32.mrb[0].mxu0
      %v1415 = vadd.f32 0.0, %v1414
      %v1416 = vpop.f32.mrb[0].mxu0
      %1417 = vmatprep.mubr.f32.mxu0 0.0
      %1418 = vmatmul.mubr.f32.gmra.mrb[0].mxu0 %v1254
      %v1419 = vpop.f32.mrb[0].mxu0
      %v1420 = vadd.f32 0.0, %v1419
      %v1421 = vpop.f32.mrb[0].mxu0
      %1422 = vmatprep.mubr.f32.mxu0 0.0
      %1423 = vmatmul.mubr.f32.gmra.mrb[0].mxu0 %v1257
      %v1424 = vpop.f32.mrb[0].mxu0
      %v1425 = vadd.f32 0.0, %v1424
      %v1426 = vpop.f32.mrb[0].mxu0
      %1427 = vmatprep.mubr.f32.mxu0 0.0
      %1428 = vmatmul.mubr.f32.gmra.mrb[0].mxu0 %v1260
      %v1429 = vpop.f32.mrb[0].mxu0
      %v1430 = vadd.f32 0.0, %v1429
      %v1431 = vpop.f32.mrb[0].mxu0
      %1432 = vmatprep.mubr.f32.mxu0 0.0
      %1433 = vmatmul.mubr.f32.gmra.mrb[0].mxu0 %v1263
      %v1434 = vpop.f32.mrb[0].mxu0
      %v1435 = vadd.f32 0.0, %v1434
      %v1436 = vpop.f32.mrb[0].mxu0
      %1437 = vmatprep.mubr.f32.mxu0 0.0
      %1438 = vmatmul.mubr.f32.gmra.mrb[0].mxu0 %v1266
      %v1439 = vpop.f32.mrb[0].mxu0
      %v1440 = vadd.f32 0.0, %v1439
      %v1441 = vpop.f32.mrb[0].mxu0
      %1442 = vmatprep.mubr.f32.mxu0 0.0
      %1443 = vmatmul.mubr.f32.gmra.mrb[0].mxu0 %v1269
      %v1444 = vpop.f32.mrb[0].mxu0
      %v1445 = vadd.f32 0.0, %v1444
      %v1446 = vpop.f32.mrb[0].mxu0
      %1447 = vmatprep.mubr.f32.mxu0 0.0
      %1448 = vmatmul.mubr.f32.gmra.mrb[0].mxu0 %v1272
      %v1449 = vpop.f32.mrb[0].mxu0
      %v1450 = vadd.f32 0.0, %v1449
      %v1451 = vpop.f32.mrb[0].mxu0
      %1452 = vmatprep.mubr.f32.mxu0 0.0
      %1453 = vmatmul.mubr.f32.gmra.mrb[0].mxu0 %v1275
      %v1454 = vpop.f32.mrb[0].mxu0
      %v1455 = vadd.f32 0.0, %v1454
      %v1456 = vpop.f32.mrb[0].mxu0
      %1457 = vmatprep.mubr.f32.mxu0 0.0
      %1458 = vmatmul.mubr.f32.gmra.mrb[0].mxu0 %v1278
      %v1459 = vpop.f32.mrb[0].mxu0
      %v1460 = vadd.f32 0.0, %v1459
      %v1461 = vpop.f32.mrb[0].mxu0
      %1462 = vmatprep.mubr.f32.mxu0 0.0
      %1463 = vmatmul.mubr.f32.gmra.mrb[0].mxu0 %v1281
      %v1464 = vpop.f32.mrb[0].mxu0
      %v1465 = vadd.f32 0.0, %v1464
      %v1466 = vpop.f32.mrb[0].mxu0
      %1467 = vmatprep.mubr.f32.mxu0 0.0
      %1468 = vmatmul.mubr.f32.gmra.mrb[0].mxu0 %v1284
      %v1469 = vpop.f32.mrb[0].mxu0
      %v1470 = vadd.f32 0.0, %v1469
      %v1471 = vpop.f32.mrb[0].mxu0
      %1472 = vmatprep.mubr.f32.mxu0 0.0
      %1473 = vmatmul.mubr.f32.gmra.mrb[0].mxu0 %v1287
      %v1474 = vpop.f32.mrb[0].mxu0
      %v1475 = vadd.f32 0.0, %v1474
      %v1476 = vpop.f32.mrb[0].mxu0
      %1477 = vmatprep.mubr.f32.mxu0 0.0
      %1478 = vmatmul.mubr.f32.gmra.mrb[0].mxu0 %v1290
      %v1479 = vpop.f32.mrb[0].mxu0
      %v1480 = vadd.f32 0.0, %v1479
      %v1481 = vpop.f32.mrb[0].mxu0
      %1482 = vmatprep.mubr.f32.mxu0 0.0
      %1483 = vmatmul.mubr.f32.gmra.mrb[0].mxu0 %v1293
      %v1484 = vpop.f32.mrb[0].mxu0
      %v1485 = vadd.f32 0.0, %v1484
      %v1486 = vpop.f32.mrb[0].mxu0
      %1487 = vmatprep.mubr.f32.mxu0 0.0
      %1488 = vmatmul.mubr.f32.gmra.mrb[0].mxu0 %v1296
      %v1489 = vpop.f32.mrb[0].mxu0
      %v1490 = vadd.f32 0.0, %v1489
      %v1491 = vpop.f32.mrb[0].mxu0
      %1492 = vmatprep.mubr.f32.mxu0 0.0
      %1493 = vmatmul.mubr.f32.gmra.mrb[0].mxu0 %v1299
      %v1494 = vpop.f32.mrb[0].mxu0
      %v1495 = vadd.f32 0.0, %v1494
      %v1496 = vpop.f32.mrb[0].mxu0
      %1497 = vmatprep.mubr.f32.mxu0 0.0
      %1498 = vmatmul.mubr.f32.gmra.mrb[0].mxu0 %v1302
      %v1499 = vpop.f32.mrb[0].mxu0
      %v1500 = vadd.f32 0.0, %v1499
      %v1501 = vpop.f32.mrb[0].mxu0
      %1502 = vmatprep.mubr.f32.mxu0 0.0
      %1503 = vmatmul.mubr.f32.gmra.mrb[0].mxu0 %v1305
      %v1504 = vpop.f32.mrb[0].mxu0
      %v1505 = vadd.f32 0.0, %v1504
      %v1506 = vpop.f32.mrb[0].mxu0
      %1507 = vmatprep.mubr.f32.mxu0 0.0
      %1508 = vmatmul.mubr.f32.gmra.mrb[0].mxu0 %v1308
      %v1509 = vpop.f32.mrb[0].mxu0
      %v1510 = vadd.f32 0.0, %v1509
      %v1511 = vpop.f32.mrb[0].mxu0
      %1512 = vmatprep.mubr.f32.mxu0 0.0
      %1513 = vmatmul.mubr.f32.gmra.mrb[0].mxu0 %v1311
      %v1514 = vpop.f32.mrb[0].mxu0
      %v1515 = vadd.f32 0.0, %v1514
      %v1516 = vpop.f32.mrb[0].mxu0
      %1517 = vmatprep.mubr.f32.mxu0 0.0
      %1518 = vmatmul.mubr.f32.gmra.mrb[0].mxu0 %v1314
      %v1519 = vpop.f32.mrb[0].mxu0
      %v1520 = vadd.f32 0.0, %v1519
      %v1521 = vpop.f32.mrb[0].mxu0
      %1522 = vmatprep.mubr.f32.mxu0 0.0
      %1523 = vmatmul.mubr.f32.gmra.mrb[0].mxu0 %v1317
      %v1524 = vpop.f32.mrb[0].mxu0
      %v1525 = vadd.f32 0.0, %v1524
      %v1526 = vpop.f32.mrb[0].mxu0
      %1527 = vmatprep.mubr.f32.mxu0 0.0
      %1528 = vmatmul.mubr.f32.gmra.mrb[0].mxu0 %v1320
      %v1529 = vpop.f32.mrb[0].mxu0
      %v1530 = vadd.f32 0.0, %v1529
      %v1531 = vpop.f32.mrb[0].mxu0
      %1532 = vmatprep.mubr.f32.mxu0 0.0
      %1533 = vmatmul.mubr.f32.gmra.mrb[0].mxu0 %v1323
      %v1534 = vpop.f32.mrb[0].mxu0
      %v1535 = vadd.f32 0.0, %v1534
      %v1536 = vpop.f32.mrb[0].mxu0
      %1537 = vmatprep.mubr.f32.mxu0 0.0
      %1538 = vmatmul.mubr.f32.gmra.mrb[0].mxu0 %v1326
      %v1539 = vpop.f32.mrb[0].mxu0
      %v1540 = vadd.f32 0.0, %v1539
      %v1541 = vpop.f32.mrb[0].mxu0
      %1542 = vmatprep.mubr.f32.mxu0 0.0
      %1543 = vmatmul.mubr.f32.gmra.mrb[0].mxu0 %v1329
      %v1544 = vpop.f32.mrb[0].mxu0
      %v1545 = vadd.f32 0.0, %v1544
      %v1546 = vpop.f32.mrb[0].mxu0
      %1547 = vmatprep.mubr.f32.mxu0 0.0
      %1548 = vmatmul.mubr.f32.gmra.mrb[0].mxu0 %v1332
      %v1549 = vpop.f32.mrb[0].mxu0
      %v1550 = vadd.f32 0.0, %v1549
      %v1551 = vpop.f32.mrb[0].mxu0
      %1552 = vmatprep.mubr.f32.mxu0 0.0
      %1553 = vmatmul.mubr.f32.gmra.mrb[0].mxu0 %v1335
      %v1554 = vpop.f32.mrb[0].mxu0
      %v1555 = vadd.f32 0.0, %v1554
      %v1556 = vpop.f32.mrb[0].mxu0
      %1557 = vmatprep.mubr.f32.mxu0 0.0
      %1558 = vmatmul.mubr.f32.gmra.mrb[0].mxu0 %v1338
      %v1559 = vpop.f32.mrb[0].mxu0
      %v1560 = vadd.f32 0.0, %v1559
      %v1561 = vpop.f32.mrb[0].mxu0
      %1562 = vmatprep.mubr.f32.mxu0 0.0
      %1563 = vmatmul.mubr.f32.gmra.mrb[0].mxu0 %v1341
      %v1564 = vpop.f32.mrb[0].mxu0
      %v1565 = vadd.f32 0.0, %v1564
      %v1566 = vpop.f32.mrb[0].mxu0
      %1567 = vdwg.mxu0
      %vm1568 = vcmask 130048
      %v1569 = vsel %vm1568, %v1410, 0.0
      %v1570 = vsel %vm1568, %v1415, 0.0
      %v1571 = vadd.f32 %v1569, %v1570
      %v1572 = vsel %vm1568, %v1420, 0.0
      %v1573 = vadd.f32 %v1571, %v1572
      %v1574 = vsel %vm1568, %v1425, 0.0
      %v1575 = vadd.f32 %v1573, %v1574
      %v1576 = vsel %vm1568, %v1430, 0.0
      %v1577 = vadd.f32 %v1575, %v1576
      %v1578 = vsel %vm1568, %v1435, 0.0
      %v1579 = vadd.f32 %v1577, %v1578
      %v1580 = vsel %vm1568, %v1440, 0.0
      %v1581 = vadd.f32 %v1579, %v1580
      %v1582 = vsel %vm1568, %v1445, 0.0
      %v1583 = vadd.f32 %v1581, %v1582
      %v1584 = vsel %vm1568, %v1450, 0.0
      %v1585 = vadd.f32 %v1583, %v1584
      %v1586 = vsel %vm1568, %v1455, 0.0
      %v1587 = vadd.f32 %v1585, %v1586
      %v1588 = vsel %vm1568, %v1460, 0.0
      %v1589 = vadd.f32 %v1587, %v1588
      %v1590 = vsel %vm1568, %v1465, 0.0
      %v1591 = vadd.f32 %v1589, %v1590
      %v1592 = vsel %vm1568, %v1470, 0.0
      %v1593 = vadd.f32 %v1591, %v1592
      %v1594 = vsel %vm1568, %v1475, 0.0
      %v1595 = vadd.f32 %v1593, %v1594
      %v1596 = vsel %vm1568, %v1480, 0.0
      %v1597 = vadd.f32 %v1595, %v1596
      %v1598 = vsel %vm1568, %v1485, 0.0
      %v1599 = vadd.f32 %v1597, %v1598
      %v1600 = vsel %vm1568, %v1490, 0.0
      %v1601 = vadd.f32 %v1599, %v1600
      %v1602 = vsel %vm1568, %v1495, 0.0
      %v1603 = vadd.f32 %v1601, %v1602
      %v1604 = vsel %vm1568, %v1500, 0.0
      %v1605 = vadd.f32 %v1603, %v1604
      %v1606 = vsel %vm1568, %v1505, 0.0
      %v1607 = vadd.f32 %v1605, %v1606
      %v1608 = vsel %vm1568, %v1510, 0.0
      %v1609 = vadd.f32 %v1607, %v1608
      %v1610 = vsel %vm1568, %v1515, 0.0
      %v1611 = vadd.f32 %v1609, %v1610
      %v1612 = vsel %vm1568, %v1520, 0.0
      %v1613 = vadd.f32 %v1611, %v1612
      %v1614 = vsel %vm1568, %v1525, 0.0
      %v1615 = vadd.f32 %v1613, %v1614
      %v1616 = vsel %vm1568, %v1530, 0.0
      %v1617 = vadd.f32 %v1615, %v1616
      %v1618 = vsel %vm1568, %v1535, 0.0
      %v1619 = vadd.f32 %v1617, %v1618
      %v1620 = vsel %vm1568, %v1540, 0.0
      %v1621 = vadd.f32 %v1619, %v1620
      %v1622 = vsel %vm1568, %v1545, 0.0
      %v1623 = vadd.f32 %v1621, %v1622
      %v1624 = vsel %vm1568, %v1550, 0.0
      %v1625 = vadd.f32 %v1623, %v1624
      %v1626 = vsel %vm1568, %v1555, 0.0
      %v1627 = vadd.f32 %v1625, %v1626
      %v1628 = vsel %vm1568, %v1560, 0.0
      %v1629 = vadd.f32 %v1627, %v1628
      %v1630 = vsel %vm1568, %v1565, 0.0
      %v1631 = vadd.f32 %v1629, %v1630
      %v1632 = vrot.slane %v1631, 4
      %v1633 = vadd.f32 %v1631, %v1632
      %v1634 = vrot.slane %v1633, 2
      %v1635 = vadd.f32 %v1633, %v1634
      %v1636 = vrot.slane %v1635, 1
      %v1637 = vadd.f32 %v1635, %v1636
      %vm1638 = vcmask 122880
      %1639 = vst.msk [vmem:[%s262] sm:$0x1] %vm1638, %v1637
      %v1640 = vmul.f32 %v1410, %v1410
      %v1641 = vmul.f32 %v1415, %v1415
      %v1642 = vmul.f32 %v1420, %v1420
      %v1643 = vmul.f32 %v1425, %v1425
      %v1644 = vmul.f32 %v1430, %v1430
      %v1645 = vmul.f32 %v1435, %v1435
      %v1646 = vmul.f32 %v1440, %v1440
      %v1647 = vmul.f32 %v1445, %v1445
      %v1648 = vmul.f32 %v1450, %v1450
      %v1649 = vmul.f32 %v1455, %v1455
      %v1650 = vmul.f32 %v1460, %v1460
      %v1651 = vmul.f32 %v1465, %v1465
      %v1652 = vmul.f32 %v1470, %v1470
      %v1653 = vmul.f32 %v1475, %v1475
      %v1654 = vmul.f32 %v1480, %v1480
      %v1655 = vmul.f32 %v1485, %v1485
      %v1656 = vmul.f32 %v1490, %v1490
      %v1657 = vmul.f32 %v1495, %v1495
      %v1658 = vmul.f32 %v1500, %v1500
      %v1659 = vmul.f32 %v1505, %v1505
      %v1660 = vmul.f32 %v1510, %v1510
      %v1661 = vmul.f32 %v1515, %v1515
      %v1662 = vmul.f32 %v1520, %v1520
      %v1663 = vmul.f32 %v1525, %v1525
      %v1664 = vmul.f32 %v1530, %v1530
      %v1665 = vmul.f32 %v1535, %v1535
      %v1666 = vmul.f32 %v1540, %v1540
      %v1667 = vmul.f32 %v1545, %v1545
      %v1668 = vmul.f32 %v1550, %v1550
      %v1669 = vmul.f32 %v1555, %v1555
      %v1670 = vmul.f32 %v1560, %v1560
      %v1671 = vmul.f32 %v1565, %v1565
      %v1672 = vsel %vm1568, %v1640, 0.0
      %v1673 = vsel %vm1568, %v1641, 0.0
      %v1674 = vadd.f32 %v1672, %v1673
      %v1675 = vsel %vm1568, %v1642, 0.0
      %v1676 = vadd.f32 %v1674, %v1675
      %v1677 = vsel %vm1568, %v1643, 0.0
      %v1678 = vadd.f32 %v1676, %v1677
      %v1679 = vsel %vm1568, %v1644, 0.0
      %v1680 = vadd.f32 %v1678, %v1679
      %v1681 = vsel %vm1568, %v1645, 0.0
      %v1682 = vadd.f32 %v1680, %v1681
      %v1683 = vsel %vm1568, %v1646, 0.0
      %v1684 = vadd.f32 %v1682, %v1683
      %v1685 = vsel %vm1568, %v1647, 0.0
      %v1686 = vadd.f32 %v1684, %v1685
      %v1687 = vsel %vm1568, %v1648, 0.0
      %v1688 = vadd.f32 %v1686, %v1687
      %v1689 = vsel %vm1568, %v1649, 0.0
      %v1690 = vadd.f32 %v1688, %v1689
      %v1691 = vsel %vm1568, %v1650, 0.0
      %v1692 = vadd.f32 %v1690, %v1691
      %v1693 = vsel %vm1568, %v1651, 0.0
      %v1694 = vadd.f32 %v1692, %v1693
      %v1695 = vsel %vm1568, %v1652, 0.0
      %v1696 = vadd.f32 %v1694, %v1695
      %v1697 = vsel %vm1568, %v1653, 0.0
      %v1698 = vadd.f32 %v1696, %v1697
      %v1699 = vsel %vm1568, %v1654, 0.0
      %v1700 = vadd.f32 %v1698, %v1699
      %v1701 = vsel %vm1568, %v1655, 0.0
      %v1702 = vadd.f32 %v1700, %v1701
      %v1703 = vsel %vm1568, %v1656, 0.0
      %v1704 = vadd.f32 %v1702, %v1703
      %v1705 = vsel %vm1568, %v1657, 0.0
      %v1706 = vadd.f32 %v1704, %v1705
      %v1707 = vsel %vm1568, %v1658, 0.0
      %v1708 = vadd.f32 %v1706, %v1707
      %v1709 = vsel %vm1568, %v1659, 0.0
      %v1710 = vadd.f32 %v1708, %v1709
      %v1711 = vsel %vm1568, %v1660, 0.0
      %v1712 = vadd.f32 %v1710, %v1711
      %v1713 = vsel %vm1568, %v1661, 0.0
      %v1714 = vadd.f32 %v1712, %v1713
      %v1715 = vsel %vm1568, %v1662, 0.0
      %v1716 = vadd.f32 %v1714, %v1715
      %v1717 = vsel %vm1568, %v1663, 0.0
      %v1718 = vadd.f32 %v1716, %v1717
      %v1719 = vsel %vm1568, %v1664, 0.0
      %v1720 = vadd.f32 %v1718, %v1719
      %v1721 = vsel %vm1568, %v1665, 0.0
      %v1722 = vadd.f32 %v1720, %v1721
      %v1723 = vsel %vm1568, %v1666, 0.0
      %v1724 = vadd.f32 %v1722, %v1723
      %v1725 = vsel %vm1568, %v1667, 0.0
      %v1726 = vadd.f32 %v1724, %v1725
      %v1727 = vsel %vm1568, %v1668, 0.0
      %v1728 = vadd.f32 %v1726, %v1727
      %v1729 = vsel %vm1568, %v1669, 0.0
      %v1730 = vadd.f32 %v1728, %v1729
      %v1731 = vsel %vm1568, %v1670, 0.0
      %v1732 = vadd.f32 %v1730, %v1731
      %v1733 = vsel %vm1568, %v1671, 0.0
      %v1734 = vadd.f32 %v1732, %v1733
      %v1735 = vrot.slane %v1734, 4
      %v1736 = vadd.f32 %v1734, %v1735
      %v1737 = vrot.slane %v1736, 2
      %v1738 = vadd.f32 %v1736, %v1737
      %v1739 = vrot.slane %v1738, 1
      %v1740 = vadd.f32 %v1738, %v1739
      %1741 = vst.msk [vmem:[%s262 + $0x1] sm:$0x1] %vm1638, %v1740
      %1742 = vst.msk [vmem:[%s258] sm:$0xff] %vm1568, %v1410
      %1743 = vst.msk [vmem:[%s258 + $0x8] sm:$0xff] %vm1568, %v1415
      %1744 = vst.msk [vmem:[%s258 + $0x10] sm:$0xff] %vm1568, %v1420
      %1745 = vst.msk [vmem:[%s258 + $0x18] sm:$0xff] %vm1568, %v1425
      %1746 = vst.msk [vmem:[%s258 + $0x20] sm:$0xff] %vm1568, %v1430
      %1747 = vst.msk [vmem:[%s258 + $0x28] sm:$0xff] %vm1568, %v1435
      %1748 = vst.msk [vmem:[%s258 + $0x30] sm:$0xff] %vm1568, %v1440
      %1749 = vst.msk [vmem:[%s258 + $0x38] sm:$0xff] %vm1568, %v1445
      %1750 = vst.msk [vmem:[%s258 + $0x40] sm:$0xff] %vm1568, %v1450
      %1751 = vst.msk [vmem:[%s258 + $0x48] sm:$0xff] %vm1568, %v1455
      %1752 = vst.msk [vmem:[%s258 + $0x50] sm:$0xff] %vm1568, %v1460
      %1753 = vst.msk [vmem:[%s258 + $0x58] sm:$0xff] %vm1568, %v1465
      %1754 = vst.msk [vmem:[%s258 + $0x60] sm:$0xff] %vm1568, %v1470
      %1755 = vst.msk [vmem:[%s258 + $0x68] sm:$0xff] %vm1568, %v1475
      %1756 = vst.msk [vmem:[%s258 + $0x70] sm:$0xff] %vm1568, %v1480
      %1757 = vst.msk [vmem:[%s258 + $0x78] sm:$0xff] %vm1568, %v1485
      %1758 = vst.msk [vmem:[%s258 + $0x80] sm:$0xff] %vm1568, %v1490
      %1759 = vst.msk [vmem:[%s258 + $0x88] sm:$0xff] %vm1568, %v1495
      %1760 = vst.msk [vmem:[%s258 + $0x90] sm:$0xff] %vm1568, %v1500
      %1761 = vst.msk [vmem:[%s258 + $0x98] sm:$0xff] %vm1568, %v1505
      %1762 = vst.msk [vmem:[%s258 + $0xa0] sm:$0xff] %vm1568, %v1510
      %1763 = vst.msk [vmem:[%s258 + $0xa8] sm:$0xff] %vm1568, %v1515
      %1764 = vst.msk [vmem:[%s258 + $0xb0] sm:$0xff] %vm1568, %v1520
      %1765 = vst.msk [vmem:[%s258 + $0xb8] sm:$0xff] %vm1568, %v1525
      %1766 = vst.msk [vmem:[%s258 + $0xc0] sm:$0xff] %vm1568, %v1530
      %1767 = vst.msk [vmem:[%s258 + $0xc8] sm:$0xff] %vm1568, %v1535
      %1768 = vst.msk [vmem:[%s258 + $0xd0] sm:$0xff] %vm1568, %v1540
      %1769 = vst.msk [vmem:[%s258 + $0xd8] sm:$0xff] %vm1568, %v1545
      %1770 = vst.msk [vmem:[%s258 + $0xe0] sm:$0xff] %vm1568, %v1550
      %1771 = vst.msk [vmem:[%s258 + $0xe8] sm:$0xff] %vm1568, %v1555
      %1772 = vst.msk [vmem:[%s258 + $0xf0] sm:$0xff] %vm1568, %v1560
      %1773 = vst.msk [vmem:[%s258 + $0xf8] sm:$0xff] %vm1568, %v1565
      %p1774 = scmp.lt.s32.totalorder %s18, 1
      %s1775 = scalar_select %p1774, %s18, 1
      %s1776 = smul.addr %s1775, 32
      %s1777 = smul.addr %s1776, 8
      %s1778 = scalar_lea.vmem %s5, %s1777
      %p1779 = scmp.lt.s32.totalorder %s18, 1
      %s1780 = scalar_select %p1779, %s18, 1
      %s1781 = smul.addr %s1780, 2
      %s1782 = scalar_lea.vmem %s6, %s1781
      // Predicated region
      $region41: #{block_forward.4} parent=39 // pred_check
        %p1783 = pneg %p146
      $region42: #{block_forward.4} parent=39 // pred_check_branch
        %1785 = sbr.rel (%p1783) target = $region44
      $region43: #{block_forward.4} parent=39 // pred_region
        _
      $region44: #{block_forward.4} parent=39 // pred_fallthru
        _
      // Predicated region
      $region45: #{block_forward.4} parent=39 // pred_check
        %p1786 = pneg %p172
      $region46: #{block_forward.4} parent=39 // pred_check_branch
        %1788 = sbr.rel (%p1786) target = $region48
      $region47: #{block_forward.4} parent=39 // pred_region
        _
      $region48: #{block_forward.4} parent=39 // pred_fallthru
        _
    $region40: #{block_forward.4} parent=5 // pred_fallthru
      _
    %p1789 = scmp.le.s32.totalorder 2, %s13
    // Predicated region
    $region49: #{block_forward.4} parent=5 // pred_check
      %p1790 = pneg %p1789
    $region50: #{block_forward.4} parent=5 // pred_check_branch
      %1792 = sbr.rel (%p1790) target = $region52
    $region51: #{block_forward.4} parent=5 // pred_region
      %s1793 = ssub.s32 %s13, 2
      // Predicated region
      $region53: #{block_forward.4} parent=51 // pred_check
        %p1794 = pneg %p152
      $region54: #{block_forward.4} parent=51 // pred_check_branch
        %1796 = sbr.rel (%p1794) target = $region56
      $region55: #{block_forward.4} parent=51 // pred_region
        %p1797 = scmp.lt.s32.totalorder %s19, 1
        %s1798 = scalar_select %p1797, %s19, 1
        %s1799 = smul.addr %s1798, 32
        %s1800 = smul.addr %s1799, 8
        %s1801 = scalar_lea.vmem %s5, %s1800
      $region56: #{block_forward.4} parent=51 // pred_fallthru
        _
      // Predicated region
      $region57: #{block_forward.4} parent=51 // pred_check
        %p1802 = pneg %p178
      $region58: #{block_forward.4} parent=51 // pred_check_branch
        %1804 = sbr.rel (%p1802) target = $region60
      $region59: #{block_forward.4} parent=51 // pred_region
        %p1805 = scmp.lt.s32.totalorder %s19, 1
        %s1806 = scalar_select %p1805, %s19, 1
        %s1807 = smul.addr %s1806, 2
        %s1808 = scalar_lea.vmem %s6, %s1807
      $region60: #{block_forward.4} parent=51 // pred_fallthru
        _
    $region52: #{block_forward.4} parent=5 // pred_fallthru
      _
  $region6: #{block_forward.4} parent=0 // loop_footer
    %s17 = sadd.s32 1, %s13
  $region7: #{block_forward.4} parent=0 // loop_footer_branch
    %12 = sbr.rel target = $region3
  $region8: #{block_forward.4} parent=0 // loop_exit
    _

</llo_original>
